<compile_context>
chip_gen: v6e
topology: v6e:2x2x1
jax: 0.10.0
libtpu: 0.0.40
codegen_flags: <defaults>
</compile_context>

<pallas_src>
import numpy as np
import jax
import jax.numpy as jnp
from jax.experimental import pallas as pl
from jax.experimental.pallas import tpu as pltpu


def _round_up(v, m):
    return (v + m - 1) // m * m


# ----------------------------------------------------------------------------
# Kernel
# ----------------------------------------------------------------------------
def _make_kernel(*, B, P1, P2, Wp1, Wp2, Cmid, Cout, probe_big):
    L1, L2 = B * P1, B * P2
    offs1 = [dy * Wp1 + dx for dy in (-1, 0, 1) for dx in (-1, 0, 1)]
    offs2 = [dy * Wp2 + dx for dy in (-1, 0, 1) for dx in (-1, 0, 1)]

    def roll(v, off, length):
        # rolled[p] = v[(p + off) mod length]  (lane-axis rotate; XLU slot, cheap)
        return v if off == 0 else pltpu.roll(v, shift=(-off) % length, axis=1)

    def conv_rolled_output(z, bias, offs, length):
        # z: (9*Cout, L) per-tap partial outputs computed on the UNSHIFTED grid.
        # out[co, p] = bias[co] + sum_t z[t*Cout + co, p + off_t]
        # Only interior positions are valid; halo/tail garbage is killed downstream
        # (zero rows/cols of place/up, final host-side crop).
        acc = None
        for t, off in enumerate(offs):
            zt = roll(z[t * Cout:(t + 1) * Cout, :], off, length)
            acc = zt if acc is None else acc + zt
        return acc + bias

    def kernel(xa_ref, xb_ref, w1_ref, b1_ref, wa_ref, wb_ref, bb_ref,
               wc_ref, bc_ref, mask_ref, place_hbm, up_hbm,
               o_ref, place_v, up_v, u_scr, sem):
        # -- 0) kick off the structure-matrix DMAs; they complete while the convs run
        cp_place = pltpu.make_async_copy(place_hbm, place_v, sem.at[0])
        cp_place.start()
        if probe_big:
            cp_up = pltpu.make_async_copy(up_hbm, up_v, sem.at[1])
            cp_up.start()

        # -- 1) branch 1: conv1 (Cout == 1) via "roll the output"
        z1 = jnp.dot(w1_ref[...], xa_ref[...], preferred_element_type=jnp.float32)
        x1 = jax.nn.sigmoid(conv_rolled_output(z1, b1_ref[...], offs1, L1))   # (Cout, L1)

        if probe_big:
            # -- 2) convA: single-channel input -> 9 rolled rows + ones row (bias folded)
            rows = [roll(xb_ref[...], off, L1) for off in offs1]
            rows.append(jnp.ones((1, L1), jnp.float32))          # bias column partner
            stacked = jnp.concatenate(rows, axis=0)              # (10, L1), tiny
            a = jnp.dot(wa_ref[...], stacked, preferred_element_type=jnp.float32)
            a = jnp.maximum(a, 0.0) * mask_ref[...]              # ReLU + zero halo/pad lanes

            # -- 3) convB: 9 per-tap matmuls accumulated (no (9*Cmid, L) concat temp)
            acc = None
            for t, off in enumerate(offs1):
                a_sh = roll(a, off, L1)
                w_t = wb_ref[t * Cmid:(t + 1) * Cmid, :]         # static, 8-aligned slice
                y = jnp.dot(w_t, a_sh, preferred_element_type=jnp.float32)
                acc = y if acc is None else acc + y
            bmat = jnp.maximum(acc + bb_ref[...], 0.0)           # (Cmid, L1)

        # -- 4) structure matrices needed from here on: wait, then apply per image
        cp_place.wait()
        if probe_big:
            cp_up.wait()

        x1_bf = x1.astype(jnp.bfloat16)
        for bi in range(B):                                      # static loop, B known
            s1 = slice(bi * P1, (bi + 1) * P1)
            s2 = slice(bi * P2, (bi + 1) * P2)
            # ConstantPad2d placement: interior 8x8 -> centre of the 16x16 grid
            # (zero rows kill halo garbage, zero cols realise the pad ring).
            o_ref[:, s2] = jnp.dot(x1_bf[:, s1], place_v[...],
                                   preferred_element_type=jnp.float32)
            if probe_big:
                # nearest-2x upsample + re-pad folded into one 0/1 matmul
                u_scr[:, s2] = jnp.dot(bmat[:, s1].astype(jnp.bfloat16), up_v[...],
                                       preferred_element_type=jnp.float32)

        if probe_big:
            # -- 5) conv2 (Cout == 1) via "roll the output", SiLU, branch sum
            zc = jnp.dot(wc_ref[...], u_scr[...], preferred_element_type=jnp.float32)
            c = conv_rolled_output(zc, bc_ref[...], offs2, L2)
            o_ref[...] = o_ref[...] + c * jax.nn.sigmoid(c)

    return kernel


# ----------------------------------------------------------------------------
# Host-side packing helpers (layout plumbing only)
# ----------------------------------------------------------------------------
def _pack_activation(v, cpad, Hp, Wp, P):
    # (B, C, H, W) -> (cpad, B*P): each image owns a 128-aligned P-lane block whose
    # first Hp*Wp lanes hold the zero-bordered (Hp, Wp) grid; the rest are zero.
    B, C, H, W = v.shape
    img = jnp.zeros((cpad, B, Hp, Wp), jnp.float32)
    img = img.at[:C, :, 1:H + 1, 1:W + 1].set(
        jnp.transpose(v.astype(jnp.float32), (1, 0, 2, 3)))
    flat = jnp.zeros((cpad, B, P), jnp.float32)
    flat = flat.at[:, :, :Hp * Wp].set(img.reshape(cpad, B, Hp * Wp))
    return flat.reshape(cpad, B * P)


def _pack_tap_rows(w, cin_pad):
    # PyTorch (Cout, Cin, 3, 3) -> (9*Cout, cin_pad); sublane block t = W[:, :, ky, kx],
    # tap order t = ky*3 + kx (matches the in-kernel offset order).
    co, ci, kh, kw = w.shape
    wt = jnp.transpose(w.astype(jnp.float32), (2, 3, 0, 1)).reshape(kh * kw * co, ci)
    return jnp.pad(wt, ((0, 0), (0, cin_pad - ci)))


def _pack_conv_a(w, bias):
    # (Cmid, c_in, 3, 3) + (Cmid,) -> (Cmid, 9*c_in + 1): tap-major columns + bias column.
    co, ci, kh, kw = w.shape
    wt = jnp.transpose(w.astype(jnp.float32), (0, 2, 3, 1)).reshape(co, kh * kw * ci)
    return jnp.concatenate([wt, bias.reshape(co, 1).astype(jnp.float32)], axis=1)


def _make_structure_mats(B, H, N, Wp1, Wp2, P1, P2):
    # Per-image (identical for every image): interior-of-stage-1 -> stage-2 maps.
    pad = N // 4
    mask = np.zeros((1, B * P1), np.float32)
    up = np.zeros((P1, P2), np.float32)
    place = np.zeros((P1, P2), np.float32)
    for i in range(1, H + 1):
        for j in range(1, H + 1):
            q = i * Wp1 + j                                   # interior source lane
            place[q, (i + pad) * Wp2 + (j + pad)] = 1.0       # ConstantPad2d(N//4)
            for di in range(2):
                for dj in range(2):
                    up[q, (2 * i - 1 + di) * Wp2 + (2 * j - 1 + dj)] = 1.0  # nearest 2x
            for b in range(B):
                mask[0, b * P1 + q] = 1.0
    # 0/1 values are exact in bf16 -> halves the structure-matrix DMA.
    return (jnp.asarray(mask),
            jnp.asarray(up, dtype=jnp.bfloat16),
            jnp.asarray(place, dtype=jnp.bfloat16))


# ----------------------------------------------------------------------------
# Public wrapper
# ----------------------------------------------------------------------------
def decoder_last_forward(x, params, *, N=16, probe_big=True):
    """Pallas TPU implementation of Decoder_last.forward (object.big=False)."""
    B, C_in, H, W = x.shape
    assert H == N // 2 and W == N // 2, "Decoder_last expects N/2 x N/2 input"
    c_outer = 1                                   # object.big == False
    C1 = C_in - c_outer
    C1p = _round_up(C1, 8)
    Cmid = params["wa"].shape[0]                  # n_filters_scale * 32
    C_out = params["w1"].shape[0]
    assert Cmid % 8 == 0

    Hp1 = Wp1 = H + 2                             # stage-1 grid (10x10, 1-px halo)
    Hp2 = Wp2 = N + 2                             # stage-2 grid (18x18, 1-px halo)
    P1 = _round_up(Hp1 * Wp1, 128)                # 128 lanes per image, stage 1
    P2 = _round_up(Hp2 * Wp2, 128)                # 384 lanes per image, stage 2
    L1, L2 = B * P1, B * P2

    xa = _pack_activation(x[:, :C1], C1p, Hp1, Wp1, P1)          # (C1p, L1)
    xb = _pack_activation(x[:, C1:], c_outer, Hp1, Wp1, P1)      # (1,   L1)

    w1s = _pack_tap_rows(params["w1"], C1p)                      # (9*C_out, C1p)
    waB = _pack_conv_a(params["wa"], params["ba"])               # (Cmid, 10) bias folded
    wbS = _pack_tap_rows(params["wb"], Cmid)                     # (9*Cmid, Cmid)
    wcs = _pack_tap_rows(params["wc"], Cmid)                     # (9*C_out, Cmid)
    b1 = params["b1"].reshape(C_out, 1).astype(jnp.float32)
    bb = params["bb"].reshape(Cmid, 1).astype(jnp.float32)
    bc = params["bc"].reshape(C_out, 1).astype(jnp.float32)

    mask, up_bf, place_bf = _make_structure_mats(B, H, N, Wp1, Wp2, P1, P2)

    kernel = _make_kernel(B=B, P1=P1, P2=P2, Wp1=Wp1, Wp2=Wp2,
                          Cmid=Cmid, Cout=C_out, probe_big=probe_big)
    vmem = pl.BlockSpec(memory_space=pltpu.MemorySpace.VMEM)
    hbm = pl.BlockSpec(memory_space=pl.ANY)       # manual, overlapped DMA in-kernel

    out_flat = pl.pallas_call(                    # grid-less: single invocation
        kernel,
        out_shape=jax.ShapeDtypeStruct((C_out, L2), jnp.float32),
        in_specs=[vmem] * 10 + [hbm, hbm],
        out_specs=vmem,
        scratch_shapes=[
            pltpu.VMEM((P1, P2), jnp.bfloat16),   # place (per-image)
            pltpu.VMEM((P1, P2), jnp.bfloat16),   # up    (per-image)
            pltpu.VMEM((Cmid, L2), jnp.float32),  # upsampled activation u
            pltpu.SemaphoreType.DMA((2,)),
        ],
    )(xa, xb, w1s, b1, waB, wbS, bb, wcs, bc, mask, place_bf, up_bf)

    out = out_flat.reshape(C_out, B, P2)[:, :, :Hp2 * Wp2]
    out = out.reshape(C_out, B, Hp2, Wp2)[:, :, 1:N + 1, 1:N + 1]
    return jnp.transpose(out, (1, 0, 2, 3))       # (B, C_out, N, N)


# ----------------------------------------------------------------------------
# Pure-JAX reference of the same forward pass
# ----------------------------------------------------------------------------
def _reference(x, params, *, N, probe_big):
    def conv(v, w, b):
        y = jax.lax.conv_general_dilated(
            v, w, (1, 1), "SAME",
            dimension_numbers=("NCHW", "OIHW", "NCHW"),
            precision=jax.lax.Precision.HIGHEST)
        return y + b[None, :, None, None]

    c_outer = 1
    x1 = jax.nn.sigmoid(conv(x[:, :-c_outer], params["w1"], params["b1"]))
    p = N // 4
    x1 = jnp.pad(x1, ((0, 0), (0, 0), (p, p), (p, p)))
    if not probe_big:
        return x1
    a = jax.nn.relu(conv(x[:, -c_outer:], params["wa"], params["ba"]))
    bmap = jax.nn.relu(conv(a, params["wb"], params["bb"]))
    upd = jnp.repeat(jnp.repeat(bmap, 2, axis=2), 2, axis=3)     # nearest 2x
    c = conv(upd, params["wc"], params["bc"])
    c = c * jax.nn.sigmoid(c)                                    # SiLU
    return x1 + c


if __name__ == "__main__":
    key = jax.random.PRNGKey(0)
    B, C_in, N = 2, 32, 16
    H = N // 2
    n_filters_scale = 1
    Cmid = n_filters_scale * 32
    C_out = 1

    ks = jax.random.split(key, 9)
    x = jax.random.normal(ks[0], (B, C_in, H, H), dtype=jnp.float32)
    params = {
        "w1": 0.1 * jax.random.normal(ks[1], (C_out, C_in - 1, 3, 3), jnp.float32),
        "b1": 0.1 * jax.random.normal(ks[2], (C_out,), jnp.float32),
        "wa": 0.1 * jax.random.normal(ks[3], (Cmid, 1, 3, 3), jnp.float32),
        "ba": 0.1 * jax.random.normal(ks[4], (Cmid,), jnp.float32),
        "wb": 0.1 * jax.random.normal(ks[5], (Cmid, Cmid, 3, 3), jnp.float32),
        "bb": 0.1 * jax.random.normal(ks[6], (Cmid,), jnp.float32),
        "wc": 0.1 * jax.random.normal(ks[7], (C_out, Cmid, 3, 3), jnp.float32),
        "bc": 0.1 * jax.random.normal(ks[8], (C_out,), jnp.float32),
    }

    out = decoder_last_forward(x, params, N=N, probe_big=True)
    out = jax.block_until_ready(out)

    ref = _reference(x, params, N=N, probe_big=True)
    assert out.shape == (B, C_out, N, N)
    np.testing.assert_allclose(np.asarray(out), np.asarray(ref),
                               rtol=1e-2, atol=2e-2)
    print("KERNEL_OK")
</pallas_src>

<mosaic_0001>
module attributes {stable_mosaic.version = 11 : i64} {
  func.func @kernel(%arg0: memref<32x256xf32, #tpu.memory_space<vmem>>, %arg1: memref<1x256xf32, #tpu.memory_space<vmem>>, %arg2: memref<9x32xf32, #tpu.memory_space<vmem>>, %arg3: memref<1x1xf32, #tpu.memory_space<vmem>>, %arg4: memref<32x10xf32, #tpu.memory_space<vmem>>, %arg5: memref<288x32xf32, #tpu.memory_space<vmem>>, %arg6: memref<32x1xf32, #tpu.memory_space<vmem>>, %arg7: memref<9x32xf32, #tpu.memory_space<vmem>>, %arg8: memref<1x1xf32, #tpu.memory_space<vmem>>, %arg9: memref<1x256xf32, #tpu.memory_space<vmem>>, %arg10: memref<128x384xbf16, #tpu.memory_space<any>>, %arg11: memref<128x384xbf16, #tpu.memory_space<any>>, %arg12: memref<1x768xf32, #tpu.memory_space<vmem>>, %arg13: memref<128x384xbf16, #tpu.memory_space<vmem>>, %arg14: memref<128x384xbf16, #tpu.memory_space<vmem>>, %arg15: memref<32x768xf32, #tpu.memory_space<vmem>>, %arg16: memref<2x!tpu.dma_semaphore, #tpu.memory_space<semaphore_mem>>) attributes {dimension_semantics = [], scalar_prefetch = 0 : i64, scratch_operands = 4 : i64, tpu.core_type = #tpu.core_type<tc>} {
    %c0_i32 = arith.constant 0 : i32
    %0 = tpu.memref_slice %arg16[%c0_i32] : memref<2x!tpu.dma_semaphore, #tpu.memory_space<semaphore_mem>> -> memref<1x!tpu.dma_semaphore, #tpu.memory_space<semaphore_mem>>
    %1 = tpu.memref_squeeze %0 : memref<1x!tpu.dma_semaphore, #tpu.memory_space<semaphore_mem>> -> memref<!tpu.dma_semaphore, #tpu.memory_space<semaphore_mem>>
    tpu.enqueue_dma source(%arg10 : memref<128x384xbf16, #tpu.memory_space<any>>) target(%arg13 : memref<128x384xbf16, #tpu.memory_space<vmem>>) target_semaphore(%1 : memref<!tpu.dma_semaphore, #tpu.memory_space<semaphore_mem>>)
    %c1_i32 = arith.constant 1 : i32
    %2 = tpu.memref_slice %arg16[%c1_i32] : memref<2x!tpu.dma_semaphore, #tpu.memory_space<semaphore_mem>> -> memref<1x!tpu.dma_semaphore, #tpu.memory_space<semaphore_mem>>
    %3 = tpu.memref_squeeze %2 : memref<1x!tpu.dma_semaphore, #tpu.memory_space<semaphore_mem>> -> memref<!tpu.dma_semaphore, #tpu.memory_space<semaphore_mem>>
    tpu.enqueue_dma source(%arg11 : memref<128x384xbf16, #tpu.memory_space<any>>) target(%arg14 : memref<128x384xbf16, #tpu.memory_space<vmem>>) target_semaphore(%3 : memref<!tpu.dma_semaphore, #tpu.memory_space<semaphore_mem>>)
    %c0 = arith.constant 0 : index
    %c0_0 = arith.constant 0 : index
    %4 = vector.load %arg2[%c0, %c0_0] : memref<9x32xf32, #tpu.memory_space<vmem>>, vector<9x32xf32>
    %c0_1 = arith.constant 0 : index
    %c0_2 = arith.constant 0 : index
    %5 = vector.load %arg0[%c0_1, %c0_2] : memref<32x256xf32, #tpu.memory_space<vmem>>, vector<32x256xf32>
    %cst = arith.constant dense<0.000000e+00> : vector<9x256xf32>
    %6 = tpu.matmul %4, %5, %cst {dimension_numbers = #tpu.dot_dimension_numbers<[1], [0], [0], [1], [0, 0, 1, 1], [], []>} : vector<9x32xf32>, vector<32x256xf32>, vector<9x256xf32> -> vector<9x256xf32>
    %c0_3 = arith.constant 0 : index
    %c0_4 = arith.constant 0 : index
    %7 = vector.load %arg3[%c0_3, %c0_4] : memref<1x1xf32, #tpu.memory_space<vmem>>, vector<1x1xf32>
    %8 = vector.extract_strided_slice %6 {offsets = [0, 0], sizes = [1, 256], strides = [1, 1]} : vector<9x256xf32> to vector<1x256xf32>
    %c11_i32 = arith.constant 11 : i32
    %9 = tpu.dynamic_rotate %8 by %c11_i32 dim 1 : vector<1x256xf32>, i32 -> vector<1x256xf32>
    %10 = vector.extract_strided_slice %6 {offsets = [1, 0], sizes = [1, 256], strides = [1, 1]} : vector<9x256xf32> to vector<1x256xf32>
    %c10_i32 = arith.constant 10 : i32
    %11 = tpu.dynamic_rotate %10 by %c10_i32 dim 1 : vector<1x256xf32>, i32 -> vector<1x256xf32>
    %12 = arith.addf %9, %11 : vector<1x256xf32>
    %13 = vector.extract_strided_slice %6 {offsets = [2, 0], sizes = [1, 256], strides = [1, 1]} : vector<9x256xf32> to vector<1x256xf32>
    %c9_i32 = arith.constant 9 : i32
    %14 = tpu.dynamic_rotate %13 by %c9_i32 dim 1 : vector<1x256xf32>, i32 -> vector<1x256xf32>
    %15 = arith.addf %12, %14 : vector<1x256xf32>
    %16 = vector.extract_strided_slice %6 {offsets = [3, 0], sizes = [1, 256], strides = [1, 1]} : vector<9x256xf32> to vector<1x256xf32>
    %c1_i32_5 = arith.constant 1 : i32
    %17 = tpu.dynamic_rotate %16 by %c1_i32_5 dim 1 : vector<1x256xf32>, i32 -> vector<1x256xf32>
    %18 = arith.addf %15, %17 : vector<1x256xf32>
    %19 = vector.extract_strided_slice %6 {offsets = [4, 0], sizes = [1, 256], strides = [1, 1]} : vector<9x256xf32> to vector<1x256xf32>
    %20 = arith.addf %18, %19 : vector<1x256xf32>
    %21 = vector.extract_strided_slice %6 {offsets = [5, 0], sizes = [1, 256], strides = [1, 1]} : vector<9x256xf32> to vector<1x256xf32>
    %c255_i32 = arith.constant 255 : i32
    %22 = tpu.dynamic_rotate %21 by %c255_i32 dim 1 : vector<1x256xf32>, i32 -> vector<1x256xf32>
    %23 = arith.addf %20, %22 : vector<1x256xf32>
    %24 = vector.extract_strided_slice %6 {offsets = [6, 0], sizes = [1, 256], strides = [1, 1]} : vector<9x256xf32> to vector<1x256xf32>
    %c247_i32 = arith.constant 247 : i32
    %25 = tpu.dynamic_rotate %24 by %c247_i32 dim 1 : vector<1x256xf32>, i32 -> vector<1x256xf32>
    %26 = arith.addf %23, %25 : vector<1x256xf32>
    %27 = vector.extract_strided_slice %6 {offsets = [7, 0], sizes = [1, 256], strides = [1, 1]} : vector<9x256xf32> to vector<1x256xf32>
    %c246_i32 = arith.constant 246 : i32
    %28 = tpu.dynamic_rotate %27 by %c246_i32 dim 1 : vector<1x256xf32>, i32 -> vector<1x256xf32>
    %29 = arith.addf %26, %28 : vector<1x256xf32>
    %30 = vector.extract_strided_slice %6 {offsets = [8, 0], sizes = [1, 256], strides = [1, 1]} : vector<9x256xf32> to vector<1x256xf32>
    %c245_i32 = arith.constant 245 : i32
    %31 = tpu.dynamic_rotate %30 by %c245_i32 dim 1 : vector<1x256xf32>, i32 -> vector<1x256xf32>
    %32 = arith.addf %29, %31 : vector<1x256xf32>
    %33 = vector.broadcast %7 : vector<1x1xf32> to vector<1x256xf32>
    %34 = arith.addf %32, %33 : vector<1x256xf32>
    %35 = arith.negf %34 : vector<1x256xf32>
    %36 = math.exp %35 : vector<1x256xf32>
    %cst_6 = arith.constant 1.000000e+00 : f32
    %37 = vector.broadcast %cst_6 : f32 to vector<1x256xf32>
    %38 = arith.addf %37, %36 : vector<1x256xf32>
    %39 = arith.divf %37, %38 : vector<1x256xf32>
    %c0_7 = arith.constant 0 : index
    %c0_8 = arith.constant 0 : index
    %40 = vector.load %arg1[%c0_7, %c0_8] : memref<1x256xf32, #tpu.memory_space<vmem>>, vector<1x256xf32>
    %c11_i32_9 = arith.constant 11 : i32
    %41 = tpu.dynamic_rotate %40 by %c11_i32_9 dim 1 : vector<1x256xf32>, i32 -> vector<1x256xf32>
    %c0_10 = arith.constant 0 : index
    %c0_11 = arith.constant 0 : index
    %42 = vector.load %arg1[%c0_10, %c0_11] : memref<1x256xf32, #tpu.memory_space<vmem>>, vector<1x256xf32>
    %c10_i32_12 = arith.constant 10 : i32
    %43 = tpu.dynamic_rotate %42 by %c10_i32_12 dim 1 : vector<1x256xf32>, i32 -> vector<1x256xf32>
    %c0_13 = arith.constant 0 : index
    %c0_14 = arith.constant 0 : index
    %44 = vector.load %arg1[%c0_13, %c0_14] : memref<1x256xf32, #tpu.memory_space<vmem>>, vector<1x256xf32>
    %c9_i32_15 = arith.constant 9 : i32
    %45 = tpu.dynamic_rotate %44 by %c9_i32_15 dim 1 : vector<1x256xf32>, i32 -> vector<1x256xf32>
    %c0_16 = arith.constant 0 : index
    %c0_17 = arith.constant 0 : index
    %46 = vector.load %arg1[%c0_16, %c0_17] : memref<1x256xf32, #tpu.memory_space<vmem>>, vector<1x256xf32>
    %c1_i32_18 = arith.constant 1 : i32
    %47 = tpu.dynamic_rotate %46 by %c1_i32_18 dim 1 : vector<1x256xf32>, i32 -> vector<1x256xf32>
    %c0_19 = arith.constant 0 : index
    %c0_20 = arith.constant 0 : index
    %48 = vector.load %arg1[%c0_19, %c0_20] : memref<1x256xf32, #tpu.memory_space<vmem>>, vector<1x256xf32>
    %c0_21 = arith.constant 0 : index
    %c0_22 = arith.constant 0 : index
    %49 = vector.load %arg1[%c0_21, %c0_22] : memref<1x256xf32, #tpu.memory_space<vmem>>, vector<1x256xf32>
    %c255_i32_23 = arith.constant 255 : i32
    %50 = tpu.dynamic_rotate %49 by %c255_i32_23 dim 1 : vector<1x256xf32>, i32 -> vector<1x256xf32>
    %c0_24 = arith.constant 0 : index
    %c0_25 = arith.constant 0 : index
    %51 = vector.load %arg1[%c0_24, %c0_25] : memref<1x256xf32, #tpu.memory_space<vmem>>, vector<1x256xf32>
    %c247_i32_26 = arith.constant 247 : i32
    %52 = tpu.dynamic_rotate %51 by %c247_i32_26 dim 1 : vector<1x256xf32>, i32 -> vector<1x256xf32>
    %c0_27 = arith.constant 0 : index
    %c0_28 = arith.constant 0 : index
    %53 = vector.load %arg1[%c0_27, %c0_28] : memref<1x256xf32, #tpu.memory_space<vmem>>, vector<1x256xf32>
    %c246_i32_29 = arith.constant 246 : i32
    %54 = tpu.dynamic_rotate %53 by %c246_i32_29 dim 1 : vector<1x256xf32>, i32 -> vector<1x256xf32>
    %c0_30 = arith.constant 0 : index
    %c0_31 = arith.constant 0 : index
    %55 = vector.load %arg1[%c0_30, %c0_31] : memref<1x256xf32, #tpu.memory_space<vmem>>, vector<1x256xf32>
    %c245_i32_32 = arith.constant 245 : i32
    %56 = tpu.dynamic_rotate %55 by %c245_i32_32 dim 1 : vector<1x256xf32>, i32 -> vector<1x256xf32>
    %cst_33 = arith.constant 1.000000e+00 : f32
    %57 = vector.broadcast %cst_33 : f32 to vector<1x256xf32>
    %58 = tpu.concatenate %41, %43, %45, %47, %48, %50, %52, %54, %56, %57 in 0 : vector<1x256xf32>, vector<1x256xf32>, vector<1x256xf32>, vector<1x256xf32>, vector<1x256xf32>, vector<1x256xf32>, vector<1x256xf32>, vector<1x256xf32>, vector<1x256xf32>, vector<1x256xf32> -> vector<10x256xf32>
    %c0_34 = arith.constant 0 : index
    %c0_35 = arith.constant 0 : index
    %59 = vector.load %arg4[%c0_34, %c0_35] : memref<32x10xf32, #tpu.memory_space<vmem>>, vector<32x10xf32>
    %cst_36 = arith.constant dense<0.000000e+00> : vector<32x256xf32>
    %60 = tpu.matmul %59, %58, %cst_36 {dimension_numbers = #tpu.dot_dimension_numbers<[1], [0], [0], [1], [0, 0, 1, 1], [], []>} : vector<32x10xf32>, vector<10x256xf32>, vector<32x256xf32> -> vector<32x256xf32>
    %cst_37 = arith.constant 0.000000e+00 : f32
    %61 = vector.broadcast %cst_37 : f32 to vector<32x256xf32>
    %62 = arith.maximumf %60, %61 : vector<32x256xf32>
    %c0_38 = arith.constant 0 : index
    %c0_39 = arith.constant 0 : index
    %63 = vector.load %arg9[%c0_38, %c0_39] : memref<1x256xf32, #tpu.memory_space<vmem>>, vector<1x256xf32>
    %64 = vector.broadcast %63 : vector<1x256xf32> to vector<32x256xf32>
    %65 = arith.mulf %62, %64 : vector<32x256xf32>
    %c11_i32_40 = arith.constant 11 : i32
    %66 = tpu.dynamic_rotate %65 by %c11_i32_40 dim 1 : vector<32x256xf32>, i32 -> vector<32x256xf32>
    %c0_41 = arith.constant 0 : index
    %c0_42 = arith.constant 0 : index
    %67 = vector.load %arg5[%c0_41, %c0_42] : memref<288x32xf32, #tpu.memory_space<vmem>>, vector<32x32xf32>
    %cst_43 = arith.constant dense<0.000000e+00> : vector<32x256xf32>
    %68 = tpu.matmul %67, %66, %cst_43 {dimension_numbers = #tpu.dot_dimension_numbers<[1], [0], [0], [1], [0, 0, 1, 1], [], []>} : vector<32x32xf32>, vector<32x256xf32>, vector<32x256xf32> -> vector<32x256xf32>
    %c10_i32_44 = arith.constant 10 : i32
    %69 = tpu.dynamic_rotate %65 by %c10_i32_44 dim 1 : vector<32x256xf32>, i32 -> vector<32x256xf32>
    %c32 = arith.constant 32 : index
    %c0_45 = arith.constant 0 : index
    %70 = vector.load %arg5[%c32, %c0_45] : memref<288x32xf32, #tpu.memory_space<vmem>>, vector<32x32xf32>
    %cst_46 = arith.constant dense<0.000000e+00> : vector<32x256xf32>
    %71 = tpu.matmul %70, %69, %cst_46 {dimension_numbers = #tpu.dot_dimension_numbers<[1], [0], [0], [1], [0, 0, 1, 1], [], []>} : vector<32x32xf32>, vector<32x256xf32>, vector<32x256xf32> -> vector<32x256xf32>
    %72 = arith.addf %68, %71 : vector<32x256xf32>
    %c9_i32_47 = arith.constant 9 : i32
    %73 = tpu.dynamic_rotate %65 by %c9_i32_47 dim 1 : vector<32x256xf32>, i32 -> vector<32x256xf32>
    %c64 = arith.constant 64 : index
    %c0_48 = arith.constant 0 : index
    %74 = vector.load %arg5[%c64, %c0_48] : memref<288x32xf32, #tpu.memory_space<vmem>>, vector<32x32xf32>
    %cst_49 = arith.constant dense<0.000000e+00> : vector<32x256xf32>
    %75 = tpu.matmul %74, %73, %cst_49 {dimension_numbers = #tpu.dot_dimension_numbers<[1], [0], [0], [1], [0, 0, 1, 1], [], []>} : vector<32x32xf32>, vector<32x256xf32>, vector<32x256xf32> -> vector<32x256xf32>
    %76 = arith.addf %72, %75 : vector<32x256xf32>
    %c1_i32_50 = arith.constant 1 : i32
    %77 = tpu.dynamic_rotate %65 by %c1_i32_50 dim 1 : vector<32x256xf32>, i32 -> vector<32x256xf32>
    %c96 = arith.constant 96 : index
    %c0_51 = arith.constant 0 : index
    %78 = vector.load %arg5[%c96, %c0_51] : memref<288x32xf32, #tpu.memory_space<vmem>>, vector<32x32xf32>
    %cst_52 = arith.constant dense<0.000000e+00> : vector<32x256xf32>
    %79 = tpu.matmul %78, %77, %cst_52 {dimension_numbers = #tpu.dot_dimension_numbers<[1], [0], [0], [1], [0, 0, 1, 1], [], []>} : vector<32x32xf32>, vector<32x256xf32>, vector<32x256xf32> -> vector<32x256xf32>
    %80 = arith.addf %76, %79 : vector<32x256xf32>
    %c128 = arith.constant 128 : index
    %c0_53 = arith.constant 0 : index
    %81 = vector.load %arg5[%c128, %c0_53] : memref<288x32xf32, #tpu.memory_space<vmem>>, vector<32x32xf32>
    %cst_54 = arith.constant dense<0.000000e+00> : vector<32x256xf32>
    %82 = tpu.matmul %81, %65, %cst_54 {dimension_numbers = #tpu.dot_dimension_numbers<[1], [0], [0], [1], [0, 0, 1, 1], [], []>} : vector<32x32xf32>, vector<32x256xf32>, vector<32x256xf32> -> vector<32x256xf32>
    %83 = arith.addf %80, %82 : vector<32x256xf32>
    %c255_i32_55 = arith.constant 255 : i32
    %84 = tpu.dynamic_rotate %65 by %c255_i32_55 dim 1 : vector<32x256xf32>, i32 -> vector<32x256xf32>
    %c160 = arith.constant 160 : index
    %c0_56 = arith.constant 0 : index
    %85 = vector.load %arg5[%c160, %c0_56] : memref<288x32xf32, #tpu.memory_space<vmem>>, vector<32x32xf32>
    %cst_57 = arith.constant dense<0.000000e+00> : vector<32x256xf32>
    %86 = tpu.matmul %85, %84, %cst_57 {dimension_numbers = #tpu.dot_dimension_numbers<[1], [0], [0], [1], [0, 0, 1, 1], [], []>} : vector<32x32xf32>, vector<32x256xf32>, vector<32x256xf32> -> vector<32x256xf32>
    %87 = arith.addf %83, %86 : vector<32x256xf32>
    %c247_i32_58 = arith.constant 247 : i32
    %88 = tpu.dynamic_rotate %65 by %c247_i32_58 dim 1 : vector<32x256xf32>, i32 -> vector<32x256xf32>
    %c192 = arith.constant 192 : index
    %c0_59 = arith.constant 0 : index
    %89 = vector.load %arg5[%c192, %c0_59] : memref<288x32xf32, #tpu.memory_space<vmem>>, vector<32x32xf32>
    %cst_60 = arith.constant dense<0.000000e+00> : vector<32x256xf32>
    %90 = tpu.matmul %89, %88, %cst_60 {dimension_numbers = #tpu.dot_dimension_numbers<[1], [0], [0], [1], [0, 0, 1, 1], [], []>} : vector<32x32xf32>, vector<32x256xf32>, vector<32x256xf32> -> vector<32x256xf32>
    %91 = arith.addf %87, %90 : vector<32x256xf32>
    %c246_i32_61 = arith.constant 246 : i32
    %92 = tpu.dynamic_rotate %65 by %c246_i32_61 dim 1 : vector<32x256xf32>, i32 -> vector<32x256xf32>
    %c224 = arith.constant 224 : index
    %c0_62 = arith.constant 0 : index
    %93 = vector.load %arg5[%c224, %c0_62] : memref<288x32xf32, #tpu.memory_space<vmem>>, vector<32x32xf32>
    %cst_63 = arith.constant dense<0.000000e+00> : vector<32x256xf32>
    %94 = tpu.matmul %93, %92, %cst_63 {dimension_numbers = #tpu.dot_dimension_numbers<[1], [0], [0], [1], [0, 0, 1, 1], [], []>} : vector<32x32xf32>, vector<32x256xf32>, vector<32x256xf32> -> vector<32x256xf32>
    %95 = arith.addf %91, %94 : vector<32x256xf32>
    %c245_i32_64 = arith.constant 245 : i32
    %96 = tpu.dynamic_rotate %65 by %c245_i32_64 dim 1 : vector<32x256xf32>, i32 -> vector<32x256xf32>
    %c256 = arith.constant 256 : index
    %c0_65 = arith.constant 0 : index
    %97 = vector.load %arg5[%c256, %c0_65] : memref<288x32xf32, #tpu.memory_space<vmem>>, vector<32x32xf32>
    %cst_66 = arith.constant dense<0.000000e+00> : vector<32x256xf32>
    %98 = tpu.matmul %97, %96, %cst_66 {dimension_numbers = #tpu.dot_dimension_numbers<[1], [0], [0], [1], [0, 0, 1, 1], [], []>} : vector<32x32xf32>, vector<32x256xf32>, vector<32x256xf32> -> vector<32x256xf32>
    %99 = arith.addf %95, %98 : vector<32x256xf32>
    %c0_67 = arith.constant 0 : index
    %c0_68 = arith.constant 0 : index
    %100 = vector.load %arg6[%c0_67, %c0_68] : memref<32x1xf32, #tpu.memory_space<vmem>>, vector<32x1xf32>
    %101 = vector.broadcast %100 : vector<32x1xf32> to vector<32x256xf32>
    %102 = arith.addf %99, %101 : vector<32x256xf32>
    %cst_69 = arith.constant 0.000000e+00 : f32
    %103 = vector.broadcast %cst_69 : f32 to vector<32x256xf32>
    %104 = arith.maximumf %102, %103 : vector<32x256xf32>
    %c0_i32_70 = arith.constant 0 : i32
    %105 = tpu.memref_slice %arg16[%c0_i32_70] : memref<2x!tpu.dma_semaphore, #tpu.memory_space<semaphore_mem>> -> memref<1x!tpu.dma_semaphore, #tpu.memory_space<semaphore_mem>>
    %106 = tpu.memref_squeeze %105 : memref<1x!tpu.dma_semaphore, #tpu.memory_space<semaphore_mem>> -> memref<!tpu.dma_semaphore, #tpu.memory_space<semaphore_mem>>
    tpu.wait_dma2 semaphore(%106 : memref<!tpu.dma_semaphore, #tpu.memory_space<semaphore_mem>>) src(%arg10 : memref<128x384xbf16, #tpu.memory_space<any>>) dst(%arg13 : memref<128x384xbf16, #tpu.memory_space<vmem>>)
    %c1_i32_71 = arith.constant 1 : i32
    %107 = tpu.memref_slice %arg16[%c1_i32_71] : memref<2x!tpu.dma_semaphore, #tpu.memory_space<semaphore_mem>> -> memref<1x!tpu.dma_semaphore, #tpu.memory_space<semaphore_mem>>
    %108 = tpu.memref_squeeze %107 : memref<1x!tpu.dma_semaphore, #tpu.memory_space<semaphore_mem>> -> memref<!tpu.dma_semaphore, #tpu.memory_space<semaphore_mem>>
    tpu.wait_dma2 semaphore(%108 : memref<!tpu.dma_semaphore, #tpu.memory_space<semaphore_mem>>) src(%arg11 : memref<128x384xbf16, #tpu.memory_space<any>>) dst(%arg14 : memref<128x384xbf16, #tpu.memory_space<vmem>>)
    %109 = arith.truncf %39 : vector<1x256xf32> to vector<1x256xbf16>
    %110 = vector.extract_strided_slice %109 {offsets = [0, 0], sizes = [1, 128], strides = [1, 1]} : vector<1x256xbf16> to vector<1x128xbf16>
    %c0_72 = arith.constant 0 : index
    %c0_73 = arith.constant 0 : index
    %111 = vector.load %arg13[%c0_72, %c0_73] : memref<128x384xbf16, #tpu.memory_space<vmem>>, vector<128x384xbf16>
    %cst_74 = arith.constant dense<0.000000e+00> : vector<1x384xf32>
    %112 = tpu.matmul %110, %111, %cst_74 {dimension_numbers = #tpu.dot_dimension_numbers<[1], [0], [0], [1], [0, 0, 1, 1], [], []>} : vector<1x128xbf16>, vector<128x384xbf16>, vector<1x384xf32> -> vector<1x384xf32>
    %c0_75 = arith.constant 0 : index
    %c0_76 = arith.constant 0 : index
    %113 = vector.load %arg12[%c0_75, %c0_76] : memref<1x768xf32, #tpu.memory_space<vmem>>, vector<1x384xf32>
    tpu.vector_store %arg12[%c0_75, %c0_76], %112 {strides = array<i32>} : memref<1x768xf32, #tpu.memory_space<vmem>>, vector<1x384xf32>,
    %114 = vector.extract_strided_slice %104 {offsets = [0, 0], sizes = [32, 128], strides = [1, 1]} : vector<32x256xf32> to vector<32x128xf32>
    %115 = arith.truncf %114 : vector<32x128xf32> to vector<32x128xbf16>
    %c0_77 = arith.constant 0 : index
    %c0_78 = arith.constant 0 : index
    %116 = vector.load %arg14[%c0_77, %c0_78] : memref<128x384xbf16, #tpu.memory_space<vmem>>, vector<128x384xbf16>
    %cst_79 = arith.constant dense<0.000000e+00> : vector<32x384xf32>
    %117 = tpu.matmul %115, %116, %cst_79 {dimension_numbers = #tpu.dot_dimension_numbers<[1], [0], [0], [1], [0, 0, 1, 1], [], []>} : vector<32x128xbf16>, vector<128x384xbf16>, vector<32x384xf32> -> vector<32x384xf32>
    %c0_80 = arith.constant 0 : index
    %c0_81 = arith.constant 0 : index
    %118 = vector.load %arg15[%c0_80, %c0_81] : memref<32x768xf32, #tpu.memory_space<vmem>>, vector<32x384xf32>
    tpu.vector_store %arg15[%c0_80, %c0_81], %117 {strides = array<i32>} : memref<32x768xf32, #tpu.memory_space<vmem>>, vector<32x384xf32>,
    %119 = vector.extract_strided_slice %109 {offsets = [0, 128], sizes = [1, 128], strides = [1, 1]} : vector<1x256xbf16> to vector<1x128xbf16>
    %c0_82 = arith.constant 0 : index
    %c0_83 = arith.constant 0 : index
    %120 = vector.load %arg13[%c0_82, %c0_83] : memref<128x384xbf16, #tpu.memory_space<vmem>>, vector<128x384xbf16>
    %cst_84 = arith.constant dense<0.000000e+00> : vector<1x384xf32>
    %121 = tpu.matmul %119, %120, %cst_84 {dimension_numbers = #tpu.dot_dimension_numbers<[1], [0], [0], [1], [0, 0, 1, 1], [], []>} : vector<1x128xbf16>, vector<128x384xbf16>, vector<1x384xf32> -> vector<1x384xf32>
    %c0_85 = arith.constant 0 : index
    %c384 = arith.constant 384 : index
    %122 = vector.load %arg12[%c0_85, %c384] : memref<1x768xf32, #tpu.memory_space<vmem>>, vector<1x384xf32>
    tpu.vector_store %arg12[%c0_85, %c384], %121 {strides = array<i32>} : memref<1x768xf32, #tpu.memory_space<vmem>>, vector<1x384xf32>,
    %123 = vector.extract_strided_slice %104 {offsets = [0, 128], sizes = [32, 128], strides = [1, 1]} : vector<32x256xf32> to vector<32x128xf32>
    %124 = arith.truncf %123 : vector<32x128xf32> to vector<32x128xbf16>
    %c0_86 = arith.constant 0 : index
    %c0_87 = arith.constant 0 : index
    %125 = vector.load %arg14[%c0_86, %c0_87] : memref<128x384xbf16, #tpu.memory_space<vmem>>, vector<128x384xbf16>
    %cst_88 = arith.constant dense<0.000000e+00> : vector<32x384xf32>
    %126 = tpu.matmul %124, %125, %cst_88 {dimension_numbers = #tpu.dot_dimension_numbers<[1], [0], [0], [1], [0, 0, 1, 1], [], []>} : vector<32x128xbf16>, vector<128x384xbf16>, vector<32x384xf32> -> vector<32x384xf32>
    %c0_89 = arith.constant 0 : index
    %c384_90 = arith.constant 384 : index
    %127 = vector.load %arg15[%c0_89, %c384_90] : memref<32x768xf32, #tpu.memory_space<vmem>>, vector<32x384xf32>
    tpu.vector_store %arg15[%c0_89, %c384_90], %126 {strides = array<i32>} : memref<32x768xf32, #tpu.memory_space<vmem>>, vector<32x384xf32>,
    %c0_91 = arith.constant 0 : index
    %c0_92 = arith.constant 0 : index
    %128 = vector.load %arg7[%c0_91, %c0_92] : memref<9x32xf32, #tpu.memory_space<vmem>>, vector<9x32xf32>
    %c0_93 = arith.constant 0 : index
    %c0_94 = arith.constant 0 : index
    %129 = vector.load %arg15[%c0_93, %c0_94] : memref<32x768xf32, #tpu.memory_space<vmem>>, vector<32x768xf32>
    %cst_95 = arith.constant dense<0.000000e+00> : vector<9x768xf32>
    %130 = tpu.matmul %128, %129, %cst_95 {dimension_numbers = #tpu.dot_dimension_numbers<[1], [0], [0], [1], [0, 0, 1, 1], [], []>} : vector<9x32xf32>, vector<32x768xf32>, vector<9x768xf32> -> vector<9x768xf32>
    %c0_96 = arith.constant 0 : index
    %c0_97 = arith.constant 0 : index
    %131 = vector.load %arg8[%c0_96, %c0_97] : memref<1x1xf32, #tpu.memory_space<vmem>>, vector<1x1xf32>
    %132 = vector.extract_strided_slice %130 {offsets = [0, 0], sizes = [1, 768], strides = [1, 1]} : vector<9x768xf32> to vector<1x768xf32>
    %c19_i32 = arith.constant 19 : i32
    %133 = tpu.dynamic_rotate %132 by %c19_i32 dim 1 : vector<1x768xf32>, i32 -> vector<1x768xf32>
    %134 = vector.extract_strided_slice %130 {offsets = [1, 0], sizes = [1, 768], strides = [1, 1]} : vector<9x768xf32> to vector<1x768xf32>
    %c18_i32 = arith.constant 18 : i32
    %135 = tpu.dynamic_rotate %134 by %c18_i32 dim 1 : vector<1x768xf32>, i32 -> vector<1x768xf32>
    %136 = arith.addf %133, %135 : vector<1x768xf32>
    %137 = vector.extract_strided_slice %130 {offsets = [2, 0], sizes = [1, 768], strides = [1, 1]} : vector<9x768xf32> to vector<1x768xf32>
    %c17_i32 = arith.constant 17 : i32
    %138 = tpu.dynamic_rotate %137 by %c17_i32 dim 1 : vector<1x768xf32>, i32 -> vector<1x768xf32>
    %139 = arith.addf %136, %138 : vector<1x768xf32>
    %140 = vector.extract_strided_slice %130 {offsets = [3, 0], sizes = [1, 768], strides = [1, 1]} : vector<9x768xf32> to vector<1x768xf32>
    %c1_i32_98 = arith.constant 1 : i32
    %141 = tpu.dynamic_rotate %140 by %c1_i32_98 dim 1 : vector<1x768xf32>, i32 -> vector<1x768xf32>
    %142 = arith.addf %139, %141 : vector<1x768xf32>
    %143 = vector.extract_strided_slice %130 {offsets = [4, 0], sizes = [1, 768], strides = [1, 1]} : vector<9x768xf32> to vector<1x768xf32>
    %144 = arith.addf %142, %143 : vector<1x768xf32>
    %145 = vector.extract_strided_slice %130 {offsets = [5, 0], sizes = [1, 768], strides = [1, 1]} : vector<9x768xf32> to vector<1x768xf32>
    %c767_i32 = arith.constant 767 : i32
    %146 = tpu.dynamic_rotate %145 by %c767_i32 dim 1 : vector<1x768xf32>, i32 -> vector<1x768xf32>
    %147 = arith.addf %144, %146 : vector<1x768xf32>
    %148 = vector.extract_strided_slice %130 {offsets = [6, 0], sizes = [1, 768], strides = [1, 1]} : vector<9x768xf32> to vector<1x768xf32>
    %c751_i32 = arith.constant 751 : i32
    %149 = tpu.dynamic_rotate %148 by %c751_i32 dim 1 : vector<1x768xf32>, i32 -> vector<1x768xf32>
    %150 = arith.addf %147, %149 : vector<1x768xf32>
    %151 = vector.extract_strided_slice %130 {offsets = [7, 0], sizes = [1, 768], strides = [1, 1]} : vector<9x768xf32> to vector<1x768xf32>
    %c750_i32 = arith.constant 750 : i32
    %152 = tpu.dynamic_rotate %151 by %c750_i32 dim 1 : vector<1x768xf32>, i32 -> vector<1x768xf32>
    %153 = arith.addf %150, %152 : vector<1x768xf32>
    %154 = vector.extract_strided_slice %130 {offsets = [8, 0], sizes = [1, 768], strides = [1, 1]} : vector<9x768xf32> to vector<1x768xf32>
    %c749_i32 = arith.constant 749 : i32
    %155 = tpu.dynamic_rotate %154 by %c749_i32 dim 1 : vector<1x768xf32>, i32 -> vector<1x768xf32>
    %156 = arith.addf %153, %155 : vector<1x768xf32>
    %157 = vector.broadcast %131 : vector<1x1xf32> to vector<1x768xf32>
    %158 = arith.addf %156, %157 : vector<1x768xf32>
    %c0_99 = arith.constant 0 : index
    %c0_100 = arith.constant 0 : index
    %159 = vector.load %arg12[%c0_99, %c0_100] : memref<1x768xf32, #tpu.memory_space<vmem>>, vector<1x768xf32>
    %160 = arith.negf %158 : vector<1x768xf32>
    %161 = math.exp %160 : vector<1x768xf32>
    %cst_101 = arith.constant 1.000000e+00 : f32
    %162 = vector.broadcast %cst_101 : f32 to vector<1x768xf32>
    %163 = arith.addf %162, %161 : vector<1x768xf32>
    %164 = arith.divf %162, %163 : vector<1x768xf32>
    %165 = arith.mulf %158, %164 : vector<1x768xf32>
    %166 = arith.addf %159, %165 : vector<1x768xf32>
    %c0_102 = arith.constant 0 : index
    %c0_103 = arith.constant 0 : index
    %167 = vector.load %arg12[%c0_102, %c0_103] : memref<1x768xf32, #tpu.memory_space<vmem>>, vector<1x768xf32>
    tpu.vector_store %arg12[%c0_102, %c0_103], %166 {strides = array<i32>} : memref<1x768xf32, #tpu.memory_space<vmem>>, vector<1x768xf32>,
    return
  }
}

</mosaic_0001>

<llo_original>
// kernel: tpu_custom_call.1
$region0: #{tpu_custom_call.1}
  #allocation0 [shape = 'u32[]', space=smem, size = 0x4, offset = 0x4, fixed_abs, tag = 'smem constant byte address 0x4 - core index']
  #allocation1 [shape = 'u32[144,128]{1,0:T(1,128)}', space=vmem, size = 0x12000, scoped, tag = 'internal scratch']
  #allocation2 [shape = 'bf16[128,384]{1,0:T(8,128)(2,1)}', space=vmem, size = 0x18000, scoped, tag = 'scratch operand']
  #allocation3 [shape = 'bf16[128,384]{1,0:T(8,128)(2,1)}', space=vmem, size = 0x18000, scoped, tag = 'scratch operand']
  #allocation4 [shape = 'f32[32,768]{1,0:T(8,128)}', space=vmem, size = 0x18000, scoped, tag = 'scratch operand']
  #allocation5 [shape = 's32[2]{0}', space=sflag, size = 0x8, scoped, tag = 'scratch operand']
  #allocation6 [shape = 'f32[1,1]{1,0:T(1,128)S(1)}', space=vmem, size = 0x200, scoped, tag = 'scoped memory for tpu_custom_call.1']
  #allocation7 [shape = 'f32[1,1]{1,0:T(1,128)S(1)}', space=vmem, size = 0x200, scoped, tag = 'scoped memory for tpu_custom_call.1']
  #allocation12 [shape = 's32[]', space=sflag, size = 0x4, offset = 0, fixed_abs, tag = 'sflag constant byte address 0x0 - dummy sync flag']
  #allocation13 [shape = 's32[]', space=sflag, size = 0x4, offset = 0, fixed_abs, tag = 'sflag constant byte address 0x0 - dummy sync flag']
  %s0 = inlined_call_operand.vmem [shape: f32[32,256], index: 0, kind: input, shape index: {}]
  %s1 = inlined_call_operand.vmem [shape: f32[1,256], index: 1, kind: input, shape index: {}]
  %s2 = inlined_call_operand.vmem [shape: f32[9,32], index: 2, kind: input, shape index: {}]
  %s3 = inlined_call_operand.<no memory space> [shape: f32[1,1], index: 3, kind: input, shape index: {}]
  %s4 = inlined_call_operand.vmem [shape: f32[32,10], index: 4, kind: input, shape index: {}]
  %s5 = inlined_call_operand.vmem [shape: f32[288,32], index: 5, kind: input, shape index: {}]
  %s6 = inlined_call_operand.vmem [shape: f32[32,1], index: 6, kind: input, shape index: {}]
  %s7 = inlined_call_operand.hbm [shape: f32[9,32], index: 7, kind: input, shape index: {}]
  %s8 = inlined_call_operand.<no memory space> [shape: f32[1,1], index: 8, kind: input, shape index: {}]
  %s9 = inlined_call_operand.vmem [shape: f32[1,256], index: 9, kind: input, shape index: {}]
  %s10 = inlined_call_operand.vmem [shape: bf16[128,384], index: 10, kind: input, shape index: {}]
  %s11 = inlined_call_operand.vmem [shape: bf16[128,384], index: 11, kind: input, shape index: {}]
  %s12 = inlined_call_operand.hbm [shape: f32[1,768], index: 12, kind: output, shape index: {}]
  %s13 = sld [smem:[#allocation0]]
  $region122: #{tpu_custom_call.1} parent=0
    _
  %s15 = ssub.s32 1, %s13
  %s16 = scalar_select 0, %s15, %s13
  %v17 = vstv %s3
  %18 = vst [vmem:[#allocation6] sm:$0x1] %v17
  %v19 = vstv %s8
  %20 = vst [vmem:[#allocation7] sm:$0x1] %v19
  $region1: #{tpu_custom_call.1} parent=0
    #allocation8 [shape = 'u8[8192]{0}', space=vmem, size = 0x2000, scoped, tag = 'input window, operand 7, single buffered']
    #allocation9 [shape = 's32[1]{0}', space=sflag, size = 0x4, scoped, tag = 'scoped memory for tpu_custom_call.1']
    #allocation10 [shape = 's32[1]{0}', space=sflag, size = 0x4, scoped, tag = 'scoped memory for tpu_custom_call.1']
    #allocation11 [shape = 'u8[3072]{0}', space=vmem, size = 0xc00, scoped, tag = 'output window, operand 0, single buffered']
    %21 = vsyncpa [#allocation9], 0
    %22 = vsyncpa [#allocation10], 0
    // Predicated region
    $region2: #{tpu_custom_call.1} parent=1 // pred_check
      _
    $region3: #{tpu_custom_call.1} parent=1 // pred_check_branch
      %24 = sbr.rel (0) target = $region5
    $region4: #{tpu_custom_call.1} parent=1 // pred_region
      _
    $region5: #{tpu_custom_call.1} parent=1 // pred_fallthru
      _
    // Predicated region
    $region6: #{tpu_custom_call.1} parent=1 // pred_check
      _
    $region7: #{tpu_custom_call.1} parent=1 // pred_check_branch
      %26 = sbr.rel (0) target = $region9
    $region8: #{tpu_custom_call.1} parent=1 // pred_region
      _
    $region9: #{tpu_custom_call.1} parent=1 // pred_fallthru
      _
    // Predicated region
    $region10: #{tpu_custom_call.1} parent=1 // pred_check
      _
    $region11: #{tpu_custom_call.1} parent=1 // pred_check_branch
      %28 = sbr.rel (0) target = $region13
    $region12: #{tpu_custom_call.1} parent=1 // pred_region
      _
    $region13: #{tpu_custom_call.1} parent=1 // pred_fallthru
      _
    // Predicated region
    $region14: #{tpu_custom_call.1} parent=1 // pred_check
      _
    $region15: #{tpu_custom_call.1} parent=1 // pred_check_branch
      %30 = sbr.rel (0) target = $region17
    $region16: #{tpu_custom_call.1} parent=1 // pred_region
      _
    $region17: #{tpu_custom_call.1} parent=1 // pred_fallthru
      _
    // Predicated region
    $region18: #{tpu_custom_call.1} parent=1 // pred_check
      _
    $region19: #{tpu_custom_call.1} parent=1 // pred_check_branch
      %32 = sbr.rel (0) target = $region21
    $region20: #{tpu_custom_call.1} parent=1 // pred_region
      _
    $region21: #{tpu_custom_call.1} parent=1 // pred_fallthru
      _
    // Predicated region
    $region22: #{tpu_custom_call.1} parent=1 // pred_check
      _
    $region23: #{tpu_custom_call.1} parent=1 // pred_check_branch
      %34 = sbr.rel (0) target = $region25
    $region24: #{tpu_custom_call.1} parent=1 // pred_region
      _
    $region25: #{tpu_custom_call.1} parent=1 // pred_fallthru
      _
    // Predicated region
    $region26: #{tpu_custom_call.1} parent=1 // pred_check
      _
    $region27: #{tpu_custom_call.1} parent=1 // pred_check_branch
      %36 = sbr.rel (0) target = $region29
    $region28: #{tpu_custom_call.1} parent=1 // pred_region
      _
    $region29: #{tpu_custom_call.1} parent=1 // pred_fallthru
      _
    // Predicated region
    $region30: #{tpu_custom_call.1} parent=1 // pred_check
      _
    $region31: #{tpu_custom_call.1} parent=1 // pred_check_branch
      %38 = sbr.rel (0) target = $region33
    $region32: #{tpu_custom_call.1} parent=1 // pred_region
      %s40 = ssub.s32 256, 256
      %41 = vsyncadd [#allocation9], %s40
      %s42 = sshll.u32 [#allocation8], 4
      %s43 = int_to_ptr.vmem [resolvable:$true] %s42
      %48 = dma.hbm_to_vmem [thread:$0]  %s7, 256, %s43, [#allocation9], 128, 128, 8
    $region33: #{tpu_custom_call.1} parent=1 // pred_fallthru
      _
    // Predicated region
    $region34: #{tpu_custom_call.1} parent=1 // pred_check
      _
    $region35: #{tpu_custom_call.1} parent=1 // pred_check_branch
      %50 = sbr.rel (0) target = $region37
    $region36: #{tpu_custom_call.1} parent=1 // pred_region
      _
    $region37: #{tpu_custom_call.1} parent=1 // pred_fallthru
      _
    // Predicated region
    $region38: #{tpu_custom_call.1} parent=1 // pred_check
      _
    $region39: #{tpu_custom_call.1} parent=1 // pred_check_branch
      %52 = sbr.rel (0) target = $region41
    $region40: #{tpu_custom_call.1} parent=1 // pred_region
      _
    $region41: #{tpu_custom_call.1} parent=1 // pred_fallthru
      _
    // Predicated region
    $region42: #{tpu_custom_call.1} parent=1 // pred_check
      _
    $region43: #{tpu_custom_call.1} parent=1 // pred_check_branch
      %54 = sbr.rel (0) target = $region45
    $region44: #{tpu_custom_call.1} parent=1 // pred_region
      %55 = dma.done [#allocation9], 256
    $region45: #{tpu_custom_call.1} parent=1 // pred_fallthru
      _
    %p58 = scmp.lt.u32.totalorder 192, 8
    %p59 = pneg %p58
    // Predicated region
    $region46: #{tpu_custom_call.1} parent=1 // pred_check
      _
    $region47: #{tpu_custom_call.1} parent=1 // pred_check_branch
      %61 = sbr.rel (%p58) target = $region49
    $region48: #{tpu_custom_call.1} parent=1 // pred_region
      %s77 = sand.u32 192, 7
      %p78 = scmp.eq.s32.totalorder %s77, 0
      // Predicated region
      $region61: #{tpu_custom_call.1} parent=48 // pred_check
        %p79 = pneg %p78
      $region62: #{tpu_custom_call.1} parent=48 // pred_check_branch
        %81 = sbr.rel (%p79) target = $region64
      $region63: #{tpu_custom_call.1} parent=48 // pred_region
        loop: start=0, step=1, limit=1
        $region65: #{tpu_custom_call.1} parent=63 // loop_pre_header
          _
        $region66: #{tpu_custom_call.1} parent=63 // loop_header
          %s83 = sphi 0, %s87
          %p84 = scmp.ge.s32.totalorder %s83, 1
          %s88 = sphi %s10, %s10
          %s89 = sphi [#allocation2], [#allocation2]
        $region67: #{tpu_custom_call.1} parent=63 // loop_header_branch
          %86 = sbr.rel (%p84) target = $region71
        $region68: #{tpu_custom_call.1} parent=63 // loop_body
          %v90 = vld [vmem:[%s88] sm:$0xff]
          %91 = vst [vmem:[%s89] sm:$0xff] %v90
          %v92 = vld [vmem:[%s88 + $0x8] sm:$0xff]
          %93 = vst [vmem:[%s89 + $0x8] sm:$0xff] %v92
          %v94 = vld [vmem:[%s88 + $0x10] sm:$0xff]
          %95 = vst [vmem:[%s89 + $0x10] sm:$0xff] %v94
          %v96 = vld [vmem:[%s88 + $0x18] sm:$0xff]
          %97 = vst [vmem:[%s89 + $0x18] sm:$0xff] %v96
          %v98 = vld [vmem:[%s88 + $0x20] sm:$0xff]
          %99 = vst [vmem:[%s89 + $0x20] sm:$0xff] %v98
          %v100 = vld [vmem:[%s88 + $0x28] sm:$0xff]
          %101 = vst [vmem:[%s89 + $0x28] sm:$0xff] %v100
          %v102 = vld [vmem:[%s88 + $0x30] sm:$0xff]
          %103 = vst [vmem:[%s89 + $0x30] sm:$0xff] %v102
          %v104 = vld [vmem:[%s88 + $0x38] sm:$0xff]
          %105 = vst [vmem:[%s89 + $0x38] sm:$0xff] %v104
          %v106 = vld [vmem:[%s88 + $0x40] sm:$0xff]
          %107 = vst [vmem:[%s89 + $0x40] sm:$0xff] %v106
          %v108 = vld [vmem:[%s88 + $0x48] sm:$0xff]
          %109 = vst [vmem:[%s89 + $0x48] sm:$0xff] %v108
          %v110 = vld [vmem:[%s88 + $0x50] sm:$0xff]
          %111 = vst [vmem:[%s89 + $0x50] sm:$0xff] %v110
          %v112 = vld [vmem:[%s88 + $0x58] sm:$0xff]
          %113 = vst [vmem:[%s89 + $0x58] sm:$0xff] %v112
          %v114 = vld [vmem:[%s88 + $0x60] sm:$0xff]
          %115 = vst [vmem:[%s89 + $0x60] sm:$0xff] %v114
          %v116 = vld [vmem:[%s88 + $0x68] sm:$0xff]
          %117 = vst [vmem:[%s89 + $0x68] sm:$0xff] %v116
          %v118 = vld [vmem:[%s88 + $0x70] sm:$0xff]
          %119 = vst [vmem:[%s89 + $0x70] sm:$0xff] %v118
          %v120 = vld [vmem:[%s88 + $0x78] sm:$0xff]
          %121 = vst [vmem:[%s89 + $0x78] sm:$0xff] %v120
          %v122 = vld [vmem:[%s88 + $0x80] sm:$0xff]
          %123 = vst [vmem:[%s89 + $0x80] sm:$0xff] %v122
          %v124 = vld [vmem:[%s88 + $0x88] sm:$0xff]
          %125 = vst [vmem:[%s89 + $0x88] sm:$0xff] %v124
          %v126 = vld [vmem:[%s88 + $0x90] sm:$0xff]
          %127 = vst [vmem:[%s89 + $0x90] sm:$0xff] %v126
          %v128 = vld [vmem:[%s88 + $0x98] sm:$0xff]
          %129 = vst [vmem:[%s89 + $0x98] sm:$0xff] %v128
          %v130 = vld [vmem:[%s88 + $0xa0] sm:$0xff]
          %131 = vst [vmem:[%s89 + $0xa0] sm:$0xff] %v130
          %v132 = vld [vmem:[%s88 + $0xa8] sm:$0xff]
          %133 = vst [vmem:[%s89 + $0xa8] sm:$0xff] %v132
          %v134 = vld [vmem:[%s88 + $0xb0] sm:$0xff]
          %135 = vst [vmem:[%s89 + $0xb0] sm:$0xff] %v134
          %v136 = vld [vmem:[%s88 + $0xb8] sm:$0xff]
          %137 = vst [vmem:[%s89 + $0xb8] sm:$0xff] %v136
        $region69: #{tpu_custom_call.1} parent=63 // loop_footer
          %s87 = sadd.s32 1, %s83
        $region70: #{tpu_custom_call.1} parent=63 // loop_footer_branch
          %82 = sbr.rel target = $region66
        $region71: #{tpu_custom_call.1} parent=63 // loop_exit
          _
      $region64: #{tpu_custom_call.1} parent=48 // pred_fallthru
        _
      %p138 = pneg %p78
      // Predicated region
      $region72: #{tpu_custom_call.1} parent=48 // pred_check
        _
      $region73: #{tpu_custom_call.1} parent=48 // pred_check_branch
        %140 = sbr.rel (%p78) target = $region75
      $region74: #{tpu_custom_call.1} parent=48 // pred_region
        %s141 = sand.u32 192, 7
      $region75: #{tpu_custom_call.1} parent=48 // pred_fallthru
        _
    $region49: #{tpu_custom_call.1} parent=1 // pred_fallthru
      _
    // Predicated region
    $region50: #{tpu_custom_call.1} parent=1 // pred_check
      %p62 = pneg %p58
    $region51: #{tpu_custom_call.1} parent=1 // pred_check_branch
      %64 = sbr.rel (%p62) target = $region53
    $region52: #{tpu_custom_call.1} parent=1 // pred_region
      %s65 = sshll.u32 1, 192
      %s66 = ssub.s32 %s65, 1
      loop: start=0, step=1, limit=1
      $region54: #{tpu_custom_call.1} parent=52 // loop_pre_header
        _
      $region55: #{tpu_custom_call.1} parent=52 // loop_header
        %s68 = sphi 0, %s72
        %p69 = scmp.ge.s32.totalorder %s68, 1
        %s73 = sphi %s10, %s10
        %s74 = sphi [#allocation2], [#allocation2]
      $region56: #{tpu_custom_call.1} parent=52 // loop_header_branch
        %71 = sbr.rel (%p69) target = $region60
      $region57: #{tpu_custom_call.1} parent=52 // loop_body
        %v75 = vld [vmem:[%s73] sm:%s66]
        %76 = vst [vmem:[%s74] sm:%s66] %v75
      $region58: #{tpu_custom_call.1} parent=52 // loop_footer
        %s72 = sadd.s32 1, %s68
      $region59: #{tpu_custom_call.1} parent=52 // loop_footer_branch
        %67 = sbr.rel target = $region55
      $region60: #{tpu_custom_call.1} parent=52 // loop_exit
        _
    $region53: #{tpu_custom_call.1} parent=1 // pred_fallthru
      _
    // Predicated region
    $region76: #{tpu_custom_call.1} parent=1 // pred_check
      _
    $region77: #{tpu_custom_call.1} parent=1 // pred_check_branch
      %144 = sbr.rel (0) target = $region79
    $region78: #{tpu_custom_call.1} parent=1 // pred_region
      %145 = vsyncadd [#allocation5], 3072
    $region79: #{tpu_custom_call.1} parent=1 // pred_fallthru
      _
    %s146 = scalar_lea.sflag [#allocation5], 1
    %p148 = scmp.lt.u32.totalorder 192, 8
    %p149 = pneg %p148
    // Predicated region
    $region80: #{tpu_custom_call.1} parent=1 // pred_check
      _
    $region81: #{tpu_custom_call.1} parent=1 // pred_check_branch
      %151 = sbr.rel (%p148) target = $region83
    $region82: #{tpu_custom_call.1} parent=1 // pred_region
      %s167 = sand.u32 192, 7
      %p168 = scmp.eq.s32.totalorder %s167, 0
      // Predicated region
      $region95: #{tpu_custom_call.1} parent=82 // pred_check
        %p169 = pneg %p168
      $region96: #{tpu_custom_call.1} parent=82 // pred_check_branch
        %171 = sbr.rel (%p169) target = $region98
      $region97: #{tpu_custom_call.1} parent=82 // pred_region
        loop: start=0, step=1, limit=1
        $region99: #{tpu_custom_call.1} parent=97 // loop_pre_header
          _
        $region100: #{tpu_custom_call.1} parent=97 // loop_header
          %s173 = sphi 0, %s177
          %p174 = scmp.ge.s32.totalorder %s173, 1
          %s178 = sphi %s11, %s11
          %s179 = sphi [#allocation3], [#allocation3]
        $region101: #{tpu_custom_call.1} parent=97 // loop_header_branch
          %176 = sbr.rel (%p174) target = $region105
        $region102: #{tpu_custom_call.1} parent=97 // loop_body
          %v180 = vld [vmem:[%s178] sm:$0xff]
          %181 = vst [vmem:[%s179] sm:$0xff] %v180
          %v182 = vld [vmem:[%s178 + $0x8] sm:$0xff]
          %183 = vst [vmem:[%s179 + $0x8] sm:$0xff] %v182
          %v184 = vld [vmem:[%s178 + $0x10] sm:$0xff]
          %185 = vst [vmem:[%s179 + $0x10] sm:$0xff] %v184
          %v186 = vld [vmem:[%s178 + $0x18] sm:$0xff]
          %187 = vst [vmem:[%s179 + $0x18] sm:$0xff] %v186
          %v188 = vld [vmem:[%s178 + $0x20] sm:$0xff]
          %189 = vst [vmem:[%s179 + $0x20] sm:$0xff] %v188
          %v190 = vld [vmem:[%s178 + $0x28] sm:$0xff]
          %191 = vst [vmem:[%s179 + $0x28] sm:$0xff] %v190
          %v192 = vld [vmem:[%s178 + $0x30] sm:$0xff]
          %193 = vst [vmem:[%s179 + $0x30] sm:$0xff] %v192
          %v194 = vld [vmem:[%s178 + $0x38] sm:$0xff]
          %195 = vst [vmem:[%s179 + $0x38] sm:$0xff] %v194
          %v196 = vld [vmem:[%s178 + $0x40] sm:$0xff]
          %197 = vst [vmem:[%s179 + $0x40] sm:$0xff] %v196
          %v198 = vld [vmem:[%s178 + $0x48] sm:$0xff]
          %199 = vst [vmem:[%s179 + $0x48] sm:$0xff] %v198
          %v200 = vld [vmem:[%s178 + $0x50] sm:$0xff]
          %201 = vst [vmem:[%s179 + $0x50] sm:$0xff] %v200
          %v202 = vld [vmem:[%s178 + $0x58] sm:$0xff]
          %203 = vst [vmem:[%s179 + $0x58] sm:$0xff] %v202
          %v204 = vld [vmem:[%s178 + $0x60] sm:$0xff]
          %205 = vst [vmem:[%s179 + $0x60] sm:$0xff] %v204
          %v206 = vld [vmem:[%s178 + $0x68] sm:$0xff]
          %207 = vst [vmem:[%s179 + $0x68] sm:$0xff] %v206
          %v208 = vld [vmem:[%s178 + $0x70] sm:$0xff]
          %209 = vst [vmem:[%s179 + $0x70] sm:$0xff] %v208
          %v210 = vld [vmem:[%s178 + $0x78] sm:$0xff]
          %211 = vst [vmem:[%s179 + $0x78] sm:$0xff] %v210
          %v212 = vld [vmem:[%s178 + $0x80] sm:$0xff]
          %213 = vst [vmem:[%s179 + $0x80] sm:$0xff] %v212
          %v214 = vld [vmem:[%s178 + $0x88] sm:$0xff]
          %215 = vst [vmem:[%s179 + $0x88] sm:$0xff] %v214
          %v216 = vld [vmem:[%s178 + $0x90] sm:$0xff]
          %217 = vst [vmem:[%s179 + $0x90] sm:$0xff] %v216
          %v218 = vld [vmem:[%s178 + $0x98] sm:$0xff]
          %219 = vst [vmem:[%s179 + $0x98] sm:$0xff] %v218
          %v220 = vld [vmem:[%s178 + $0xa0] sm:$0xff]
          %221 = vst [vmem:[%s179 + $0xa0] sm:$0xff] %v220
          %v222 = vld [vmem:[%s178 + $0xa8] sm:$0xff]
          %223 = vst [vmem:[%s179 + $0xa8] sm:$0xff] %v222
          %v224 = vld [vmem:[%s178 + $0xb0] sm:$0xff]
          %225 = vst [vmem:[%s179 + $0xb0] sm:$0xff] %v224
          %v226 = vld [vmem:[%s178 + $0xb8] sm:$0xff]
          %227 = vst [vmem:[%s179 + $0xb8] sm:$0xff] %v226
        $region103: #{tpu_custom_call.1} parent=97 // loop_footer
          %s177 = sadd.s32 1, %s173
        $region104: #{tpu_custom_call.1} parent=97 // loop_footer_branch
          %172 = sbr.rel target = $region100
        $region105: #{tpu_custom_call.1} parent=97 // loop_exit
          _
      $region98: #{tpu_custom_call.1} parent=82 // pred_fallthru
        _
      %p228 = pneg %p168
      // Predicated region
      $region106: #{tpu_custom_call.1} parent=82 // pred_check
        _
      $region107: #{tpu_custom_call.1} parent=82 // pred_check_branch
        %230 = sbr.rel (%p168) target = $region109
      $region108: #{tpu_custom_call.1} parent=82 // pred_region
        %s231 = sand.u32 192, 7
      $region109: #{tpu_custom_call.1} parent=82 // pred_fallthru
        _
    $region83: #{tpu_custom_call.1} parent=1 // pred_fallthru
      _
    // Predicated region
    $region84: #{tpu_custom_call.1} parent=1 // pred_check
      %p152 = pneg %p148
    $region85: #{tpu_custom_call.1} parent=1 // pred_check_branch
      %154 = sbr.rel (%p152) target = $region87
    $region86: #{tpu_custom_call.1} parent=1 // pred_region
      %s155 = sshll.u32 1, 192
      %s156 = ssub.s32 %s155, 1
      loop: start=0, step=1, limit=1
      $region88: #{tpu_custom_call.1} parent=86 // loop_pre_header
        _
      $region89: #{tpu_custom_call.1} parent=86 // loop_header
        %s158 = sphi 0, %s162
        %p159 = scmp.ge.s32.totalorder %s158, 1
        %s163 = sphi %s11, %s11
        %s164 = sphi [#allocation3], [#allocation3]
      $region90: #{tpu_custom_call.1} parent=86 // loop_header_branch
        %161 = sbr.rel (%p159) target = $region94
      $region91: #{tpu_custom_call.1} parent=86 // loop_body
        %v165 = vld [vmem:[%s163] sm:%s156]
        %166 = vst [vmem:[%s164] sm:%s156] %v165
      $region92: #{tpu_custom_call.1} parent=86 // loop_footer
        %s162 = sadd.s32 1, %s158
      $region93: #{tpu_custom_call.1} parent=86 // loop_footer_branch
        %157 = sbr.rel target = $region89
      $region94: #{tpu_custom_call.1} parent=86 // loop_exit
        _
    $region87: #{tpu_custom_call.1} parent=1 // pred_fallthru
      _
    // Predicated region
    $region110: #{tpu_custom_call.1} parent=1 // pred_check
      _
    $region111: #{tpu_custom_call.1} parent=1 // pred_check_branch
      %234 = sbr.rel (0) target = $region113
    $region112: #{tpu_custom_call.1} parent=1 // pred_region
      %235 = vsyncadd %s146, 3072
    $region113: #{tpu_custom_call.1} parent=1 // pred_fallthru
      _
    %v236 = vld [vmem:[%s2] sm:$0xff]
    %v237 = vld [vmem:[%s2 + $0x8] sm:$0x1]
    %v238 = vld [vmem:[%s0] sm:$0xff]
    %v239 = vld [vmem:[%s0 + $0x8] sm:$0xff]
    %v240 = vld [vmem:[%s0 + $0x10] sm:$0xff]
    %v241 = vld [vmem:[%s0 + $0x18] sm:$0xff]
    %v242 = vld [vmem:[%s0 + $0x20] sm:$0xff]
    %v243 = vld [vmem:[%s0 + $0x28] sm:$0xff]
    %v244 = vld [vmem:[%s0 + $0x30] sm:$0xff]
    %v245 = vld [vmem:[%s0 + $0x38] sm:$0xff]
    %vm246 = vcmask 261120
    %v248 = vsel %vm246, %v236, 0
    %v251 = vsel %vm246, %v237, 0
    %253 = vmatprep.subr.mxu0 0.0
    %254 = vmatpush1.msra.mxu0 0.0
    %255 = vmatprep.subr.mxu0 0.0
    %256 = vmatpush1.msra.mxu0 0.0
    %257 = vmatprep.subr.mxu0 0.0
    %258 = vmatpush1.msra.mxu0 0.0
    %259 = vmatprep.subr.mxu0 0.0
    %260 = vmatpush1.msra.mxu0 0.0
    %261 = vmatprep.subr.mxu0 0.0
    %262 = vmatpush1.msra.mxu0 0.0
    %263 = vmatprep.subr.mxu0 0.0
    %264 = vmatpush1.msra.mxu0 0.0
    %265 = vmatprep.subr.mxu0 0.0
    %266 = vmatpush1.msra.mxu0 0.0
    %267 = vmatprep.subr.mxu0 0.0
    %268 = vmatpush1.msra.mxu0 0.0
    %269 = vmatprep.subr.mxu0 0.0
    %270 = vmatpush1.msra.mxu0 0.0
    %271 = vmatprep.subr.mxu0 0.0
    %272 = vmatpush1.msra.mxu0 0.0
    %273 = vmatprep.subr.mxu0 0.0
    %274 = vmatpush1.msra.mxu0 0.0
    %275 = vmatprep.subr.mxu0 0.0
    %276 = vmatpush1.msra.mxu0 0.0
    %277 = vmatprep.subr.mxu0 %v245
    %278 = vmatpush1.msra.mxu0 %v244
    %279 = vmatprep.subr.mxu0 %v243
    %280 = vmatpush1.msra.mxu0 %v242
    %281 = vmatprep.subr.mxu0 %v241
    %282 = vmatpush1.msra.mxu0 %v240
    %283 = vmatprep.subr.mxu0 %v239
    %284 = vmatpush1.msra.mxu0 %v238
    %285 = vmatprep.subr.mxu0 0.0
    %286 = vmatpush2.msra.mxu0 0.0
    %287 = vmatprep.subr.mxu0 0.0
    %288 = vmatpush2.msra.mxu0 0.0
    %289 = vmatprep.subr.mxu0 0.0
    %290 = vmatpush2.msra.mxu0 0.0
    %291 = vmatprep.subr.mxu0 0.0
    %292 = vmatpush2.msra.mxu0 0.0
    %293 = vmatprep.subr.mxu0 0.0
    %294 = vmatpush2.msra.mxu0 0.0
    %295 = vmatprep.subr.mxu0 0.0
    %296 = vmatpush2.msra.mxu0 0.0
    %297 = vmatprep.subr.mxu0 0.0
    %298 = vmatpush2.msra.mxu0 0.0
    %299 = vmatprep.subr.mxu0 0.0
    %300 = vmatpush2.msra.mxu0 0.0
    %301 = vmatprep.subr.mxu0 0.0
    %302 = vmatpush2.msra.mxu0 0.0
    %303 = vmatprep.subr.mxu0 0.0
    %304 = vmatpush2.msra.mxu0 0.0
    %305 = vmatprep.subr.mxu0 0.0
    %306 = vmatpush2.msra.mxu0 0.0
    %307 = vmatprep.subr.mxu0 0.0
    %308 = vmatpush2.msra.mxu0 0.0
    %309 = vmatprep.subr.mxu0 0.0
    %310 = vmatpush2.msra.mxu0 0.0
    %311 = vmatprep.subr.mxu0 0.0
    %312 = vmatpush2.msra.mxu0 0.0
    %313 = vmatprep.subr.mxu0 0.0
    %314 = vmatpush2.msra.mxu0 0.0
    %315 = vmatprep.subr.mxu0 0.0
    %316 = vmatpush2.msra.mxu0 0.0
    %317 = vmatprep.mubr.f32.mxu0 0.0
    %318 = vmatmul.mubr.f32.gmra.mxu0 %v248
    %v319 = vpop.f32.mrf.mxu0
    %v320 = vadd.f32 0.0, %v319
    %v321 = vpop.f32.mrf.mxu0
    %v322 = vadd.f32 0.0, %v321
    %323 = vmatprep.mubr.f32.mxu0 0.0
    %324 = vmatmul.mubr.f32.gmra.mxu0 %v251
    %v325 = vpop.f32.mrf.mxu0
    %v326 = vadd.f32 0.0, %v325
    %v327 = vpop.f32.mrf.mxu0
    %v328 = vadd.f32 0.0, %v327
    %329 = vdwg.mxu0
    %v330 = vld [vmem:[#allocation6] sm:$0x1]
    %331 = vrot.lane.b32.xlu0 %v320, 11
    %v332 = vpop.permute.xlu0 %331
    %333 = vrot.lane.b32.xlu0 %v322, 11
    %v334 = vpop.permute.xlu0 %333
    %v335 = vlaneseq
    %v336 = vand.u32 %v335, 127
    %vm337 = vcmp.lt.s32.totalorder %v336, 11
    %v338 = vsel %vm337, %v332, %v334
    %v339 = vsel %vm337, %v334, %v332
    %v342 = vrot.slane %v320, 1
    %v343 = vrot.slane %v322, 1
    %346 = vrot.lane.b32.xlu0 %v342, 10
    %v347 = vpop.permute.xlu0 %346
    %348 = vrot.lane.b32.xlu0 %v343, 10
    %v349 = vpop.permute.xlu0 %348
    %vm350 = vcmp.lt.s32.totalorder %v336, 10
    %v351 = vsel %vm350, %v347, %v349
    %v352 = vsel %vm350, %v349, %v347
    %v353 = vadd.f32 %v339, %v352
    %v354 = vadd.f32 %v338, %v351
    %v355 = vrot.slane %v320, 2
    %v356 = vrot.slane %v322, 2
    %359 = vrot.lane.b32.xlu0 %v355, 9
    %v360 = vpop.permute.xlu0 %359
    %361 = vrot.lane.b32.xlu0 %v356, 9
    %v362 = vpop.permute.xlu0 %361
    %vm363 = vcmp.lt.s32.totalorder %v336, 9
    %v364 = vsel %vm363, %v360, %v362
    %v365 = vsel %vm363, %v362, %v360
    %v366 = vadd.f32 %v353, %v365
    %v367 = vadd.f32 %v354, %v364
    %v368 = vrot.slane %v320, 3
    %v369 = vrot.slane %v322, 3
    %372 = vrot.lane.b32.xlu0 %v368, 1
    %v373 = vpop.permute.xlu0 %372
    %374 = vrot.lane.b32.xlu0 %v369, 1
    %v375 = vpop.permute.xlu0 %374
    %vm376 = vcmp.lt.s32.totalorder %v336, 1
    %v377 = vsel %vm376, %v373, %v375
    %v378 = vsel %vm376, %v375, %v373
    %v379 = vadd.f32 %v366, %v378
    %v380 = vadd.f32 %v367, %v377
    %v381 = vrot.slane %v320, 4
    %v382 = vrot.slane %v322, 4
    %v385 = vadd.f32 %v379, %v381
    %v386 = vadd.f32 %v380, %v382
    %v387 = vrot.slane %v320, 5
    %v388 = vrot.slane %v322, 5
    %391 = vrot.lane.b32.xlu0 %v387, 127
    %v392 = vpop.permute.xlu0 %391
    %393 = vrot.lane.b32.xlu0 %v388, 127
    %v394 = vpop.permute.xlu0 %393
    %vm395 = vcmp.lt.s32.totalorder %v336, 127
    %v396 = vsel %vm395, %v392, %v394
    %v397 = vsel %vm395, %v394, %v392
    %v398 = vadd.f32 %v385, %v396
    %v399 = vadd.f32 %v386, %v397
    %v400 = vrot.slane %v320, 6
    %v401 = vrot.slane %v322, 6
    %404 = vrot.lane.b32.xlu0 %v400, 119
    %v405 = vpop.permute.xlu0 %404
    %406 = vrot.lane.b32.xlu0 %v401, 119
    %v407 = vpop.permute.xlu0 %406
    %vm408 = vcmp.lt.s32.totalorder %v336, 119
    %v409 = vsel %vm408, %v405, %v407
    %v410 = vsel %vm408, %v407, %v405
    %v411 = vadd.f32 %v398, %v409
    %v412 = vadd.f32 %v399, %v410
    %v413 = vrot.slane %v320, 7
    %v414 = vrot.slane %v322, 7
    %417 = vrot.lane.b32.xlu0 %v413, 118
    %v418 = vpop.permute.xlu0 %417
    %419 = vrot.lane.b32.xlu0 %v414, 118
    %v420 = vpop.permute.xlu0 %419
    %vm421 = vcmp.lt.s32.totalorder %v336, 118
    %v422 = vsel %vm421, %v418, %v420
    %v423 = vsel %vm421, %v420, %v418
    %v424 = vadd.f32 %v411, %v422
    %v425 = vadd.f32 %v412, %v423
    %426 = vrot.lane.b32.xlu0 %v326, 117
    %v427 = vpop.permute.xlu0 %426
    %428 = vrot.lane.b32.xlu0 %v328, 117
    %v429 = vpop.permute.xlu0 %428
    %vm430 = vcmp.lt.s32.totalorder %v336, 117
    %v431 = vsel %vm430, %v427, %v429
    %v432 = vsel %vm430, %v429, %v427
    %v433 = vadd.f32 %v424, %v431
    %v434 = vadd.f32 %v425, %v432
    %436 = vset.pattern.permute.xlu0 0
    %437 = vperm.xlu0 %436, %v330
    %v438 = vpop.permute.xlu0 %437
    %v440 = vlaneseq
    %v441 = vshrl.u32 %v440, 7
    %v442 = vsub.s32 0, %v441
    %v443 = vrot.slane %v438, %v442
    %v444 = vadd.f32 %v433, %v443
    %v445 = vadd.f32 %v434, %v443
    %v446 = vxor.u32 %v444, 2147483648
    %v447 = vxor.u32 %v445, 2147483648
    %v448 = vmul.f32 %v446, 1.442695
    %v449 = vpow.pop %v448
    %v450 = vmul.f32 %v447, 1.442695
    %v451 = vpow.pop %v450
    %v452 = vadd.f32 %v449, 1.0
    %v453 = vadd.f32 %v451, 1.0
    %v454 = vrcp.pop %v452
    %v455 = vmul.f32 1.0, %v454
    %v456 = vrcp.pop %v453
    %v457 = vmul.f32 1.0, %v456
    %v458 = vld [vmem:[%s1] sm:$0x3]
    %v460 = vlaneseq
    %v461 = vshrl.u32 %v460, 7
    %v462 = vsub.s32 0, %v461
    %v463 = vrot.slane %v458, %v462
    %v464 = vlaneseq
    %v465 = vshrl.u32 %v464, 7
    %v466 = vsub.s32 1, %v465
    %v467 = vrot.slane %v458, %v466
    %470 = vrot.lane.b32.xlu0 %v463, 11
    %v471 = vpop.permute.xlu0 %470
    %472 = vrot.lane.b32.xlu0 %v467, 11
    %v473 = vpop.permute.xlu0 %472
    %v474 = vsel %vm337, %v471, %v473
    %v475 = vsel %vm337, %v473, %v471
    %476 = vrot.lane.b32.xlu0 %v463, 10
    %v477 = vpop.permute.xlu0 %476
    %478 = vrot.lane.b32.xlu0 %v467, 10
    %v479 = vpop.permute.xlu0 %478
    %v480 = vsel %vm350, %v477, %v479
    %v481 = vsel %vm350, %v479, %v477
    %482 = vrot.lane.b32.xlu0 %v463, 9
    %v483 = vpop.permute.xlu0 %482
    %484 = vrot.lane.b32.xlu0 %v467, 9
    %v485 = vpop.permute.xlu0 %484
    %v486 = vsel %vm363, %v483, %v485
    %v487 = vsel %vm363, %v485, %v483
    %488 = vrot.lane.b32.xlu0 %v463, 1
    %v489 = vpop.permute.xlu0 %488
    %490 = vrot.lane.b32.xlu0 %v467, 1
    %v491 = vpop.permute.xlu0 %490
    %v492 = vsel %vm376, %v489, %v491
    %v493 = vsel %vm376, %v491, %v489
    %494 = vrot.lane.b32.xlu0 %v463, 127
    %v495 = vpop.permute.xlu0 %494
    %496 = vrot.lane.b32.xlu0 %v467, 127
    %v497 = vpop.permute.xlu0 %496
    %v498 = vsel %vm395, %v495, %v497
    %v499 = vsel %vm395, %v497, %v495
    %500 = vrot.lane.b32.xlu0 %v463, 119
    %v501 = vpop.permute.xlu0 %500
    %502 = vrot.lane.b32.xlu0 %v467, 119
    %v503 = vpop.permute.xlu0 %502
    %v504 = vsel %vm408, %v501, %v503
    %v505 = vsel %vm408, %v503, %v501
    %506 = vrot.lane.b32.xlu0 %v463, 118
    %v507 = vpop.permute.xlu0 %506
    %508 = vrot.lane.b32.xlu0 %v467, 118
    %v509 = vpop.permute.xlu0 %508
    %v510 = vsel %vm421, %v507, %v509
    %v511 = vsel %vm421, %v509, %v507
    %512 = vrot.lane.b32.xlu0 %v463, 117
    %v513 = vpop.permute.xlu0 %512
    %514 = vrot.lane.b32.xlu0 %v467, 117
    %v515 = vpop.permute.xlu0 %514
    %v516 = vsel %vm430, %v513, %v515
    %v517 = vsel %vm430, %v515, %v513
    %v520 = vrot.slane %v481, 7
    %v521 = vrot.slane %v480, 7
    %v526 = vrot.slane %v487, 6
    %v527 = vrot.slane %v486, 6
    %v532 = vrot.slane %v493, 5
    %v533 = vrot.slane %v492, 5
    %v538 = vrot.slane %v498, 3
    %v539 = vrot.slane %v499, 3
    %v544 = vrot.slane %v504, 2
    %v545 = vrot.slane %v505, 2
    %v550 = vrot.slane %v510, 1
    %v551 = vrot.slane %v511, 1
    %vm554 = vcmask 1040384
    %v555 = vsel %vm554, %v475, %v520
    %v556 = vsel %vm554, %v474, %v521
    %vm557 = vcmask 1041408
    %v558 = vsel %vm557, %v555, %v526
    %v559 = vsel %vm557, %v556, %v527
    %vm560 = vcmask 1042432
    %v561 = vsel %vm560, %v558, %v532
    %v562 = vsel %vm560, %v559, %v533
    %vm563 = vcmask 1043456
    %v564 = vsel %vm563, %v561, %v463
    %v565 = vsel %vm563, %v562, %v467
    %vm566 = vcmask 1044480
    %v567 = vsel %vm566, %v564, %v538
    %v568 = vsel %vm566, %v565, %v539
    %vm569 = vcmask 1045504
    %v570 = vsel %vm569, %v567, %v544
    %v571 = vsel %vm569, %v568, %v545
    %vm572 = vcmask 1046528
    %v573 = vsel %vm572, %v570, %v550
    %v574 = vsel %vm572, %v571, %v551
    %v575 = vsel %vm554, %v516, 1.0
    %v576 = vsel %vm554, %v517, 1.0
    %v577 = vld [vmem:[%s4] sm:$0xff]
    %v578 = vld [vmem:[%s4 + $0x8] sm:$0xff]
    %v579 = vld [vmem:[%s4 + $0x10] sm:$0xff]
    %v580 = vld [vmem:[%s4 + $0x18] sm:$0xff]
    %vm581 = vcmask 80896
    %v583 = vsel %vm581, %v577, 0
    %v586 = vsel %vm581, %v578, 0
    %v589 = vsel %vm581, %v579, 0
    %v592 = vsel %vm581, %v580, 0
    %v595 = vsel %vm557, %v575, 0
    %v598 = vsel %vm557, %v576, 0
    %600 = vmatprep.subr.mxu0 0.0
    %601 = vmatpush1.msra.mxu0 0.0
    %602 = vmatprep.subr.mxu0 0.0
    %603 = vmatpush1.msra.mxu0 0.0
    %604 = vmatprep.subr.mxu0 0.0
    %605 = vmatpush1.msra.mxu0 0.0
    %606 = vmatprep.subr.mxu0 0.0
    %607 = vmatpush1.msra.mxu0 0.0
    %608 = vmatprep.subr.mxu0 0.0
    %609 = vmatpush1.msra.mxu0 0.0
    %610 = vmatprep.subr.mxu0 0.0
    %611 = vmatpush1.msra.mxu0 0.0
    %612 = vmatprep.subr.mxu0 0.0
    %613 = vmatpush1.msra.mxu0 0.0
    %614 = vmatprep.subr.mxu0 0.0
    %615 = vmatpush1.msra.mxu0 0.0
    %616 = vmatprep.subr.mxu0 0.0
    %617 = vmatpush1.msra.mxu0 0.0
    %618 = vmatprep.subr.mxu0 0.0
    %619 = vmatpush1.msra.mxu0 0.0
    %620 = vmatprep.subr.mxu0 0.0
    %621 = vmatpush1.msra.mxu0 0.0
    %622 = vmatprep.subr.mxu0 0.0
    %623 = vmatpush1.msra.mxu0 0.0
    %624 = vmatprep.subr.mxu0 0.0
    %625 = vmatpush1.msra.mxu0 0.0
    %626 = vmatprep.subr.mxu0 0.0
    %627 = vmatpush1.msra.mxu0 0.0
    %628 = vmatprep.subr.mxu0 %v598
    %629 = vmatpush1.msra.mxu0 %v595
    %630 = vmatprep.subr.mxu0 %v574
    %631 = vmatpush1.msra.mxu0 %v573
    %632 = vmatprep.subr.mxu0 0.0
    %633 = vmatpush2.msra.mxu0 0.0
    %634 = vmatprep.subr.mxu0 0.0
    %635 = vmatpush2.msra.mxu0 0.0
    %636 = vmatprep.subr.mxu0 0.0
    %637 = vmatpush2.msra.mxu0 0.0
    %638 = vmatprep.subr.mxu0 0.0
    %639 = vmatpush2.msra.mxu0 0.0
    %640 = vmatprep.subr.mxu0 0.0
    %641 = vmatpush2.msra.mxu0 0.0
    %642 = vmatprep.subr.mxu0 0.0
    %643 = vmatpush2.msra.mxu0 0.0
    %644 = vmatprep.subr.mxu0 0.0
    %645 = vmatpush2.msra.mxu0 0.0
    %646 = vmatprep.subr.mxu0 0.0
    %647 = vmatpush2.msra.mxu0 0.0
    %648 = vmatprep.subr.mxu0 0.0
    %649 = vmatpush2.msra.mxu0 0.0
    %650 = vmatprep.subr.mxu0 0.0
    %651 = vmatpush2.msra.mxu0 0.0
    %652 = vmatprep.subr.mxu0 0.0
    %653 = vmatpush2.msra.mxu0 0.0
    %654 = vmatprep.subr.mxu0 0.0
    %655 = vmatpush2.msra.mxu0 0.0
    %656 = vmatprep.subr.mxu0 0.0
    %657 = vmatpush2.msra.mxu0 0.0
    %658 = vmatprep.subr.mxu0 0.0
    %659 = vmatpush2.msra.mxu0 0.0
    %660 = vmatprep.subr.mxu0 0.0
    %661 = vmatpush2.msra.mxu0 0.0
    %662 = vmatprep.subr.mxu0 0.0
    %663 = vmatpush2.msra.mxu0 0.0
    %664 = vmatprep.mubr.f32.mxu0 0.0
    %665 = vmatmul.mubr.f32.gmra.mxu0 %v583
    %v666 = vpop.f32.mrf.mxu0
    %v667 = vadd.f32 0.0, %v666
    %v668 = vpop.f32.mrf.mxu0
    %v669 = vadd.f32 0.0, %v668
    %670 = vmatprep.mubr.f32.mxu0 0.0
    %671 = vmatmul.mubr.f32.gmra.mxu0 %v586
    %v672 = vpop.f32.mrf.mxu0
    %v673 = vadd.f32 0.0, %v672
    %v674 = vpop.f32.mrf.mxu0
    %v675 = vadd.f32 0.0, %v674
    %676 = vmatprep.mubr.f32.mxu0 0.0
    %677 = vmatmul.mubr.f32.gmra.mxu0 %v589
    %v678 = vpop.f32.mrf.mxu0
    %v679 = vadd.f32 0.0, %v678
    %v680 = vpop.f32.mrf.mxu0
    %v681 = vadd.f32 0.0, %v680
    %682 = vmatprep.mubr.f32.mxu0 0.0
    %683 = vmatmul.mubr.f32.gmra.mxu0 %v592
    %v684 = vpop.f32.mrf.mxu0
    %v685 = vadd.f32 0.0, %v684
    %v686 = vpop.f32.mrf.mxu0
    %v687 = vadd.f32 0.0, %v686
    %688 = vdwg.mxu0
    %v689 = vmax.f32 %v667, 0.0
    %v690 = vmax.f32 %v669, 0.0
    %v691 = vmax.f32 %v673, 0.0
    %v692 = vmax.f32 %v675, 0.0
    %v693 = vmax.f32 %v679, 0.0
    %v694 = vmax.f32 %v681, 0.0
    %v695 = vmax.f32 %v685, 0.0
    %v696 = vmax.f32 %v687, 0.0
    %v697 = vld [vmem:[%s9] sm:$0x3]
    %v699 = vlaneseq
    %v700 = vshrl.u32 %v699, 7
    %v701 = vsub.s32 0, %v700
    %v702 = vrot.slane %v697, %v701
    %v703 = vlaneseq
    %v704 = vshrl.u32 %v703, 7
    %v705 = vsub.s32 1, %v704
    %v706 = vrot.slane %v697, %v705
    %v709 = vmul.f32 %v689, %v702
    %v710 = vmul.f32 %v690, %v706
    %v711 = vmul.f32 %v691, %v702
    %v712 = vmul.f32 %v692, %v706
    %v713 = vmul.f32 %v693, %v702
    %v714 = vmul.f32 %v694, %v706
    %v715 = vmul.f32 %v695, %v702
    %v716 = vmul.f32 %v696, %v706
    %717 = vrot.lane.b32.xlu0 %v709, 11
    %v718 = vpop.permute.xlu0 %717
    %719 = vrot.lane.b32.xlu0 %v711, 11
    %v720 = vpop.permute.xlu0 %719
    %721 = vrot.lane.b32.xlu0 %v713, 11
    %v722 = vpop.permute.xlu0 %721
    %723 = vrot.lane.b32.xlu0 %v715, 11
    %v724 = vpop.permute.xlu0 %723
    %725 = vrot.lane.b32.xlu0 %v710, 11
    %v726 = vpop.permute.xlu0 %725
    %727 = vrot.lane.b32.xlu0 %v712, 11
    %v728 = vpop.permute.xlu0 %727
    %729 = vrot.lane.b32.xlu0 %v714, 11
    %v730 = vpop.permute.xlu0 %729
    %731 = vrot.lane.b32.xlu0 %v716, 11
    %v732 = vpop.permute.xlu0 %731
    %v733 = vsel %vm337, %v718, %v726
    %v734 = vsel %vm337, %v720, %v728
    %v735 = vsel %vm337, %v722, %v730
    %v736 = vsel %vm337, %v724, %v732
    %v737 = vsel %vm337, %v726, %v718
    %v738 = vsel %vm337, %v728, %v720
    %v739 = vsel %vm337, %v730, %v722
    %v740 = vsel %vm337, %v732, %v724
    %v741 = vld [vmem:[%s5] sm:$0xff]
    %v742 = vld [vmem:[%s5 + $0x8] sm:$0xff]
    %v743 = vld [vmem:[%s5 + $0x10] sm:$0xff]
    %v744 = vld [vmem:[%s5 + $0x18] sm:$0xff]
    %745 = vrot.lane.b32.xlu0 %v709, 10
    %v746 = vpop.permute.xlu0 %745
    %747 = vrot.lane.b32.xlu0 %v711, 10
    %v748 = vpop.permute.xlu0 %747
    %749 = vrot.lane.b32.xlu0 %v713, 10
    %v750 = vpop.permute.xlu0 %749
    %751 = vrot.lane.b32.xlu0 %v715, 10
    %v752 = vpop.permute.xlu0 %751
    %753 = vrot.lane.b32.xlu0 %v710, 10
    %v754 = vpop.permute.xlu0 %753
    %755 = vrot.lane.b32.xlu0 %v712, 10
    %v756 = vpop.permute.xlu0 %755
    %757 = vrot.lane.b32.xlu0 %v714, 10
    %v758 = vpop.permute.xlu0 %757
    %759 = vrot.lane.b32.xlu0 %v716, 10
    %v760 = vpop.permute.xlu0 %759
    %v761 = vsel %vm350, %v746, %v754
    %v762 = vsel %vm350, %v748, %v756
    %v763 = vsel %vm350, %v750, %v758
    %v764 = vsel %vm350, %v752, %v760
    %v765 = vsel %vm350, %v754, %v746
    %v766 = vsel %vm350, %v756, %v748
    %v767 = vsel %vm350, %v758, %v750
    %v768 = vsel %vm350, %v760, %v752
    %v769 = vld [vmem:[%s5 + $0x20] sm:$0xff]
    %v770 = vld [vmem:[%s5 + $0x28] sm:$0xff]
    %v771 = vld [vmem:[%s5 + $0x30] sm:$0xff]
    %v772 = vld [vmem:[%s5 + $0x38] sm:$0xff]
    %v774 = vsel %vm246, %v769, 0
    %v777 = vsel %vm246, %v770, 0
    %v780 = vsel %vm246, %v771, 0
    %v783 = vsel %vm246, %v772, 0
    %785 = vmatprep.subr.mxu0 0.0
    %786 = vmatpush1.msra.mxu0 0.0
    %787 = vmatprep.subr.mxu0 0.0
    %788 = vmatpush1.msra.mxu0 0.0
    %789 = vmatprep.subr.mxu0 0.0
    %790 = vmatpush1.msra.mxu0 0.0
    %791 = vmatprep.subr.mxu0 0.0
    %792 = vmatpush1.msra.mxu0 0.0
    %793 = vmatprep.subr.mxu0 0.0
    %794 = vmatpush1.msra.mxu0 0.0
    %795 = vmatprep.subr.mxu0 0.0
    %796 = vmatpush1.msra.mxu0 0.0
    %797 = vmatprep.subr.mxu0 0.0
    %798 = vmatpush1.msra.mxu0 0.0
    %799 = vmatprep.subr.mxu0 0.0
    %800 = vmatpush1.msra.mxu0 0.0
    %801 = vmatprep.subr.mxu0 0.0
    %802 = vmatpush1.msra.mxu0 0.0
    %803 = vmatprep.subr.mxu0 0.0
    %804 = vmatpush1.msra.mxu0 0.0
    %805 = vmatprep.subr.mxu0 0.0
    %806 = vmatpush1.msra.mxu0 0.0
    %807 = vmatprep.subr.mxu0 0.0
    %808 = vmatpush1.msra.mxu0 0.0
    %809 = vmatprep.subr.mxu0 %v764
    %810 = vmatpush1.msra.mxu0 %v768
    %811 = vmatprep.subr.mxu0 %v763
    %812 = vmatpush1.msra.mxu0 %v767
    %813 = vmatprep.subr.mxu0 %v762
    %814 = vmatpush1.msra.mxu0 %v766
    %815 = vmatprep.subr.mxu0 %v761
    %816 = vmatpush1.msra.mxu0 %v765
    %817 = vmatprep.subr.mxu0 0.0
    %818 = vmatpush2.msra.mxu0 0.0
    %819 = vmatprep.subr.mxu0 0.0
    %820 = vmatpush2.msra.mxu0 0.0
    %821 = vmatprep.subr.mxu0 0.0
    %822 = vmatpush2.msra.mxu0 0.0
    %823 = vmatprep.subr.mxu0 0.0
    %824 = vmatpush2.msra.mxu0 0.0
    %825 = vmatprep.subr.mxu0 0.0
    %826 = vmatpush2.msra.mxu0 0.0
    %827 = vmatprep.subr.mxu0 0.0
    %828 = vmatpush2.msra.mxu0 0.0
    %829 = vmatprep.subr.mxu0 0.0
    %830 = vmatpush2.msra.mxu0 0.0
    %831 = vmatprep.subr.mxu0 0.0
    %832 = vmatpush2.msra.mxu0 0.0
    %833 = vmatprep.subr.mxu0 0.0
    %834 = vmatpush2.msra.mxu0 0.0
    %835 = vmatprep.subr.mxu0 0.0
    %836 = vmatpush2.msra.mxu0 0.0
    %837 = vmatprep.subr.mxu0 0.0
    %838 = vmatpush2.msra.mxu0 0.0
    %839 = vmatprep.subr.mxu0 0.0
    %840 = vmatpush2.msra.mxu0 0.0
    %841 = vmatprep.subr.mxu0 0.0
    %842 = vmatpush2.msra.mxu0 0.0
    %843 = vmatprep.subr.mxu0 0.0
    %844 = vmatpush2.msra.mxu0 0.0
    %845 = vmatprep.subr.mxu0 0.0
    %846 = vmatpush2.msra.mxu0 0.0
    %847 = vmatprep.subr.mxu0 0.0
    %848 = vmatpush2.msra.mxu0 0.0
    %849 = vmatprep.mubr.f32.mxu0 0.0
    %850 = vmatmul.mubr.f32.gmra.mxu0 %v774
    %v851 = vpop.f32.mrf.mxu0
    %v852 = vadd.f32 0.0, %v851
    %v853 = vpop.f32.mrf.mxu0
    %v854 = vadd.f32 0.0, %v853
    %855 = vmatprep.mubr.f32.mxu0 0.0
    %856 = vmatmul.mubr.f32.gmra.mxu0 %v777
    %v857 = vpop.f32.mrf.mxu0
    %v858 = vadd.f32 0.0, %v857
    %v859 = vpop.f32.mrf.mxu0
    %v860 = vadd.f32 0.0, %v859
    %861 = vmatprep.mubr.f32.mxu0 0.0
    %862 = vmatmul.mubr.f32.gmra.mxu0 %v780
    %v863 = vpop.f32.mrf.mxu0
    %v864 = vadd.f32 0.0, %v863
    %v865 = vpop.f32.mrf.mxu0
    %v866 = vadd.f32 0.0, %v865
    %867 = vmatprep.mubr.f32.mxu0 0.0
    %868 = vmatmul.mubr.f32.gmra.mxu0 %v783
    %v869 = vpop.f32.mrf.mxu0
    %v870 = vadd.f32 0.0, %v869
    %v871 = vpop.f32.mrf.mxu0
    %v872 = vadd.f32 0.0, %v871
    %873 = vdwg.mxu0
    %v875 = vsel %vm246, %v741, 0
    %v878 = vsel %vm246, %v742, 0
    %v881 = vsel %vm246, %v743, 0
    %v884 = vsel %vm246, %v744, 0
    %886 = vmatprep.subr.mxu0 0.0
    %887 = vmatpush1.msra.mxu0 0.0
    %888 = vmatprep.subr.mxu0 0.0
    %889 = vmatpush1.msra.mxu0 0.0
    %890 = vmatprep.subr.mxu0 0.0
    %891 = vmatpush1.msra.mxu0 0.0
    %892 = vmatprep.subr.mxu0 0.0
    %893 = vmatpush1.msra.mxu0 0.0
    %894 = vmatprep.subr.mxu0 0.0
    %895 = vmatpush1.msra.mxu0 0.0
    %896 = vmatprep.subr.mxu0 0.0
    %897 = vmatpush1.msra.mxu0 0.0
    %898 = vmatprep.subr.mxu0 0.0
    %899 = vmatpush1.msra.mxu0 0.0
    %900 = vmatprep.subr.mxu0 0.0
    %901 = vmatpush1.msra.mxu0 0.0
    %902 = vmatprep.subr.mxu0 0.0
    %903 = vmatpush1.msra.mxu0 0.0
    %904 = vmatprep.subr.mxu0 0.0
    %905 = vmatpush1.msra.mxu0 0.0
    %906 = vmatprep.subr.mxu0 0.0
    %907 = vmatpush1.msra.mxu0 0.0
    %908 = vmatprep.subr.mxu0 0.0
    %909 = vmatpush1.msra.mxu0 0.0
    %910 = vmatprep.subr.mxu0 %v736
    %911 = vmatpush1.msra.mxu0 %v740
    %912 = vmatprep.subr.mxu0 %v735
    %913 = vmatpush1.msra.mxu0 %v739
    %914 = vmatprep.subr.mxu0 %v734
    %915 = vmatpush1.msra.mxu0 %v738
    %916 = vmatprep.subr.mxu0 %v733
    %917 = vmatpush1.msra.mxu0 %v737
    %918 = vmatprep.subr.mxu0 0.0
    %919 = vmatpush2.msra.mxu0 0.0
    %920 = vmatprep.subr.mxu0 0.0
    %921 = vmatpush2.msra.mxu0 0.0
    %922 = vmatprep.subr.mxu0 0.0
    %923 = vmatpush2.msra.mxu0 0.0
    %924 = vmatprep.subr.mxu0 0.0
    %925 = vmatpush2.msra.mxu0 0.0
    %926 = vmatprep.subr.mxu0 0.0
    %927 = vmatpush2.msra.mxu0 0.0
    %928 = vmatprep.subr.mxu0 0.0
    %929 = vmatpush2.msra.mxu0 0.0
    %930 = vmatprep.subr.mxu0 0.0
    %931 = vmatpush2.msra.mxu0 0.0
    %932 = vmatprep.subr.mxu0 0.0
    %933 = vmatpush2.msra.mxu0 0.0
    %934 = vmatprep.subr.mxu0 0.0
    %935 = vmatpush2.msra.mxu0 0.0
    %936 = vmatprep.subr.mxu0 0.0
    %937 = vmatpush2.msra.mxu0 0.0
    %938 = vmatprep.subr.mxu0 0.0
    %939 = vmatpush2.msra.mxu0 0.0
    %940 = vmatprep.subr.mxu0 0.0
    %941 = vmatpush2.msra.mxu0 0.0
    %942 = vmatprep.subr.mxu0 0.0
    %943 = vmatpush2.msra.mxu0 0.0
    %944 = vmatprep.subr.mxu0 0.0
    %945 = vmatpush2.msra.mxu0 0.0
    %946 = vmatprep.subr.mxu0 0.0
    %947 = vmatpush2.msra.mxu0 0.0
    %948 = vmatprep.subr.mxu0 0.0
    %949 = vmatpush2.msra.mxu0 0.0
    %950 = vmatprep.mubr.f32.mxu0 0.0
    %951 = vmatmul.mubr.f32.gmra.mxu0 %v875
    %v952 = vpop.f32.mrf.mxu0
    %v953 = vadd.f32 %v852, %v952
    %v954 = vpop.f32.mrf.mxu0
    %v955 = vadd.f32 %v854, %v954
    %956 = vmatprep.mubr.f32.mxu0 0.0
    %957 = vmatmul.mubr.f32.gmra.mxu0 %v878
    %v958 = vpop.f32.mrf.mxu0
    %v959 = vadd.f32 %v858, %v958
    %v960 = vpop.f32.mrf.mxu0
    %v961 = vadd.f32 %v860, %v960
    %962 = vmatprep.mubr.f32.mxu0 0.0
    %963 = vmatmul.mubr.f32.gmra.mxu0 %v881
    %v964 = vpop.f32.mrf.mxu0
    %v965 = vadd.f32 %v864, %v964
    %v966 = vpop.f32.mrf.mxu0
    %v967 = vadd.f32 %v866, %v966
    %968 = vmatprep.mubr.f32.mxu0 0.0
    %969 = vmatmul.mubr.f32.gmra.mxu0 %v884
    %v970 = vpop.f32.mrf.mxu0
    %v971 = vadd.f32 %v870, %v970
    %v972 = vpop.f32.mrf.mxu0
    %v973 = vadd.f32 %v872, %v972
    %974 = vdwg.mxu0
    %975 = vrot.lane.b32.xlu0 %v709, 9
    %v976 = vpop.permute.xlu0 %975
    %977 = vrot.lane.b32.xlu0 %v711, 9
    %v978 = vpop.permute.xlu0 %977
    %979 = vrot.lane.b32.xlu0 %v713, 9
    %v980 = vpop.permute.xlu0 %979
    %981 = vrot.lane.b32.xlu0 %v715, 9
    %v982 = vpop.permute.xlu0 %981
    %983 = vrot.lane.b32.xlu0 %v710, 9
    %v984 = vpop.permute.xlu0 %983
    %985 = vrot.lane.b32.xlu0 %v712, 9
    %v986 = vpop.permute.xlu0 %985
    %987 = vrot.lane.b32.xlu0 %v714, 9
    %v988 = vpop.permute.xlu0 %987
    %989 = vrot.lane.b32.xlu0 %v716, 9
    %v990 = vpop.permute.xlu0 %989
    %v991 = vsel %vm363, %v976, %v984
    %v992 = vsel %vm363, %v978, %v986
    %v993 = vsel %vm363, %v980, %v988
    %v994 = vsel %vm363, %v982, %v990
    %v995 = vsel %vm363, %v984, %v976
    %v996 = vsel %vm363, %v986, %v978
    %v997 = vsel %vm363, %v988, %v980
    %v998 = vsel %vm363, %v990, %v982
    %v999 = vld [vmem:[%s5 + $0x40] sm:$0xff]
    %v1000 = vld [vmem:[%s5 + $0x48] sm:$0xff]
    %v1001 = vld [vmem:[%s5 + $0x50] sm:$0xff]
    %v1002 = vld [vmem:[%s5 + $0x58] sm:$0xff]
    %v1004 = vsel %vm246, %v999, 0
    %v1007 = vsel %vm246, %v1000, 0
    %v1010 = vsel %vm246, %v1001, 0
    %v1013 = vsel %vm246, %v1002, 0
    %1015 = vmatprep.subr.mxu0 0.0
    %1016 = vmatpush1.msra.mxu0 0.0
    %1017 = vmatprep.subr.mxu0 0.0
    %1018 = vmatpush1.msra.mxu0 0.0
    %1019 = vmatprep.subr.mxu0 0.0
    %1020 = vmatpush1.msra.mxu0 0.0
    %1021 = vmatprep.subr.mxu0 0.0
    %1022 = vmatpush1.msra.mxu0 0.0
    %1023 = vmatprep.subr.mxu0 0.0
    %1024 = vmatpush1.msra.mxu0 0.0
    %1025 = vmatprep.subr.mxu0 0.0
    %1026 = vmatpush1.msra.mxu0 0.0
    %1027 = vmatprep.subr.mxu0 0.0
    %1028 = vmatpush1.msra.mxu0 0.0
    %1029 = vmatprep.subr.mxu0 0.0
    %1030 = vmatpush1.msra.mxu0 0.0
    %1031 = vmatprep.subr.mxu0 0.0
    %1032 = vmatpush1.msra.mxu0 0.0
    %1033 = vmatprep.subr.mxu0 0.0
    %1034 = vmatpush1.msra.mxu0 0.0
    %1035 = vmatprep.subr.mxu0 0.0
    %1036 = vmatpush1.msra.mxu0 0.0
    %1037 = vmatprep.subr.mxu0 0.0
    %1038 = vmatpush1.msra.mxu0 0.0
    %1039 = vmatprep.subr.mxu0 %v994
    %1040 = vmatpush1.msra.mxu0 %v998
    %1041 = vmatprep.subr.mxu0 %v993
    %1042 = vmatpush1.msra.mxu0 %v997
    %1043 = vmatprep.subr.mxu0 %v992
    %1044 = vmatpush1.msra.mxu0 %v996
    %1045 = vmatprep.subr.mxu0 %v991
    %1046 = vmatpush1.msra.mxu0 %v995
    %1047 = vmatprep.subr.mxu0 0.0
    %1048 = vmatpush2.msra.mxu0 0.0
    %1049 = vmatprep.subr.mxu0 0.0
    %1050 = vmatpush2.msra.mxu0 0.0
    %1051 = vmatprep.subr.mxu0 0.0
    %1052 = vmatpush2.msra.mxu0 0.0
    %1053 = vmatprep.subr.mxu0 0.0
    %1054 = vmatpush2.msra.mxu0 0.0
    %1055 = vmatprep.subr.mxu0 0.0
    %1056 = vmatpush2.msra.mxu0 0.0
    %1057 = vmatprep.subr.mxu0 0.0
    %1058 = vmatpush2.msra.mxu0 0.0
    %1059 = vmatprep.subr.mxu0 0.0
    %1060 = vmatpush2.msra.mxu0 0.0
    %1061 = vmatprep.subr.mxu0 0.0
    %1062 = vmatpush2.msra.mxu0 0.0
    %1063 = vmatprep.subr.mxu0 0.0
    %1064 = vmatpush2.msra.mxu0 0.0
    %1065 = vmatprep.subr.mxu0 0.0
    %1066 = vmatpush2.msra.mxu0 0.0
    %1067 = vmatprep.subr.mxu0 0.0
    %1068 = vmatpush2.msra.mxu0 0.0
    %1069 = vmatprep.subr.mxu0 0.0
    %1070 = vmatpush2.msra.mxu0 0.0
    %1071 = vmatprep.subr.mxu0 0.0
    %1072 = vmatpush2.msra.mxu0 0.0
    %1073 = vmatprep.subr.mxu0 0.0
    %1074 = vmatpush2.msra.mxu0 0.0
    %1075 = vmatprep.subr.mxu0 0.0
    %1076 = vmatpush2.msra.mxu0 0.0
    %1077 = vmatprep.subr.mxu0 0.0
    %1078 = vmatpush2.msra.mxu0 0.0
    %1079 = vmatprep.mubr.f32.mxu0 0.0
    %1080 = vmatmul.mubr.f32.gmra.mxu0 %v1004
    %v1081 = vpop.f32.mrf.mxu0
    %v1082 = vadd.f32 0.0, %v1081
    %v1083 = vpop.f32.mrf.mxu0
    %v1084 = vadd.f32 0.0, %v1083
    %1085 = vmatprep.mubr.f32.mxu0 0.0
    %1086 = vmatmul.mubr.f32.gmra.mxu0 %v1007
    %v1087 = vpop.f32.mrf.mxu0
    %v1088 = vadd.f32 0.0, %v1087
    %v1089 = vpop.f32.mrf.mxu0
    %v1090 = vadd.f32 0.0, %v1089
    %1091 = vmatprep.mubr.f32.mxu0 0.0
    %1092 = vmatmul.mubr.f32.gmra.mxu0 %v1010
    %v1093 = vpop.f32.mrf.mxu0
    %v1094 = vadd.f32 0.0, %v1093
    %v1095 = vpop.f32.mrf.mxu0
    %v1096 = vadd.f32 0.0, %v1095
    %1097 = vmatprep.mubr.f32.mxu0 0.0
    %1098 = vmatmul.mubr.f32.gmra.mxu0 %v1013
    %v1099 = vpop.f32.mrf.mxu0
    %v1100 = vadd.f32 0.0, %v1099
    %v1101 = vpop.f32.mrf.mxu0
    %v1102 = vadd.f32 0.0, %v1101
    %1103 = vdwg.mxu0
    %v1104 = vadd.f32 %v953, %v1082
    %v1105 = vadd.f32 %v955, %v1084
    %v1106 = vadd.f32 %v959, %v1088
    %v1107 = vadd.f32 %v961, %v1090
    %v1108 = vadd.f32 %v965, %v1094
    %v1109 = vadd.f32 %v967, %v1096
    %v1110 = vadd.f32 %v971, %v1100
    %v1111 = vadd.f32 %v973, %v1102
    %1112 = vrot.lane.b32.xlu0 %v709, 1
    %v1113 = vpop.permute.xlu0 %1112
    %1114 = vrot.lane.b32.xlu0 %v711, 1
    %v1115 = vpop.permute.xlu0 %1114
    %1116 = vrot.lane.b32.xlu0 %v713, 1
    %v1117 = vpop.permute.xlu0 %1116
    %1118 = vrot.lane.b32.xlu0 %v715, 1
    %v1119 = vpop.permute.xlu0 %1118
    %1120 = vrot.lane.b32.xlu0 %v710, 1
    %v1121 = vpop.permute.xlu0 %1120
    %1122 = vrot.lane.b32.xlu0 %v712, 1
    %v1123 = vpop.permute.xlu0 %1122
    %1124 = vrot.lane.b32.xlu0 %v714, 1
    %v1125 = vpop.permute.xlu0 %1124
    %1126 = vrot.lane.b32.xlu0 %v716, 1
    %v1127 = vpop.permute.xlu0 %1126
    %v1128 = vsel %vm376, %v1113, %v1121
    %v1129 = vsel %vm376, %v1115, %v1123
    %v1130 = vsel %vm376, %v1117, %v1125
    %v1131 = vsel %vm376, %v1119, %v1127
    %v1132 = vsel %vm376, %v1121, %v1113
    %v1133 = vsel %vm376, %v1123, %v1115
    %v1134 = vsel %vm376, %v1125, %v1117
    %v1135 = vsel %vm376, %v1127, %v1119
    %v1136 = vld [vmem:[%s5 + $0x60] sm:$0xff]
    %v1137 = vld [vmem:[%s5 + $0x68] sm:$0xff]
    %v1138 = vld [vmem:[%s5 + $0x70] sm:$0xff]
    %v1139 = vld [vmem:[%s5 + $0x78] sm:$0xff]
    %v1141 = vsel %vm246, %v1136, 0
    %v1144 = vsel %vm246, %v1137, 0
    %v1147 = vsel %vm246, %v1138, 0
    %v1150 = vsel %vm246, %v1139, 0
    %1152 = vmatprep.subr.mxu0 0.0
    %1153 = vmatpush1.msra.mxu0 0.0
    %1154 = vmatprep.subr.mxu0 0.0
    %1155 = vmatpush1.msra.mxu0 0.0
    %1156 = vmatprep.subr.mxu0 0.0
    %1157 = vmatpush1.msra.mxu0 0.0
    %1158 = vmatprep.subr.mxu0 0.0
    %1159 = vmatpush1.msra.mxu0 0.0
    %1160 = vmatprep.subr.mxu0 0.0
    %1161 = vmatpush1.msra.mxu0 0.0
    %1162 = vmatprep.subr.mxu0 0.0
    %1163 = vmatpush1.msra.mxu0 0.0
    %1164 = vmatprep.subr.mxu0 0.0
    %1165 = vmatpush1.msra.mxu0 0.0
    %1166 = vmatprep.subr.mxu0 0.0
    %1167 = vmatpush1.msra.mxu0 0.0
    %1168 = vmatprep.subr.mxu0 0.0
    %1169 = vmatpush1.msra.mxu0 0.0
    %1170 = vmatprep.subr.mxu0 0.0
    %1171 = vmatpush1.msra.mxu0 0.0
    %1172 = vmatprep.subr.mxu0 0.0
    %1173 = vmatpush1.msra.mxu0 0.0
    %1174 = vmatprep.subr.mxu0 0.0
    %1175 = vmatpush1.msra.mxu0 0.0
    %1176 = vmatprep.subr.mxu0 %v1131
    %1177 = vmatpush1.msra.mxu0 %v1135
    %1178 = vmatprep.subr.mxu0 %v1130
    %1179 = vmatpush1.msra.mxu0 %v1134
    %1180 = vmatprep.subr.mxu0 %v1129
    %1181 = vmatpush1.msra.mxu0 %v1133
    %1182 = vmatprep.subr.mxu0 %v1128
    %1183 = vmatpush1.msra.mxu0 %v1132
    %1184 = vmatprep.subr.mxu0 0.0
    %1185 = vmatpush2.msra.mxu0 0.0
    %1186 = vmatprep.subr.mxu0 0.0
    %1187 = vmatpush2.msra.mxu0 0.0
    %1188 = vmatprep.subr.mxu0 0.0
    %1189 = vmatpush2.msra.mxu0 0.0
    %1190 = vmatprep.subr.mxu0 0.0
    %1191 = vmatpush2.msra.mxu0 0.0
    %1192 = vmatprep.subr.mxu0 0.0
    %1193 = vmatpush2.msra.mxu0 0.0
    %1194 = vmatprep.subr.mxu0 0.0
    %1195 = vmatpush2.msra.mxu0 0.0
    %1196 = vmatprep.subr.mxu0 0.0
    %1197 = vmatpush2.msra.mxu0 0.0
    %1198 = vmatprep.subr.mxu0 0.0
    %1199 = vmatpush2.msra.mxu0 0.0
    %1200 = vmatprep.subr.mxu0 0.0
    %1201 = vmatpush2.msra.mxu0 0.0
    %1202 = vmatprep.subr.mxu0 0.0
    %1203 = vmatpush2.msra.mxu0 0.0
    %1204 = vmatprep.subr.mxu0 0.0
    %1205 = vmatpush2.msra.mxu0 0.0
    %1206 = vmatprep.subr.mxu0 0.0
    %1207 = vmatpush2.msra.mxu0 0.0
    %1208 = vmatprep.subr.mxu0 0.0
    %1209 = vmatpush2.msra.mxu0 0.0
    %1210 = vmatprep.subr.mxu0 0.0
    %1211 = vmatpush2.msra.mxu0 0.0
    %1212 = vmatprep.subr.mxu0 0.0
    %1213 = vmatpush2.msra.mxu0 0.0
    %1214 = vmatprep.subr.mxu0 0.0
    %1215 = vmatpush2.msra.mxu0 0.0
    %1216 = vmatprep.mubr.f32.mxu0 0.0
    %1217 = vmatmul.mubr.f32.gmra.mxu0 %v1141
    %v1218 = vpop.f32.mrf.mxu0
    %v1219 = vadd.f32 0.0, %v1218
    %v1220 = vpop.f32.mrf.mxu0
    %v1221 = vadd.f32 0.0, %v1220
    %1222 = vmatprep.mubr.f32.mxu0 0.0
    %1223 = vmatmul.mubr.f32.gmra.mxu0 %v1144
    %v1224 = vpop.f32.mrf.mxu0
    %v1225 = vadd.f32 0.0, %v1224
    %v1226 = vpop.f32.mrf.mxu0
    %v1227 = vadd.f32 0.0, %v1226
    %1228 = vmatprep.mubr.f32.mxu0 0.0
    %1229 = vmatmul.mubr.f32.gmra.mxu0 %v1147
    %v1230 = vpop.f32.mrf.mxu0
    %v1231 = vadd.f32 0.0, %v1230
    %v1232 = vpop.f32.mrf.mxu0
    %v1233 = vadd.f32 0.0, %v1232
    %1234 = vmatprep.mubr.f32.mxu0 0.0
    %1235 = vmatmul.mubr.f32.gmra.mxu0 %v1150
    %v1236 = vpop.f32.mrf.mxu0
    %v1237 = vadd.f32 0.0, %v1236
    %v1238 = vpop.f32.mrf.mxu0
    %v1239 = vadd.f32 0.0, %v1238
    %1240 = vdwg.mxu0
    %v1241 = vadd.f32 %v1104, %v1219
    %v1242 = vadd.f32 %v1105, %v1221
    %v1243 = vadd.f32 %v1106, %v1225
    %v1244 = vadd.f32 %v1107, %v1227
    %v1245 = vadd.f32 %v1108, %v1231
    %v1246 = vadd.f32 %v1109, %v1233
    %v1247 = vadd.f32 %v1110, %v1237
    %v1248 = vadd.f32 %v1111, %v1239
    %v1249 = vld [vmem:[%s5 + $0x80] sm:$0xff]
    %v1250 = vld [vmem:[%s5 + $0x88] sm:$0xff]
    %v1251 = vld [vmem:[%s5 + $0x90] sm:$0xff]
    %v1252 = vld [vmem:[%s5 + $0x98] sm:$0xff]
    %v1254 = vsel %vm246, %v1249, 0
    %v1257 = vsel %vm246, %v1250, 0
    %v1260 = vsel %vm246, %v1251, 0
    %v1263 = vsel %vm246, %v1252, 0
    %1265 = vmatprep.subr.mxu0 0.0
    %1266 = vmatpush1.msra.mxu0 0.0
    %1267 = vmatprep.subr.mxu0 0.0
    %1268 = vmatpush1.msra.mxu0 0.0
    %1269 = vmatprep.subr.mxu0 0.0
    %1270 = vmatpush1.msra.mxu0 0.0
    %1271 = vmatprep.subr.mxu0 0.0
    %1272 = vmatpush1.msra.mxu0 0.0
    %1273 = vmatprep.subr.mxu0 0.0
    %1274 = vmatpush1.msra.mxu0 0.0
    %1275 = vmatprep.subr.mxu0 0.0
    %1276 = vmatpush1.msra.mxu0 0.0
    %1277 = vmatprep.subr.mxu0 0.0
    %1278 = vmatpush1.msra.mxu0 0.0
    %1279 = vmatprep.subr.mxu0 0.0
    %1280 = vmatpush1.msra.mxu0 0.0
    %1281 = vmatprep.subr.mxu0 0.0
    %1282 = vmatpush1.msra.mxu0 0.0
    %1283 = vmatprep.subr.mxu0 0.0
    %1284 = vmatpush1.msra.mxu0 0.0
    %1285 = vmatprep.subr.mxu0 0.0
    %1286 = vmatpush1.msra.mxu0 0.0
    %1287 = vmatprep.subr.mxu0 0.0
    %1288 = vmatpush1.msra.mxu0 0.0
    %1289 = vmatprep.subr.mxu0 %v716
    %1290 = vmatpush1.msra.mxu0 %v715
    %1291 = vmatprep.subr.mxu0 %v714
    %1292 = vmatpush1.msra.mxu0 %v713
    %1293 = vmatprep.subr.mxu0 %v712
    %1294 = vmatpush1.msra.mxu0 %v711
    %1295 = vmatprep.subr.mxu0 %v710
    %1296 = vmatpush1.msra.mxu0 %v709
    %1297 = vmatprep.subr.mxu0 0.0
    %1298 = vmatpush2.msra.mxu0 0.0
    %1299 = vmatprep.subr.mxu0 0.0
    %1300 = vmatpush2.msra.mxu0 0.0
    %1301 = vmatprep.subr.mxu0 0.0
    %1302 = vmatpush2.msra.mxu0 0.0
    %1303 = vmatprep.subr.mxu0 0.0
    %1304 = vmatpush2.msra.mxu0 0.0
    %1305 = vmatprep.subr.mxu0 0.0
    %1306 = vmatpush2.msra.mxu0 0.0
    %1307 = vmatprep.subr.mxu0 0.0
    %1308 = vmatpush2.msra.mxu0 0.0
    %1309 = vmatprep.subr.mxu0 0.0
    %1310 = vmatpush2.msra.mxu0 0.0
    %1311 = vmatprep.subr.mxu0 0.0
    %1312 = vmatpush2.msra.mxu0 0.0
    %1313 = vmatprep.subr.mxu0 0.0
    %1314 = vmatpush2.msra.mxu0 0.0
    %1315 = vmatprep.subr.mxu0 0.0
    %1316 = vmatpush2.msra.mxu0 0.0
    %1317 = vmatprep.subr.mxu0 0.0
    %1318 = vmatpush2.msra.mxu0 0.0
    %1319 = vmatprep.subr.mxu0 0.0
    %1320 = vmatpush2.msra.mxu0 0.0
    %1321 = vmatprep.subr.mxu0 0.0
    %1322 = vmatpush2.msra.mxu0 0.0
    %1323 = vmatprep.subr.mxu0 0.0
    %1324 = vmatpush2.msra.mxu0 0.0
    %1325 = vmatprep.subr.mxu0 0.0
    %1326 = vmatpush2.msra.mxu0 0.0
    %1327 = vmatprep.subr.mxu0 0.0
    %1328 = vmatpush2.msra.mxu0 0.0
    %1329 = vmatprep.mubr.f32.mxu0 0.0
    %1330 = vmatmul.mubr.f32.gmra.mxu0 %v1254
    %v1331 = vpop.f32.mrf.mxu0
    %v1332 = vadd.f32 0.0, %v1331
    %v1333 = vpop.f32.mrf.mxu0
    %v1334 = vadd.f32 0.0, %v1333
    %1335 = vmatprep.mubr.f32.mxu0 0.0
    %1336 = vmatmul.mubr.f32.gmra.mxu0 %v1257
    %v1337 = vpop.f32.mrf.mxu0
    %v1338 = vadd.f32 0.0, %v1337
    %v1339 = vpop.f32.mrf.mxu0
    %v1340 = vadd.f32 0.0, %v1339
    %1341 = vmatprep.mubr.f32.mxu0 0.0
    %1342 = vmatmul.mubr.f32.gmra.mxu0 %v1260
    %v1343 = vpop.f32.mrf.mxu0
    %v1344 = vadd.f32 0.0, %v1343
    %v1345 = vpop.f32.mrf.mxu0
    %v1346 = vadd.f32 0.0, %v1345
    %1347 = vmatprep.mubr.f32.mxu0 0.0
    %1348 = vmatmul.mubr.f32.gmra.mxu0 %v1263
    %v1349 = vpop.f32.mrf.mxu0
    %v1350 = vadd.f32 0.0, %v1349
    %v1351 = vpop.f32.mrf.mxu0
    %v1352 = vadd.f32 0.0, %v1351
    %1353 = vdwg.mxu0
    %v1354 = vadd.f32 %v1241, %v1332
    %v1355 = vadd.f32 %v1242, %v1334
    %v1356 = vadd.f32 %v1243, %v1338
    %v1357 = vadd.f32 %v1244, %v1340
    %v1358 = vadd.f32 %v1245, %v1344
    %v1359 = vadd.f32 %v1246, %v1346
    %v1360 = vadd.f32 %v1247, %v1350
    %v1361 = vadd.f32 %v1248, %v1352
    %1362 = vrot.lane.b32.xlu0 %v709, 127
    %v1363 = vpop.permute.xlu0 %1362
    %1364 = vrot.lane.b32.xlu0 %v711, 127
    %v1365 = vpop.permute.xlu0 %1364
    %1366 = vrot.lane.b32.xlu0 %v713, 127
    %v1367 = vpop.permute.xlu0 %1366
    %1368 = vrot.lane.b32.xlu0 %v715, 127
    %v1369 = vpop.permute.xlu0 %1368
    %1370 = vrot.lane.b32.xlu0 %v710, 127
    %v1371 = vpop.permute.xlu0 %1370
    %1372 = vrot.lane.b32.xlu0 %v712, 127
    %v1373 = vpop.permute.xlu0 %1372
    %1374 = vrot.lane.b32.xlu0 %v714, 127
    %v1375 = vpop.permute.xlu0 %1374
    %1376 = vrot.lane.b32.xlu0 %v716, 127
    %v1377 = vpop.permute.xlu0 %1376
    %v1378 = vsel %vm395, %v1363, %v1371
    %v1379 = vsel %vm395, %v1365, %v1373
    %v1380 = vsel %vm395, %v1367, %v1375
    %v1381 = vsel %vm395, %v1369, %v1377
    %v1382 = vsel %vm395, %v1371, %v1363
    %v1383 = vsel %vm395, %v1373, %v1365
    %v1384 = vsel %vm395, %v1375, %v1367
    %v1385 = vsel %vm395, %v1377, %v1369
    %v1386 = vld [vmem:[%s5 + $0xa0] sm:$0xff]
    %v1387 = vld [vmem:[%s5 + $0xa8] sm:$0xff]
    %v1388 = vld [vmem:[%s5 + $0xb0] sm:$0xff]
    %v1389 = vld [vmem:[%s5 + $0xb8] sm:$0xff]
    %v1391 = vsel %vm246, %v1386, 0
    %v1394 = vsel %vm246, %v1387, 0
    %v1397 = vsel %vm246, %v1388, 0
    %v1400 = vsel %vm246, %v1389, 0
    %1402 = vmatprep.subr.mxu0 0.0
    %1403 = vmatpush1.msra.mxu0 0.0
    %1404 = vmatprep.subr.mxu0 0.0
    %1405 = vmatpush1.msra.mxu0 0.0
    %1406 = vmatprep.subr.mxu0 0.0
    %1407 = vmatpush1.msra.mxu0 0.0
    %1408 = vmatprep.subr.mxu0 0.0
    %1409 = vmatpush1.msra.mxu0 0.0
    %1410 = vmatprep.subr.mxu0 0.0
    %1411 = vmatpush1.msra.mxu0 0.0
    %1412 = vmatprep.subr.mxu0 0.0
    %1413 = vmatpush1.msra.mxu0 0.0
    %1414 = vmatprep.subr.mxu0 0.0
    %1415 = vmatpush1.msra.mxu0 0.0
    %1416 = vmatprep.subr.mxu0 0.0
    %1417 = vmatpush1.msra.mxu0 0.0
    %1418 = vmatprep.subr.mxu0 0.0
    %1419 = vmatpush1.msra.mxu0 0.0
    %1420 = vmatprep.subr.mxu0 0.0
    %1421 = vmatpush1.msra.mxu0 0.0
    %1422 = vmatprep.subr.mxu0 0.0
    %1423 = vmatpush1.msra.mxu0 0.0
    %1424 = vmatprep.subr.mxu0 0.0
    %1425 = vmatpush1.msra.mxu0 0.0
    %1426 = vmatprep.subr.mxu0 %v1385
    %1427 = vmatpush1.msra.mxu0 %v1381
    %1428 = vmatprep.subr.mxu0 %v1384
    %1429 = vmatpush1.msra.mxu0 %v1380
    %1430 = vmatprep.subr.mxu0 %v1383
    %1431 = vmatpush1.msra.mxu0 %v1379
    %1432 = vmatprep.subr.mxu0 %v1382
    %1433 = vmatpush1.msra.mxu0 %v1378
    %1434 = vmatprep.subr.mxu0 0.0
    %1435 = vmatpush2.msra.mxu0 0.0
    %1436 = vmatprep.subr.mxu0 0.0
    %1437 = vmatpush2.msra.mxu0 0.0
    %1438 = vmatprep.subr.mxu0 0.0
    %1439 = vmatpush2.msra.mxu0 0.0
    %1440 = vmatprep.subr.mxu0 0.0
    %1441 = vmatpush2.msra.mxu0 0.0
    %1442 = vmatprep.subr.mxu0 0.0
    %1443 = vmatpush2.msra.mxu0 0.0
    %1444 = vmatprep.subr.mxu0 0.0
    %1445 = vmatpush2.msra.mxu0 0.0
    %1446 = vmatprep.subr.mxu0 0.0
    %1447 = vmatpush2.msra.mxu0 0.0
    %1448 = vmatprep.subr.mxu0 0.0
    %1449 = vmatpush2.msra.mxu0 0.0
    %1450 = vmatprep.subr.mxu0 0.0
    %1451 = vmatpush2.msra.mxu0 0.0
    %1452 = vmatprep.subr.mxu0 0.0
    %1453 = vmatpush2.msra.mxu0 0.0
    %1454 = vmatprep.subr.mxu0 0.0
    %1455 = vmatpush2.msra.mxu0 0.0
    %1456 = vmatprep.subr.mxu0 0.0
    %1457 = vmatpush2.msra.mxu0 0.0
    %1458 = vmatprep.subr.mxu0 0.0
    %1459 = vmatpush2.msra.mxu0 0.0
    %1460 = vmatprep.subr.mxu0 0.0
    %1461 = vmatpush2.msra.mxu0 0.0
    %1462 = vmatprep.subr.mxu0 0.0
    %1463 = vmatpush2.msra.mxu0 0.0
    %1464 = vmatprep.subr.mxu0 0.0
    %1465 = vmatpush2.msra.mxu0 0.0
    %1466 = vmatprep.mubr.f32.mxu0 0.0
    %1467 = vmatmul.mubr.f32.gmra.mxu0 %v1391
    %v1468 = vpop.f32.mrf.mxu0
    %v1469 = vadd.f32 0.0, %v1468
    %v1470 = vpop.f32.mrf.mxu0
    %v1471 = vadd.f32 0.0, %v1470
    %1472 = vmatprep.mubr.f32.mxu0 0.0
    %1473 = vmatmul.mubr.f32.gmra.mxu0 %v1394
    %v1474 = vpop.f32.mrf.mxu0
    %v1475 = vadd.f32 0.0, %v1474
    %v1476 = vpop.f32.mrf.mxu0
    %v1477 = vadd.f32 0.0, %v1476
    %1478 = vmatprep.mubr.f32.mxu0 0.0
    %1479 = vmatmul.mubr.f32.gmra.mxu0 %v1397
    %v1480 = vpop.f32.mrf.mxu0
    %v1481 = vadd.f32 0.0, %v1480
    %v1482 = vpop.f32.mrf.mxu0
    %v1483 = vadd.f32 0.0, %v1482
    %1484 = vmatprep.mubr.f32.mxu0 0.0
    %1485 = vmatmul.mubr.f32.gmra.mxu0 %v1400
    %v1486 = vpop.f32.mrf.mxu0
    %v1487 = vadd.f32 0.0, %v1486
    %v1488 = vpop.f32.mrf.mxu0
    %v1489 = vadd.f32 0.0, %v1488
    %1490 = vdwg.mxu0
    %v1491 = vadd.f32 %v1354, %v1469
    %v1492 = vadd.f32 %v1355, %v1471
    %v1493 = vadd.f32 %v1356, %v1475
    %v1494 = vadd.f32 %v1357, %v1477
    %v1495 = vadd.f32 %v1358, %v1481
    %v1496 = vadd.f32 %v1359, %v1483
    %v1497 = vadd.f32 %v1360, %v1487
    %v1498 = vadd.f32 %v1361, %v1489
    %1499 = vrot.lane.b32.xlu0 %v709, 119
    %v1500 = vpop.permute.xlu0 %1499
    %1501 = vrot.lane.b32.xlu0 %v711, 119
    %v1502 = vpop.permute.xlu0 %1501
    %1503 = vrot.lane.b32.xlu0 %v713, 119
    %v1504 = vpop.permute.xlu0 %1503
    %1505 = vrot.lane.b32.xlu0 %v715, 119
    %v1506 = vpop.permute.xlu0 %1505
    %1507 = vrot.lane.b32.xlu0 %v710, 119
    %v1508 = vpop.permute.xlu0 %1507
    %1509 = vrot.lane.b32.xlu0 %v712, 119
    %v1510 = vpop.permute.xlu0 %1509
    %1511 = vrot.lane.b32.xlu0 %v714, 119
    %v1512 = vpop.permute.xlu0 %1511
    %1513 = vrot.lane.b32.xlu0 %v716, 119
    %v1514 = vpop.permute.xlu0 %1513
    %v1515 = vsel %vm408, %v1500, %v1508
    %v1516 = vsel %vm408, %v1502, %v1510
    %v1517 = vsel %vm408, %v1504, %v1512
    %v1518 = vsel %vm408, %v1506, %v1514
    %v1519 = vsel %vm408, %v1508, %v1500
    %v1520 = vsel %vm408, %v1510, %v1502
    %v1521 = vsel %vm408, %v1512, %v1504
    %v1522 = vsel %vm408, %v1514, %v1506
    %v1523 = vld [vmem:[%s5 + $0xc0] sm:$0xff]
    %v1524 = vld [vmem:[%s5 + $0xc8] sm:$0xff]
    %v1525 = vld [vmem:[%s5 + $0xd0] sm:$0xff]
    %v1526 = vld [vmem:[%s5 + $0xd8] sm:$0xff]
    %v1528 = vsel %vm246, %v1523, 0
    %v1531 = vsel %vm246, %v1524, 0
    %v1534 = vsel %vm246, %v1525, 0
    %v1537 = vsel %vm246, %v1526, 0
    %1539 = vmatprep.subr.mxu0 0.0
    %1540 = vmatpush1.msra.mxu0 0.0
    %1541 = vmatprep.subr.mxu0 0.0
    %1542 = vmatpush1.msra.mxu0 0.0
    %1543 = vmatprep.subr.mxu0 0.0
    %1544 = vmatpush1.msra.mxu0 0.0
    %1545 = vmatprep.subr.mxu0 0.0
    %1546 = vmatpush1.msra.mxu0 0.0
    %1547 = vmatprep.subr.mxu0 0.0
    %1548 = vmatpush1.msra.mxu0 0.0
    %1549 = vmatprep.subr.mxu0 0.0
    %1550 = vmatpush1.msra.mxu0 0.0
    %1551 = vmatprep.subr.mxu0 0.0
    %1552 = vmatpush1.msra.mxu0 0.0
    %1553 = vmatprep.subr.mxu0 0.0
    %1554 = vmatpush1.msra.mxu0 0.0
    %1555 = vmatprep.subr.mxu0 0.0
    %1556 = vmatpush1.msra.mxu0 0.0
    %1557 = vmatprep.subr.mxu0 0.0
    %1558 = vmatpush1.msra.mxu0 0.0
    %1559 = vmatprep.subr.mxu0 0.0
    %1560 = vmatpush1.msra.mxu0 0.0
    %1561 = vmatprep.subr.mxu0 0.0
    %1562 = vmatpush1.msra.mxu0 0.0
    %1563 = vmatprep.subr.mxu0 %v1522
    %1564 = vmatpush1.msra.mxu0 %v1518
    %1565 = vmatprep.subr.mxu0 %v1521
    %1566 = vmatpush1.msra.mxu0 %v1517
    %1567 = vmatprep.subr.mxu0 %v1520
    %1568 = vmatpush1.msra.mxu0 %v1516
    %1569 = vmatprep.subr.mxu0 %v1519
    %1570 = vmatpush1.msra.mxu0 %v1515
    %1571 = vmatprep.subr.mxu0 0.0
    %1572 = vmatpush2.msra.mxu0 0.0
    %1573 = vmatprep.subr.mxu0 0.0
    %1574 = vmatpush2.msra.mxu0 0.0
    %1575 = vmatprep.subr.mxu0 0.0
    %1576 = vmatpush2.msra.mxu0 0.0
    %1577 = vmatprep.subr.mxu0 0.0
    %1578 = vmatpush2.msra.mxu0 0.0
    %1579 = vmatprep.subr.mxu0 0.0
    %1580 = vmatpush2.msra.mxu0 0.0
    %1581 = vmatprep.subr.mxu0 0.0
    %1582 = vmatpush2.msra.mxu0 0.0
    %1583 = vmatprep.subr.mxu0 0.0
    %1584 = vmatpush2.msra.mxu0 0.0
    %1585 = vmatprep.subr.mxu0 0.0
    %1586 = vmatpush2.msra.mxu0 0.0
    %1587 = vmatprep.subr.mxu0 0.0
    %1588 = vmatpush2.msra.mxu0 0.0
    %1589 = vmatprep.subr.mxu0 0.0
    %1590 = vmatpush2.msra.mxu0 0.0
    %1591 = vmatprep.subr.mxu0 0.0
    %1592 = vmatpush2.msra.mxu0 0.0
    %1593 = vmatprep.subr.mxu0 0.0
    %1594 = vmatpush2.msra.mxu0 0.0
    %1595 = vmatprep.subr.mxu0 0.0
    %1596 = vmatpush2.msra.mxu0 0.0
    %1597 = vmatprep.subr.mxu0 0.0
    %1598 = vmatpush2.msra.mxu0 0.0
    %1599 = vmatprep.subr.mxu0 0.0
    %1600 = vmatpush2.msra.mxu0 0.0
    %1601 = vmatprep.subr.mxu0 0.0
    %1602 = vmatpush2.msra.mxu0 0.0
    %1603 = vmatprep.mubr.f32.mxu0 0.0
    %1604 = vmatmul.mubr.f32.gmra.mxu0 %v1528
    %v1605 = vpop.f32.mrf.mxu0
    %v1606 = vadd.f32 0.0, %v1605
    %v1607 = vpop.f32.mrf.mxu0
    %v1608 = vadd.f32 0.0, %v1607
    %1609 = vmatprep.mubr.f32.mxu0 0.0
    %1610 = vmatmul.mubr.f32.gmra.mxu0 %v1531
    %v1611 = vpop.f32.mrf.mxu0
    %v1612 = vadd.f32 0.0, %v1611
    %v1613 = vpop.f32.mrf.mxu0
    %v1614 = vadd.f32 0.0, %v1613
    %1615 = vmatprep.mubr.f32.mxu0 0.0
    %1616 = vmatmul.mubr.f32.gmra.mxu0 %v1534
    %v1617 = vpop.f32.mrf.mxu0
    %v1618 = vadd.f32 0.0, %v1617
    %v1619 = vpop.f32.mrf.mxu0
    %v1620 = vadd.f32 0.0, %v1619
    %1621 = vmatprep.mubr.f32.mxu0 0.0
    %1622 = vmatmul.mubr.f32.gmra.mxu0 %v1537
    %v1623 = vpop.f32.mrf.mxu0
    %v1624 = vadd.f32 0.0, %v1623
    %v1625 = vpop.f32.mrf.mxu0
    %v1626 = vadd.f32 0.0, %v1625
    %1627 = vdwg.mxu0
    %v1628 = vadd.f32 %v1491, %v1606
    %v1629 = vadd.f32 %v1492, %v1608
    %v1630 = vadd.f32 %v1493, %v1612
    %v1631 = vadd.f32 %v1494, %v1614
    %v1632 = vadd.f32 %v1495, %v1618
    %v1633 = vadd.f32 %v1496, %v1620
    %v1634 = vadd.f32 %v1497, %v1624
    %v1635 = vadd.f32 %v1498, %v1626
    %1636 = vrot.lane.b32.xlu0 %v709, 118
    %v1637 = vpop.permute.xlu0 %1636
    %1638 = vrot.lane.b32.xlu0 %v711, 118
    %v1639 = vpop.permute.xlu0 %1638
    %1640 = vrot.lane.b32.xlu0 %v713, 118
    %v1641 = vpop.permute.xlu0 %1640
    %1642 = vrot.lane.b32.xlu0 %v715, 118
    %v1643 = vpop.permute.xlu0 %1642
    %1644 = vrot.lane.b32.xlu0 %v710, 118
    %v1645 = vpop.permute.xlu0 %1644
    %1646 = vrot.lane.b32.xlu0 %v712, 118
    %v1647 = vpop.permute.xlu0 %1646
    %1648 = vrot.lane.b32.xlu0 %v714, 118
    %v1649 = vpop.permute.xlu0 %1648
    %1650 = vrot.lane.b32.xlu0 %v716, 118
    %v1651 = vpop.permute.xlu0 %1650
    %v1652 = vsel %vm421, %v1637, %v1645
    %v1653 = vsel %vm421, %v1639, %v1647
    %v1654 = vsel %vm421, %v1641, %v1649
    %v1655 = vsel %vm421, %v1643, %v1651
    %v1656 = vsel %vm421, %v1645, %v1637
    %v1657 = vsel %vm421, %v1647, %v1639
    %v1658 = vsel %vm421, %v1649, %v1641
    %v1659 = vsel %vm421, %v1651, %v1643
    %v1660 = vld [vmem:[%s5 + $0xe0] sm:$0xff]
    %v1661 = vld [vmem:[%s5 + $0xe8] sm:$0xff]
    %v1662 = vld [vmem:[%s5 + $0xf0] sm:$0xff]
    %v1663 = vld [vmem:[%s5 + $0xf8] sm:$0xff]
    %v1665 = vsel %vm246, %v1660, 0
    %v1668 = vsel %vm246, %v1661, 0
    %v1671 = vsel %vm246, %v1662, 0
    %v1674 = vsel %vm246, %v1663, 0
    %1676 = vmatprep.subr.mxu0 0.0
    %1677 = vmatpush1.msra.mxu0 0.0
    %1678 = vmatprep.subr.mxu0 0.0
    %1679 = vmatpush1.msra.mxu0 0.0
    %1680 = vmatprep.subr.mxu0 0.0
    %1681 = vmatpush1.msra.mxu0 0.0
    %1682 = vmatprep.subr.mxu0 0.0
    %1683 = vmatpush1.msra.mxu0 0.0
    %1684 = vmatprep.subr.mxu0 0.0
    %1685 = vmatpush1.msra.mxu0 0.0
    %1686 = vmatprep.subr.mxu0 0.0
    %1687 = vmatpush1.msra.mxu0 0.0
    %1688 = vmatprep.subr.mxu0 0.0
    %1689 = vmatpush1.msra.mxu0 0.0
    %1690 = vmatprep.subr.mxu0 0.0
    %1691 = vmatpush1.msra.mxu0 0.0
    %1692 = vmatprep.subr.mxu0 0.0
    %1693 = vmatpush1.msra.mxu0 0.0
    %1694 = vmatprep.subr.mxu0 0.0
    %1695 = vmatpush1.msra.mxu0 0.0
    %1696 = vmatprep.subr.mxu0 0.0
    %1697 = vmatpush1.msra.mxu0 0.0
    %1698 = vmatprep.subr.mxu0 0.0
    %1699 = vmatpush1.msra.mxu0 0.0
    %1700 = vmatprep.subr.mxu0 %v1659
    %1701 = vmatpush1.msra.mxu0 %v1655
    %1702 = vmatprep.subr.mxu0 %v1658
    %1703 = vmatpush1.msra.mxu0 %v1654
    %1704 = vmatprep.subr.mxu0 %v1657
    %1705 = vmatpush1.msra.mxu0 %v1653
    %1706 = vmatprep.subr.mxu0 %v1656
    %1707 = vmatpush1.msra.mxu0 %v1652
    %1708 = vmatprep.subr.mxu0 0.0
    %1709 = vmatpush2.msra.mxu0 0.0
    %1710 = vmatprep.subr.mxu0 0.0
    %1711 = vmatpush2.msra.mxu0 0.0
    %1712 = vmatprep.subr.mxu0 0.0
    %1713 = vmatpush2.msra.mxu0 0.0
    %1714 = vmatprep.subr.mxu0 0.0
    %1715 = vmatpush2.msra.mxu0 0.0
    %1716 = vmatprep.subr.mxu0 0.0
    %1717 = vmatpush2.msra.mxu0 0.0
    %1718 = vmatprep.subr.mxu0 0.0
    %1719 = vmatpush2.msra.mxu0 0.0
    %1720 = vmatprep.subr.mxu0 0.0
    %1721 = vmatpush2.msra.mxu0 0.0
    %1722 = vmatprep.subr.mxu0 0.0
    %1723 = vmatpush2.msra.mxu0 0.0
    %1724 = vmatprep.subr.mxu0 0.0
    %1725 = vmatpush2.msra.mxu0 0.0
    %1726 = vmatprep.subr.mxu0 0.0
    %1727 = vmatpush2.msra.mxu0 0.0
    %1728 = vmatprep.subr.mxu0 0.0
    %1729 = vmatpush2.msra.mxu0 0.0
    %1730 = vmatprep.subr.mxu0 0.0
    %1731 = vmatpush2.msra.mxu0 0.0
    %1732 = vmatprep.subr.mxu0 0.0
    %1733 = vmatpush2.msra.mxu0 0.0
    %1734 = vmatprep.subr.mxu0 0.0
    %1735 = vmatpush2.msra.mxu0 0.0
    %1736 = vmatprep.subr.mxu0 0.0
    %1737 = vmatpush2.msra.mxu0 0.0
    %1738 = vmatprep.subr.mxu0 0.0
    %1739 = vmatpush2.msra.mxu0 0.0
    %1740 = vmatprep.mubr.f32.mxu0 0.0
    %1741 = vmatmul.mubr.f32.gmra.mxu0 %v1665
    %v1742 = vpop.f32.mrf.mxu0
    %v1743 = vadd.f32 0.0, %v1742
    %v1744 = vpop.f32.mrf.mxu0
    %v1745 = vadd.f32 0.0, %v1744
    %1746 = vmatprep.mubr.f32.mxu0 0.0
    %1747 = vmatmul.mubr.f32.gmra.mxu0 %v1668
    %v1748 = vpop.f32.mrf.mxu0
    %v1749 = vadd.f32 0.0, %v1748
    %v1750 = vpop.f32.mrf.mxu0
    %v1751 = vadd.f32 0.0, %v1750
    %1752 = vmatprep.mubr.f32.mxu0 0.0
    %1753 = vmatmul.mubr.f32.gmra.mxu0 %v1671
    %v1754 = vpop.f32.mrf.mxu0
    %v1755 = vadd.f32 0.0, %v1754
    %v1756 = vpop.f32.mrf.mxu0
    %v1757 = vadd.f32 0.0, %v1756
    %1758 = vmatprep.mubr.f32.mxu0 0.0
    %1759 = vmatmul.mubr.f32.gmra.mxu0 %v1674
    %v1760 = vpop.f32.mrf.mxu0
    %v1761 = vadd.f32 0.0, %v1760
    %v1762 = vpop.f32.mrf.mxu0
    %v1763 = vadd.f32 0.0, %v1762
    %1764 = vdwg.mxu0
    %v1765 = vadd.f32 %v1628, %v1743
    %v1766 = vadd.f32 %v1629, %v1745
    %v1767 = vadd.f32 %v1630, %v1749
    %v1768 = vadd.f32 %v1631, %v1751
    %v1769 = vadd.f32 %v1632, %v1755
    %v1770 = vadd.f32 %v1633, %v1757
    %v1771 = vadd.f32 %v1634, %v1761
    %v1772 = vadd.f32 %v1635, %v1763
    %1773 = vrot.lane.b32.xlu0 %v709, 117
    %v1774 = vpop.permute.xlu0 %1773
    %1775 = vrot.lane.b32.xlu0 %v711, 117
    %v1776 = vpop.permute.xlu0 %1775
    %1777 = vrot.lane.b32.xlu0 %v713, 117
    %v1778 = vpop.permute.xlu0 %1777
    %1779 = vrot.lane.b32.xlu0 %v715, 117
    %v1780 = vpop.permute.xlu0 %1779
    %1781 = vrot.lane.b32.xlu0 %v710, 117
    %v1782 = vpop.permute.xlu0 %1781
    %1783 = vrot.lane.b32.xlu0 %v712, 117
    %v1784 = vpop.permute.xlu0 %1783
    %1785 = vrot.lane.b32.xlu0 %v714, 117
    %v1786 = vpop.permute.xlu0 %1785
    %1787 = vrot.lane.b32.xlu0 %v716, 117
    %v1788 = vpop.permute.xlu0 %1787
    %v1789 = vsel %vm430, %v1774, %v1782
    %v1790 = vsel %vm430, %v1776, %v1784
    %v1791 = vsel %vm430, %v1778, %v1786
    %v1792 = vsel %vm430, %v1780, %v1788
    %v1793 = vsel %vm430, %v1782, %v1774
    %v1794 = vsel %vm430, %v1784, %v1776
    %v1795 = vsel %vm430, %v1786, %v1778
    %v1796 = vsel %vm430, %v1788, %v1780
    %v1797 = vld [vmem:[%s5 + $0x100] sm:$0xff]
    %v1798 = vld [vmem:[%s5 + $0x108] sm:$0xff]
    %v1799 = vld [vmem:[%s5 + $0x110] sm:$0xff]
    %v1800 = vld [vmem:[%s5 + $0x118] sm:$0xff]
    %v1802 = vsel %vm246, %v1797, 0
    %v1805 = vsel %vm246, %v1798, 0
    %v1808 = vsel %vm246, %v1799, 0
    %v1811 = vsel %vm246, %v1800, 0
    %1813 = vmatprep.subr.mxu0 0.0
    %1814 = vmatpush1.msra.mxu0 0.0
    %1815 = vmatprep.subr.mxu0 0.0
    %1816 = vmatpush1.msra.mxu0 0.0
    %1817 = vmatprep.subr.mxu0 0.0
    %1818 = vmatpush1.msra.mxu0 0.0
    %1819 = vmatprep.subr.mxu0 0.0
    %1820 = vmatpush1.msra.mxu0 0.0
    %1821 = vmatprep.subr.mxu0 0.0
    %1822 = vmatpush1.msra.mxu0 0.0
    %1823 = vmatprep.subr.mxu0 0.0
    %1824 = vmatpush1.msra.mxu0 0.0
    %1825 = vmatprep.subr.mxu0 0.0
    %1826 = vmatpush1.msra.mxu0 0.0
    %1827 = vmatprep.subr.mxu0 0.0
    %1828 = vmatpush1.msra.mxu0 0.0
    %1829 = vmatprep.subr.mxu0 0.0
    %1830 = vmatpush1.msra.mxu0 0.0
    %1831 = vmatprep.subr.mxu0 0.0
    %1832 = vmatpush1.msra.mxu0 0.0
    %1833 = vmatprep.subr.mxu0 0.0
    %1834 = vmatpush1.msra.mxu0 0.0
    %1835 = vmatprep.subr.mxu0 0.0
    %1836 = vmatpush1.msra.mxu0 0.0
    %1837 = vmatprep.subr.mxu0 %v1796
    %1838 = vmatpush1.msra.mxu0 %v1792
    %1839 = vmatprep.subr.mxu0 %v1795
    %1840 = vmatpush1.msra.mxu0 %v1791
    %1841 = vmatprep.subr.mxu0 %v1794
    %1842 = vmatpush1.msra.mxu0 %v1790
    %1843 = vmatprep.subr.mxu0 %v1793
    %1844 = vmatpush1.msra.mxu0 %v1789
    %1845 = vmatprep.subr.mxu0 0.0
    %1846 = vmatpush2.msra.mxu0 0.0
    %1847 = vmatprep.subr.mxu0 0.0
    %1848 = vmatpush2.msra.mxu0 0.0
    %1849 = vmatprep.subr.mxu0 0.0
    %1850 = vmatpush2.msra.mxu0 0.0
    %1851 = vmatprep.subr.mxu0 0.0
    %1852 = vmatpush2.msra.mxu0 0.0
    %1853 = vmatprep.subr.mxu0 0.0
    %1854 = vmatpush2.msra.mxu0 0.0
    %1855 = vmatprep.subr.mxu0 0.0
    %1856 = vmatpush2.msra.mxu0 0.0
    %1857 = vmatprep.subr.mxu0 0.0
    %1858 = vmatpush2.msra.mxu0 0.0
    %1859 = vmatprep.subr.mxu0 0.0
    %1860 = vmatpush2.msra.mxu0 0.0
    %1861 = vmatprep.subr.mxu0 0.0
    %1862 = vmatpush2.msra.mxu0 0.0
    %1863 = vmatprep.subr.mxu0 0.0
    %1864 = vmatpush2.msra.mxu0 0.0
    %1865 = vmatprep.subr.mxu0 0.0
    %1866 = vmatpush2.msra.mxu0 0.0
    %1867 = vmatprep.subr.mxu0 0.0
    %1868 = vmatpush2.msra.mxu0 0.0
    %1869 = vmatprep.subr.mxu0 0.0
    %1870 = vmatpush2.msra.mxu0 0.0
    %1871 = vmatprep.subr.mxu0 0.0
    %1872 = vmatpush2.msra.mxu0 0.0
    %1873 = vmatprep.subr.mxu0 0.0
    %1874 = vmatpush2.msra.mxu0 0.0
    %1875 = vmatprep.subr.mxu0 0.0
    %1876 = vmatpush2.msra.mxu0 0.0
    %1877 = vmatprep.mubr.f32.mxu0 0.0
    %1878 = vmatmul.mubr.f32.gmra.mxu0 %v1802
    %v1879 = vpop.f32.mrf.mxu0
    %v1880 = vadd.f32 0.0, %v1879
    %v1881 = vpop.f32.mrf.mxu0
    %v1882 = vadd.f32 0.0, %v1881
    %1883 = vmatprep.mubr.f32.mxu0 0.0
    %1884 = vmatmul.mubr.f32.gmra.mxu0 %v1805
    %v1885 = vpop.f32.mrf.mxu0
    %v1886 = vadd.f32 0.0, %v1885
    %v1887 = vpop.f32.mrf.mxu0
    %v1888 = vadd.f32 0.0, %v1887
    %1889 = vmatprep.mubr.f32.mxu0 0.0
    %1890 = vmatmul.mubr.f32.gmra.mxu0 %v1808
    %v1891 = vpop.f32.mrf.mxu0
    %v1892 = vadd.f32 0.0, %v1891
    %v1893 = vpop.f32.mrf.mxu0
    %v1894 = vadd.f32 0.0, %v1893
    %1895 = vmatprep.mubr.f32.mxu0 0.0
    %1896 = vmatmul.mubr.f32.gmra.mxu0 %v1811
    %v1897 = vpop.f32.mrf.mxu0
    %v1898 = vadd.f32 0.0, %v1897
    %v1899 = vpop.f32.mrf.mxu0
    %v1900 = vadd.f32 0.0, %v1899
    %1901 = vdwg.mxu0
    %v1902 = vadd.f32 %v1765, %v1880
    %v1903 = vadd.f32 %v1766, %v1882
    %v1904 = vadd.f32 %v1767, %v1886
    %v1905 = vadd.f32 %v1768, %v1888
    %v1906 = vadd.f32 %v1769, %v1892
    %v1907 = vadd.f32 %v1770, %v1894
    %v1908 = vadd.f32 %v1771, %v1898
    %v1909 = vadd.f32 %v1772, %v1900
    %v1910 = vld [vmem:[%s6] sm:$0xff]
    %v1911 = vld [vmem:[%s6 + $0x8] sm:$0xff]
    %v1912 = vld [vmem:[%s6 + $0x10] sm:$0xff]
    %v1913 = vld [vmem:[%s6 + $0x18] sm:$0xff]
    %1915 = vset.pattern.permute.xlu0 0
    %1916 = vperm.xlu0 %1915, %v1910
    %v1917 = vpop.permute.xlu0 %1916
    %1920 = vset.pattern.permute.xlu0 0
    %1921 = vperm.xlu0 %1920, %v1911
    %v1922 = vpop.permute.xlu0 %1921
    %1925 = vset.pattern.permute.xlu0 0
    %1926 = vperm.xlu0 %1925, %v1912
    %v1927 = vpop.permute.xlu0 %1926
    %1930 = vset.pattern.permute.xlu0 0
    %1931 = vperm.xlu0 %1930, %v1913
    %v1932 = vpop.permute.xlu0 %1931
    %v1934 = vadd.f32 %v1902, %v1917
    %v1935 = vadd.f32 %v1903, %v1917
    %v1936 = vadd.f32 %v1904, %v1922
    %v1937 = vadd.f32 %v1905, %v1922
    %v1938 = vadd.f32 %v1906, %v1927
    %v1939 = vadd.f32 %v1907, %v1927
    %v1940 = vadd.f32 %v1908, %v1932
    %v1941 = vadd.f32 %v1909, %v1932
    %v1942 = vmax.f32 %v1934, 0.0
    %v1943 = vmax.f32 %v1935, 0.0
    %v1944 = vmax.f32 %v1936, 0.0
    %v1945 = vmax.f32 %v1937, 0.0
    %v1946 = vmax.f32 %v1938, 0.0
    %v1947 = vmax.f32 %v1939, 0.0
    %v1948 = vmax.f32 %v1940, 0.0
    %v1949 = vmax.f32 %v1941, 0.0
    %s1950 = smul.u32 4, 16
    %s1951 = smul.u32 %s1950, 3
    %s1952 = sshll.u32 %s1951, 4
    %1953 = dma.done [#allocation5], %s1952
    %s1954 = sshll.u32 %s1951, 4
    %1955 = dma.done %s146, %s1954
    %v1956 = vpack.c.bf16 %v455, %v455
    %v1957 = vpack.c.bf16 %v457, %v457
    %v1958 = vld [vmem:[#allocation2] sm:$0xff]
    %v1959 = vld [vmem:[#allocation2 + $0x8] sm:$0xf]
    %v1960 = vld [vmem:[#allocation2 + $0xc] sm:$0xff]
    %v1961 = vld [vmem:[#allocation2 + $0x14] sm:$0xf]
    %v1962 = vld [vmem:[#allocation2 + $0x18] sm:$0xff]
    %v1963 = vld [vmem:[#allocation2 + $0x20] sm:$0xf]
    %v1964 = vld [vmem:[#allocation2 + $0x24] sm:$0xff]
    %v1965 = vld [vmem:[#allocation2 + $0x2c] sm:$0xf]
    %v1966 = vld [vmem:[#allocation2 + $0x30] sm:$0xff]
    %v1967 = vld [vmem:[#allocation2 + $0x38] sm:$0xf]
    %v1968 = vld [vmem:[#allocation2 + $0x3c] sm:$0xff]
    %v1969 = vld [vmem:[#allocation2 + $0x44] sm:$0xf]
    %v1970 = vld [vmem:[#allocation2 + $0x48] sm:$0xff]
    %v1971 = vld [vmem:[#allocation2 + $0x50] sm:$0xf]
    %v1972 = vld [vmem:[#allocation2 + $0x54] sm:$0xff]
    %v1973 = vld [vmem:[#allocation2 + $0x5c] sm:$0xf]
    %v1974 = vld [vmem:[#allocation2 + $0x60] sm:$0xff]
    %v1975 = vld [vmem:[#allocation2 + $0x68] sm:$0xf]
    %v1976 = vld [vmem:[#allocation2 + $0x6c] sm:$0xff]
    %v1977 = vld [vmem:[#allocation2 + $0x74] sm:$0xf]
    %v1978 = vld [vmem:[#allocation2 + $0x78] sm:$0xff]
    %v1979 = vld [vmem:[#allocation2 + $0x80] sm:$0xf]
    %v1980 = vld [vmem:[#allocation2 + $0x84] sm:$0xff]
    %v1981 = vld [vmem:[#allocation2 + $0x8c] sm:$0xf]
    %v1982 = vld [vmem:[#allocation2 + $0x90] sm:$0xff]
    %v1983 = vld [vmem:[#allocation2 + $0x98] sm:$0xf]
    %v1984 = vld [vmem:[#allocation2 + $0x9c] sm:$0xff]
    %v1985 = vld [vmem:[#allocation2 + $0xa4] sm:$0xf]
    %v1986 = vld [vmem:[#allocation2 + $0xa8] sm:$0xff]
    %v1987 = vld [vmem:[#allocation2 + $0xb0] sm:$0xf]
    %v1988 = vld [vmem:[#allocation2 + $0xb4] sm:$0xff]
    %v1989 = vld [vmem:[#allocation2 + $0xbc] sm:$0xf]
    %v2022 = vunpack.c.l.b16 %v1958
    %v2023 = vunpack.c.h.b16 %v1958
    %v2024 = vunpack.c.l.b16 %v1959
    %v2025 = vunpack.c.l.b16 %v1960
    %v2026 = vunpack.c.h.b16 %v1960
    %v2027 = vunpack.c.l.b16 %v1961
    %v2028 = vunpack.c.l.b16 %v1962
    %v2029 = vunpack.c.h.b16 %v1962
    %v2030 = vunpack.c.l.b16 %v1963
    %v2031 = vunpack.c.l.b16 %v1964
    %v2032 = vunpack.c.h.b16 %v1964
    %v2033 = vunpack.c.l.b16 %v1965
    %v2034 = vunpack.c.l.b16 %v1966
    %v2035 = vunpack.c.h.b16 %v1966
    %v2036 = vunpack.c.l.b16 %v1967
    %v2037 = vunpack.c.l.b16 %v1968
    %v2038 = vunpack.c.h.b16 %v1968
    %v2039 = vunpack.c.l.b16 %v1969
    %v2040 = vunpack.c.l.b16 %v1970
    %v2041 = vunpack.c.h.b16 %v1970
    %v2042 = vunpack.c.l.b16 %v1971
    %v2043 = vunpack.c.l.b16 %v1972
    %v2044 = vunpack.c.h.b16 %v1972
    %v2045 = vunpack.c.l.b16 %v1973
    %v2046 = vunpack.c.l.b16 %v1974
    %v2047 = vunpack.c.h.b16 %v1974
    %v2048 = vunpack.c.l.b16 %v1975
    %v2049 = vunpack.c.l.b16 %v1976
    %v2050 = vunpack.c.h.b16 %v1976
    %v2051 = vunpack.c.l.b16 %v1977
    %v2052 = vunpack.c.l.b16 %v1978
    %v2053 = vunpack.c.h.b16 %v1978
    %v2054 = vunpack.c.l.b16 %v1979
    %v2055 = vunpack.c.l.b16 %v1980
    %v2056 = vunpack.c.h.b16 %v1980
    %v2057 = vunpack.c.l.b16 %v1981
    %v2058 = vunpack.c.l.b16 %v1982
    %v2059 = vunpack.c.h.b16 %v1982
    %v2060 = vunpack.c.l.b16 %v1983
    %v2061 = vunpack.c.l.b16 %v1984
    %v2062 = vunpack.c.h.b16 %v1984
    %v2063 = vunpack.c.l.b16 %v1985
    %v2064 = vunpack.c.l.b16 %v1986
    %v2065 = vunpack.c.h.b16 %v1986
    %v2066 = vunpack.c.l.b16 %v1987
    %v2067 = vunpack.c.l.b16 %v1988
    %v2068 = vunpack.c.h.b16 %v1988
    %v2069 = vunpack.c.l.b16 %v1989
    %v2070 = vpack.c.b16 %v2025, %v2022
    %v2071 = vpack.c.b16 %v2026, %v2023
    %v2072 = vpack.c.b16 %v2027, %v2024
    %v2073 = vpack.c.b16 %v2031, %v2028
    %v2074 = vpack.c.b16 %v2032, %v2029
    %v2075 = vpack.c.b16 %v2033, %v2030
    %v2076 = vpack.c.b16 %v2037, %v2034
    %v2077 = vpack.c.b16 %v2038, %v2035
    %v2078 = vpack.c.b16 %v2039, %v2036
    %v2079 = vpack.c.b16 %v2043, %v2040
    %v2080 = vpack.c.b16 %v2044, %v2041
    %v2081 = vpack.c.b16 %v2045, %v2042
    %v2082 = vpack.c.b16 %v2049, %v2046
    %v2083 = vpack.c.b16 %v2050, %v2047
    %v2084 = vpack.c.b16 %v2051, %v2048
    %v2085 = vpack.c.b16 %v2055, %v2052
    %v2086 = vpack.c.b16 %v2056, %v2053
    %v2087 = vpack.c.b16 %v2057, %v2054
    %v2088 = vpack.c.b16 %v2061, %v2058
    %v2089 = vpack.c.b16 %v2062, %v2059
    %v2090 = vpack.c.b16 %v2063, %v2060
    %v2091 = vpack.c.b16 %v2067, %v2064
    %v2092 = vpack.c.b16 %v2068, %v2065
    %v2093 = vpack.c.b16 %v2069, %v2066
    %2118 = vmatprep.subr.bf16.mxu0 %v2092
    %2119 = vmatpush1.bf16.msra.mxu0 %v2091
    %2120 = vmatprep.subr.bf16.mxu0 %v2089
    %2121 = vmatpush1.bf16.msra.mxu0 %v2088
    %2122 = vmatprep.subr.bf16.mxu0 %v2086
    %2123 = vmatpush1.bf16.msra.mxu0 %v2085
    %2124 = vmatprep.subr.bf16.mxu0 %v2083
    %2125 = vmatpush1.bf16.msra.mxu0 %v2082
    %2126 = vmatprep.subr.bf16.mxu0 %v2080
    %2127 = vmatpush1.bf16.msra.mxu0 %v2079
    %2128 = vmatprep.subr.bf16.mxu0 %v2077
    %2129 = vmatpush1.bf16.msra.mxu0 %v2076
    %2130 = vmatprep.subr.bf16.mxu0 %v2074
    %2131 = vmatpush1.bf16.msra.mxu0 %v2073
    %2132 = vmatprep.subr.bf16.mxu0 %v2071
    %2133 = vmatpush1.bf16.msra.mxu0 %v2070
    %2134 = vmatprep.subr.bf16.mxu0 0
    %2135 = vmatpush2.bf16.msra.mxu0 0
    %2136 = vmatprep.subr.bf16.mxu0 0
    %2137 = vmatpush2.bf16.msra.mxu0 0
    %2138 = vmatprep.subr.bf16.mxu0 0
    %2139 = vmatpush2.bf16.msra.mxu0 0
    %2140 = vmatprep.subr.bf16.mxu0 0
    %2141 = vmatpush2.bf16.msra.mxu0 0
    %2142 = vmatprep.subr.bf16.mxu0 0
    %2143 = vmatpush2.bf16.msra.mxu0 0
    %2144 = vmatprep.subr.bf16.mxu0 0
    %2145 = vmatpush2.bf16.msra.mxu0 0
    %2146 = vmatprep.subr.bf16.mxu0 0
    %2147 = vmatpush2.bf16.msra.mxu0 0
    %2148 = vmatprep.subr.bf16.mxu0 0
    %2149 = vmatpush2.bf16.msra.mxu0 0
    %2150 = vmatprep.mubr.bf16.mxu0 0
    %2151 = vmatmul.mubr.bf16.gmra.mxu0 %v1956
    %v2152 = vpop.f32.mrf.mxu0
    %v2153 = vadd.f32 0.0, %v2152
    %v2154 = vpop.f32.mrf.mxu0
    %v2155 = vadd.f32 0.0, %v2154
    %v2156 = vpop.f32.mrf.mxu0
    %v2157 = vpop.f32.mrf.mxu0
    %2158 = vdwg.mxu0
    %2159 = vmatprep.subr.bf16.mxu0 0
    %2160 = vmatpush1.bf16.msra.mxu0 %v2093
    %2161 = vmatprep.subr.bf16.mxu0 0
    %2162 = vmatpush1.bf16.msra.mxu0 %v2090
    %2163 = vmatprep.subr.bf16.mxu0 0
    %2164 = vmatpush1.bf16.msra.mxu0 %v2087
    %2165 = vmatprep.subr.bf16.mxu0 0
    %2166 = vmatpush1.bf16.msra.mxu0 %v2084
    %2167 = vmatprep.subr.bf16.mxu0 0
    %2168 = vmatpush1.bf16.msra.mxu0 %v2081
    %2169 = vmatprep.subr.bf16.mxu0 0
    %2170 = vmatpush1.bf16.msra.mxu0 %v2078
    %2171 = vmatprep.subr.bf16.mxu0 0
    %2172 = vmatpush1.bf16.msra.mxu0 %v2075
    %2173 = vmatprep.subr.bf16.mxu0 0
    %2174 = vmatpush1.bf16.msra.mxu0 %v2072
    %2175 = vmatprep.subr.bf16.mxu0 0
    %2176 = vmatpush2.bf16.msra.mxu0 0
    %2177 = vmatprep.subr.bf16.mxu0 0
    %2178 = vmatpush2.bf16.msra.mxu0 0
    %2179 = vmatprep.subr.bf16.mxu0 0
    %2180 = vmatpush2.bf16.msra.mxu0 0
    %2181 = vmatprep.subr.bf16.mxu0 0
    %2182 = vmatpush2.bf16.msra.mxu0 0
    %2183 = vmatprep.subr.bf16.mxu0 0
    %2184 = vmatpush2.bf16.msra.mxu0 0
    %2185 = vmatprep.subr.bf16.mxu0 0
    %2186 = vmatpush2.bf16.msra.mxu0 0
    %2187 = vmatprep.subr.bf16.mxu0 0
    %2188 = vmatpush2.bf16.msra.mxu0 0
    %2189 = vmatprep.subr.bf16.mxu0 0
    %2190 = vmatpush2.bf16.msra.mxu0 0
    %2191 = vmatprep.mubr.bf16.mxu0 0
    %2192 = vmatmul.mubr.bf16.gmra.mxu0 %v1956
    %v2193 = vpop.f32.mrf.mxu0
    %v2194 = vadd.f32 0.0, %v2193
    %v2195 = vpop.f32.mrf.mxu0
    %v2196 = vpop.f32.mrf.mxu0
    %v2197 = vpop.f32.mrf.mxu0
    %2198 = vdwg.mxu0
    %v2202 = vcombine.low %v2153, %v2155
    %v2204 = vunpack.c.l.s4 1966171168
    %v2205 = vunpack.c.0.s8 %v2204
    %v2206 = vlaneseq
    %v2207 = vshrl.u32 %v2206, 7
    %v2208 = vsub.s32 %v2205, %v2207
    %v2209 = vrot.slane %v2202, %v2208
    %v2211 = vunpack.c.l.s4 1966171168
    %v2212 = vunpack.c.0.s8 %v2211
    %v2213 = vlaneseq
    %v2214 = vshrl.u32 %v2213, 7
    %v2215 = vsub.s32 %v2212, %v2214
    %v2216 = vrot.slane %v2194, %v2215
    %v2217 = vcombine.low %v2209, %v2216
    %v2219 = vunpack.c.l.s4 1966171168
    %v2220 = vunpack.c.0.s8 %v2219
    %v2221 = vlaneseq
    %v2222 = vshrl.u32 %v2221, 7
    %v2223 = vsub.s32 %v2220, %v2222
    %v2224 = vrot.slane %v2217, %v2223
    %v2226 = vlaneseq
    %vm2227 = vcmp.ge.s32.totalorder %v2226, 0
    %vm2228 = vcmp.lt.s32.totalorder %v2226, 384
    %vm2229 = vmand %vm2227, %vm2228
    %2230 = vst.msk [vmem:[#allocation11] sm:$0x7] %vm2229, %v2224
    %v2231 = vpack.c.bf16 %v1944, %v1942
    %v2232 = vpack.c.bf16 %v1948, %v1946
    %v2233 = vld [vmem:[#allocation3] sm:$0xff]
    %v2234 = vld [vmem:[#allocation3 + $0x8] sm:$0xf]
    %v2235 = vld [vmem:[#allocation3 + $0xc] sm:$0xff]
    %v2236 = vld [vmem:[#allocation3 + $0x14] sm:$0xf]
    %v2237 = vld [vmem:[#allocation3 + $0x18] sm:$0xff]
    %v2238 = vld [vmem:[#allocation3 + $0x20] sm:$0xf]
    %v2239 = vld [vmem:[#allocation3 + $0x24] sm:$0xff]
    %v2240 = vld [vmem:[#allocation3 + $0x2c] sm:$0xf]
    %v2241 = vld [vmem:[#allocation3 + $0x30] sm:$0xff]
    %v2242 = vld [vmem:[#allocation3 + $0x38] sm:$0xf]
    %v2243 = vld [vmem:[#allocation3 + $0x3c] sm:$0xff]
    %v2244 = vld [vmem:[#allocation3 + $0x44] sm:$0xf]
    %v2245 = vld [vmem:[#allocation3 + $0x48] sm:$0xff]
    %v2246 = vld [vmem:[#allocation3 + $0x50] sm:$0xf]
    %v2247 = vld [vmem:[#allocation3 + $0x54] sm:$0xff]
    %v2248 = vld [vmem:[#allocation3 + $0x5c] sm:$0xf]
    %v2249 = vld [vmem:[#allocation3 + $0x60] sm:$0xff]
    %v2250 = vld [vmem:[#allocation3 + $0x68] sm:$0xf]
    %v2251 = vld [vmem:[#allocation3 + $0x6c] sm:$0xff]
    %v2252 = vld [vmem:[#allocation3 + $0x74] sm:$0xf]
    %v2253 = vld [vmem:[#allocation3 + $0x78] sm:$0xff]
    %v2254 = vld [vmem:[#allocation3 + $0x80] sm:$0xf]
    %v2255 = vld [vmem:[#allocation3 + $0x84] sm:$0xff]
    %v2256 = vld [vmem:[#allocation3 + $0x8c] sm:$0xf]
    %v2257 = vld [vmem:[#allocation3 + $0x90] sm:$0xff]
    %v2258 = vld [vmem:[#allocation3 + $0x98] sm:$0xf]
    %v2259 = vld [vmem:[#allocation3 + $0x9c] sm:$0xff]
    %v2260 = vld [vmem:[#allocation3 + $0xa4] sm:$0xf]
    %v2261 = vld [vmem:[#allocation3 + $0xa8] sm:$0xff]
    %v2262 = vld [vmem:[#allocation3 + $0xb0] sm:$0xf]
    %v2263 = vld [vmem:[#allocation3 + $0xb4] sm:$0xff]
    %v2264 = vld [vmem:[#allocation3 + $0xbc] sm:$0xf]
    %v2297 = vunpack.c.l.b16 %v2233
    %v2298 = vunpack.c.h.b16 %v2233
    %v2299 = vunpack.c.l.b16 %v2234
    %v2300 = vunpack.c.l.b16 %v2235
    %v2301 = vunpack.c.h.b16 %v2235
    %v2302 = vunpack.c.l.b16 %v2236
    %v2303 = vunpack.c.l.b16 %v2237
    %v2304 = vunpack.c.h.b16 %v2237
    %v2305 = vunpack.c.l.b16 %v2238
    %v2306 = vunpack.c.l.b16 %v2239
    %v2307 = vunpack.c.h.b16 %v2239
    %v2308 = vunpack.c.l.b16 %v2240
    %v2309 = vunpack.c.l.b16 %v2241
    %v2310 = vunpack.c.h.b16 %v2241
    %v2311 = vunpack.c.l.b16 %v2242
    %v2312 = vunpack.c.l.b16 %v2243
    %v2313 = vunpack.c.h.b16 %v2243
    %v2314 = vunpack.c.l.b16 %v2244
    %v2315 = vunpack.c.l.b16 %v2245
    %v2316 = vunpack.c.h.b16 %v2245
    %v2317 = vunpack.c.l.b16 %v2246
    %v2318 = vunpack.c.l.b16 %v2247
    %v2319 = vunpack.c.h.b16 %v2247
    %v2320 = vunpack.c.l.b16 %v2248
    %v2321 = vunpack.c.l.b16 %v2249
    %v2322 = vunpack.c.h.b16 %v2249
    %v2323 = vunpack.c.l.b16 %v2250
    %v2324 = vunpack.c.l.b16 %v2251
    %v2325 = vunpack.c.h.b16 %v2251
    %v2326 = vunpack.c.l.b16 %v2252
    %v2327 = vunpack.c.l.b16 %v2253
    %v2328 = vunpack.c.h.b16 %v2253
    %v2329 = vunpack.c.l.b16 %v2254
    %v2330 = vunpack.c.l.b16 %v2255
    %v2331 = vunpack.c.h.b16 %v2255
    %v2332 = vunpack.c.l.b16 %v2256
    %v2333 = vunpack.c.l.b16 %v2257
    %v2334 = vunpack.c.h.b16 %v2257
    %v2335 = vunpack.c.l.b16 %v2258
    %v2336 = vunpack.c.l.b16 %v2259
    %v2337 = vunpack.c.h.b16 %v2259
    %v2338 = vunpack.c.l.b16 %v2260
    %v2339 = vunpack.c.l.b16 %v2261
    %v2340 = vunpack.c.h.b16 %v2261
    %v2341 = vunpack.c.l.b16 %v2262
    %v2342 = vunpack.c.l.b16 %v2263
    %v2343 = vunpack.c.h.b16 %v2263
    %v2344 = vunpack.c.l.b16 %v2264
    %v2345 = vpack.c.b16 %v2300, %v2297
    %v2346 = vpack.c.b16 %v2301, %v2298
    %v2347 = vpack.c.b16 %v2302, %v2299
    %v2348 = vpack.c.b16 %v2306, %v2303
    %v2349 = vpack.c.b16 %v2307, %v2304
    %v2350 = vpack.c.b16 %v2308, %v2305
    %v2351 = vpack.c.b16 %v2312, %v2309
    %v2352 = vpack.c.b16 %v2313, %v2310
    %v2353 = vpack.c.b16 %v2314, %v2311
    %v2354 = vpack.c.b16 %v2318, %v2315
    %v2355 = vpack.c.b16 %v2319, %v2316
    %v2356 = vpack.c.b16 %v2320, %v2317
    %v2357 = vpack.c.b16 %v2324, %v2321
    %v2358 = vpack.c.b16 %v2325, %v2322
    %v2359 = vpack.c.b16 %v2326, %v2323
    %v2360 = vpack.c.b16 %v2330, %v2327
    %v2361 = vpack.c.b16 %v2331, %v2328
    %v2362 = vpack.c.b16 %v2332, %v2329
    %v2363 = vpack.c.b16 %v2336, %v2333
    %v2364 = vpack.c.b16 %v2337, %v2334
    %v2365 = vpack.c.b16 %v2338, %v2335
    %v2366 = vpack.c.b16 %v2342, %v2339
    %v2367 = vpack.c.b16 %v2343, %v2340
    %v2368 = vpack.c.b16 %v2344, %v2341
    %2393 = vmatprep.subr.bf16.mxu0 %v2367
    %2394 = vmatpush1.bf16.msra.mxu0 %v2366
    %2395 = vmatprep.subr.bf16.mxu0 %v2364
    %2396 = vmatpush1.bf16.msra.mxu0 %v2363
    %2397 = vmatprep.subr.bf16.mxu0 %v2361
    %2398 = vmatpush1.bf16.msra.mxu0 %v2360
    %2399 = vmatprep.subr.bf16.mxu0 %v2358
    %2400 = vmatpush1.bf16.msra.mxu0 %v2357
    %2401 = vmatprep.subr.bf16.mxu0 %v2355
    %2402 = vmatpush1.bf16.msra.mxu0 %v2354
    %2403 = vmatprep.subr.bf16.mxu0 %v2352
    %2404 = vmatpush1.bf16.msra.mxu0 %v2351
    %2405 = vmatprep.subr.bf16.mxu0 %v2349
    %2406 = vmatpush1.bf16.msra.mxu0 %v2348
    %2407 = vmatprep.subr.bf16.mxu0 %v2346
    %2408 = vmatpush1.bf16.msra.mxu0 %v2345
    %2409 = vmatprep.subr.bf16.mxu0 0
    %2410 = vmatpush2.bf16.msra.mxu0 0
    %2411 = vmatprep.subr.bf16.mxu0 0
    %2412 = vmatpush2.bf16.msra.mxu0 0
    %2413 = vmatprep.subr.bf16.mxu0 0
    %2414 = vmatpush2.bf16.msra.mxu0 0
    %2415 = vmatprep.subr.bf16.mxu0 0
    %2416 = vmatpush2.bf16.msra.mxu0 0
    %2417 = vmatprep.subr.bf16.mxu0 0
    %2418 = vmatpush2.bf16.msra.mxu0 0
    %2419 = vmatprep.subr.bf16.mxu0 0
    %2420 = vmatpush2.bf16.msra.mxu0 0
    %2421 = vmatprep.subr.bf16.mxu0 0
    %2422 = vmatpush2.bf16.msra.mxu0 0
    %2423 = vmatprep.subr.bf16.mxu0 0
    %2424 = vmatpush2.bf16.msra.mxu0 0
    %2425 = vmatprep.mubr.bf16.mxu0 0
    %2426 = vmatmul.mubr.bf16.gmra.mxu0 %v2231
    %v2427 = vpop.f32.mrf.mxu0
    %v2428 = vadd.f32 0.0, %v2427
    %v2429 = vpop.f32.mrf.mxu0
    %v2430 = vadd.f32 0.0, %v2429
    %v2431 = vpop.f32.mrf.mxu0
    %v2432 = vadd.f32 0.0, %v2431
    %v2433 = vpop.f32.mrf.mxu0
    %v2434 = vadd.f32 0.0, %v2433
    %2435 = vmatprep.mubr.bf16.mxu0 0
    %2436 = vmatmul.mubr.bf16.gmra.mxu0 %v2232
    %v2437 = vpop.f32.mrf.mxu0
    %v2438 = vadd.f32 0.0, %v2437
    %v2439 = vpop.f32.mrf.mxu0
    %v2440 = vadd.f32 0.0, %v2439
    %v2441 = vpop.f32.mrf.mxu0
    %v2442 = vadd.f32 0.0, %v2441
    %v2443 = vpop.f32.mrf.mxu0
    %v2444 = vadd.f32 0.0, %v2443
    %2445 = vdwg.mxu0
    %2446 = vmatprep.subr.bf16.mxu0 0
    %2447 = vmatpush1.bf16.msra.mxu0 %v2368
    %2448 = vmatprep.subr.bf16.mxu0 0
    %2449 = vmatpush1.bf16.msra.mxu0 %v2365
    %2450 = vmatprep.subr.bf16.mxu0 0
    %2451 = vmatpush1.bf16.msra.mxu0 %v2362
    %2452 = vmatprep.subr.bf16.mxu0 0
    %2453 = vmatpush1.bf16.msra.mxu0 %v2359
    %2454 = vmatprep.subr.bf16.mxu0 0
    %2455 = vmatpush1.bf16.msra.mxu0 %v2356
    %2456 = vmatprep.subr.bf16.mxu0 0
    %2457 = vmatpush1.bf16.msra.mxu0 %v2353
    %2458 = vmatprep.subr.bf16.mxu0 0
    %2459 = vmatpush1.bf16.msra.mxu0 %v2350
    %2460 = vmatprep.subr.bf16.mxu0 0
    %2461 = vmatpush1.bf16.msra.mxu0 %v2347
    %2462 = vmatprep.subr.bf16.mxu0 0
    %2463 = vmatpush2.bf16.msra.mxu0 0
    %2464 = vmatprep.subr.bf16.mxu0 0
    %2465 = vmatpush2.bf16.msra.mxu0 0
    %2466 = vmatprep.subr.bf16.mxu0 0
    %2467 = vmatpush2.bf16.msra.mxu0 0
    %2468 = vmatprep.subr.bf16.mxu0 0
    %2469 = vmatpush2.bf16.msra.mxu0 0
    %2470 = vmatprep.subr.bf16.mxu0 0
    %2471 = vmatpush2.bf16.msra.mxu0 0
    %2472 = vmatprep.subr.bf16.mxu0 0
    %2473 = vmatpush2.bf16.msra.mxu0 0
    %2474 = vmatprep.subr.bf16.mxu0 0
    %2475 = vmatpush2.bf16.msra.mxu0 0
    %2476 = vmatprep.subr.bf16.mxu0 0
    %2477 = vmatpush2.bf16.msra.mxu0 0
    %2478 = vmatprep.mubr.bf16.mxu0 0
    %2479 = vmatmul.mubr.bf16.gmra.mxu0 %v2231
    %v2480 = vpop.f32.mrf.mxu0
    %v2481 = vadd.f32 0.0, %v2480
    %v2482 = vpop.f32.mrf.mxu0
    %v2483 = vpop.f32.mrf.mxu0
    %v2484 = vadd.f32 0.0, %v2483
    %v2485 = vpop.f32.mrf.mxu0
    %2486 = vmatprep.mubr.bf16.mxu0 0
    %2487 = vmatmul.mubr.bf16.gmra.mxu0 %v2232
    %v2488 = vpop.f32.mrf.mxu0
    %v2489 = vadd.f32 0.0, %v2488
    %v2490 = vpop.f32.mrf.mxu0
    %v2491 = vpop.f32.mrf.mxu0
    %v2492 = vadd.f32 0.0, %v2491
    %v2493 = vpop.f32.mrf.mxu0
    %2494 = vdwg.mxu0
    %2495 = vst [vmem:[#allocation4] sm:$0xff] %v2428
    %2496 = vst [vmem:[#allocation4 + $0x8] sm:$0xff] %v2430
    %2497 = vst [vmem:[#allocation4 + $0x10] sm:$0xff] %v2481
    %2498 = vst [vmem:[#allocation4 + $0x30] sm:$0xff] %v2432
    %2499 = vst [vmem:[#allocation4 + $0x38] sm:$0xff] %v2434
    %2500 = vst [vmem:[#allocation4 + $0x40] sm:$0xff] %v2484
    %2501 = vst [vmem:[#allocation4 + $0x60] sm:$0xff] %v2438
    %2502 = vst [vmem:[#allocation4 + $0x68] sm:$0xff] %v2440
    %2503 = vst [vmem:[#allocation4 + $0x70] sm:$0xff] %v2489
    %2504 = vst [vmem:[#allocation4 + $0x90] sm:$0xff] %v2442
    %2505 = vst [vmem:[#allocation4 + $0x98] sm:$0xff] %v2444
    %2506 = vst [vmem:[#allocation4 + $0xa0] sm:$0xff] %v2492
    %v2507 = vld [vmem:[#allocation2] sm:$0xff]
    %v2508 = vld [vmem:[#allocation2 + $0x8] sm:$0xf]
    %v2509 = vld [vmem:[#allocation2 + $0xc] sm:$0xff]
    %v2510 = vld [vmem:[#allocation2 + $0x14] sm:$0xf]
    %v2511 = vld [vmem:[#allocation2 + $0x18] sm:$0xff]
    %v2512 = vld [vmem:[#allocation2 + $0x20] sm:$0xf]
    %v2513 = vld [vmem:[#allocation2 + $0x24] sm:$0xff]
    %v2514 = vld [vmem:[#allocation2 + $0x2c] sm:$0xf]
    %v2515 = vld [vmem:[#allocation2 + $0x30] sm:$0xff]
    %v2516 = vld [vmem:[#allocation2 + $0x38] sm:$0xf]
    %v2517 = vld [vmem:[#allocation2 + $0x3c] sm:$0xff]
    %v2518 = vld [vmem:[#allocation2 + $0x44] sm:$0xf]
    %v2519 = vld [vmem:[#allocation2 + $0x48] sm:$0xff]
    %v2520 = vld [vmem:[#allocation2 + $0x50] sm:$0xf]
    %v2521 = vld [vmem:[#allocation2 + $0x54] sm:$0xff]
    %v2522 = vld [vmem:[#allocation2 + $0x5c] sm:$0xf]
    %v2523 = vld [vmem:[#allocation2 + $0x60] sm:$0xff]
    %v2524 = vld [vmem:[#allocation2 + $0x68] sm:$0xf]
    %v2525 = vld [vmem:[#allocation2 + $0x6c] sm:$0xff]
    %v2526 = vld [vmem:[#allocation2 + $0x74] sm:$0xf]
    %v2527 = vld [vmem:[#allocation2 + $0x78] sm:$0xff]
    %v2528 = vld [vmem:[#allocation2 + $0x80] sm:$0xf]
    %v2529 = vld [vmem:[#allocation2 + $0x84] sm:$0xff]
    %v2530 = vld [vmem:[#allocation2 + $0x8c] sm:$0xf]
    %v2531 = vld [vmem:[#allocation2 + $0x90] sm:$0xff]
    %v2532 = vld [vmem:[#allocation2 + $0x98] sm:$0xf]
    %v2533 = vld [vmem:[#allocation2 + $0x9c] sm:$0xff]
    %v2534 = vld [vmem:[#allocation2 + $0xa4] sm:$0xf]
    %v2535 = vld [vmem:[#allocation2 + $0xa8] sm:$0xff]
    %v2536 = vld [vmem:[#allocation2 + $0xb0] sm:$0xf]
    %v2537 = vld [vmem:[#allocation2 + $0xb4] sm:$0xff]
    %v2538 = vld [vmem:[#allocation2 + $0xbc] sm:$0xf]
    %v2571 = vunpack.c.l.b16 %v2507
    %v2572 = vunpack.c.h.b16 %v2507
    %v2573 = vunpack.c.l.b16 %v2508
    %v2574 = vunpack.c.l.b16 %v2509
    %v2575 = vunpack.c.h.b16 %v2509
    %v2576 = vunpack.c.l.b16 %v2510
    %v2577 = vunpack.c.l.b16 %v2511
    %v2578 = vunpack.c.h.b16 %v2511
    %v2579 = vunpack.c.l.b16 %v2512
    %v2580 = vunpack.c.l.b16 %v2513
    %v2581 = vunpack.c.h.b16 %v2513
    %v2582 = vunpack.c.l.b16 %v2514
    %v2583 = vunpack.c.l.b16 %v2515
    %v2584 = vunpack.c.h.b16 %v2515
    %v2585 = vunpack.c.l.b16 %v2516
    %v2586 = vunpack.c.l.b16 %v2517
    %v2587 = vunpack.c.h.b16 %v2517
    %v2588 = vunpack.c.l.b16 %v2518
    %v2589 = vunpack.c.l.b16 %v2519
    %v2590 = vunpack.c.h.b16 %v2519
    %v2591 = vunpack.c.l.b16 %v2520
    %v2592 = vunpack.c.l.b16 %v2521
    %v2593 = vunpack.c.h.b16 %v2521
    %v2594 = vunpack.c.l.b16 %v2522
    %v2595 = vunpack.c.l.b16 %v2523
    %v2596 = vunpack.c.h.b16 %v2523
    %v2597 = vunpack.c.l.b16 %v2524
    %v2598 = vunpack.c.l.b16 %v2525
    %v2599 = vunpack.c.h.b16 %v2525
    %v2600 = vunpack.c.l.b16 %v2526
    %v2601 = vunpack.c.l.b16 %v2527
    %v2602 = vunpack.c.h.b16 %v2527
    %v2603 = vunpack.c.l.b16 %v2528
    %v2604 = vunpack.c.l.b16 %v2529
    %v2605 = vunpack.c.h.b16 %v2529
    %v2606 = vunpack.c.l.b16 %v2530
    %v2607 = vunpack.c.l.b16 %v2531
    %v2608 = vunpack.c.h.b16 %v2531
    %v2609 = vunpack.c.l.b16 %v2532
    %v2610 = vunpack.c.l.b16 %v2533
    %v2611 = vunpack.c.h.b16 %v2533
    %v2612 = vunpack.c.l.b16 %v2534
    %v2613 = vunpack.c.l.b16 %v2535
    %v2614 = vunpack.c.h.b16 %v2535
    %v2615 = vunpack.c.l.b16 %v2536
    %v2616 = vunpack.c.l.b16 %v2537
    %v2617 = vunpack.c.h.b16 %v2537
    %v2618 = vunpack.c.l.b16 %v2538
    %v2619 = vpack.c.b16 %v2574, %v2571
    %v2620 = vpack.c.b16 %v2575, %v2572
    %v2621 = vpack.c.b16 %v2576, %v2573
    %v2622 = vpack.c.b16 %v2580, %v2577
    %v2623 = vpack.c.b16 %v2581, %v2578
    %v2624 = vpack.c.b16 %v2582, %v2579
    %v2625 = vpack.c.b16 %v2586, %v2583
    %v2626 = vpack.c.b16 %v2587, %v2584
    %v2627 = vpack.c.b16 %v2588, %v2585
    %v2628 = vpack.c.b16 %v2592, %v2589
    %v2629 = vpack.c.b16 %v2593, %v2590
    %v2630 = vpack.c.b16 %v2594, %v2591
    %v2631 = vpack.c.b16 %v2598, %v2595
    %v2632 = vpack.c.b16 %v2599, %v2596
    %v2633 = vpack.c.b16 %v2600, %v2597
    %v2634 = vpack.c.b16 %v2604, %v2601
    %v2635 = vpack.c.b16 %v2605, %v2602
    %v2636 = vpack.c.b16 %v2606, %v2603
    %v2637 = vpack.c.b16 %v2610, %v2607
    %v2638 = vpack.c.b16 %v2611, %v2608
    %v2639 = vpack.c.b16 %v2612, %v2609
    %v2640 = vpack.c.b16 %v2616, %v2613
    %v2641 = vpack.c.b16 %v2617, %v2614
    %v2642 = vpack.c.b16 %v2618, %v2615
    %2667 = vmatprep.subr.bf16.mxu0 %v2641
    %2668 = vmatpush1.bf16.msra.mxu0 %v2640
    %2669 = vmatprep.subr.bf16.mxu0 %v2638
    %2670 = vmatpush1.bf16.msra.mxu0 %v2637
    %2671 = vmatprep.subr.bf16.mxu0 %v2635
    %2672 = vmatpush1.bf16.msra.mxu0 %v2634
    %2673 = vmatprep.subr.bf16.mxu0 %v2632
    %2674 = vmatpush1.bf16.msra.mxu0 %v2631
    %2675 = vmatprep.subr.bf16.mxu0 %v2629
    %2676 = vmatpush1.bf16.msra.mxu0 %v2628
    %2677 = vmatprep.subr.bf16.mxu0 %v2626
    %2678 = vmatpush1.bf16.msra.mxu0 %v2625
    %2679 = vmatprep.subr.bf16.mxu0 %v2623
    %2680 = vmatpush1.bf16.msra.mxu0 %v2622
    %2681 = vmatprep.subr.bf16.mxu0 %v2620
    %2682 = vmatpush1.bf16.msra.mxu0 %v2619
    %2683 = vmatprep.subr.bf16.mxu0 0
    %2684 = vmatpush2.bf16.msra.mxu0 0
    %2685 = vmatprep.subr.bf16.mxu0 0
    %2686 = vmatpush2.bf16.msra.mxu0 0
    %2687 = vmatprep.subr.bf16.mxu0 0
    %2688 = vmatpush2.bf16.msra.mxu0 0
    %2689 = vmatprep.subr.bf16.mxu0 0
    %2690 = vmatpush2.bf16.msra.mxu0 0
    %2691 = vmatprep.subr.bf16.mxu0 0
    %2692 = vmatpush2.bf16.msra.mxu0 0
    %2693 = vmatprep.subr.bf16.mxu0 0
    %2694 = vmatpush2.bf16.msra.mxu0 0
    %2695 = vmatprep.subr.bf16.mxu0 0
    %2696 = vmatpush2.bf16.msra.mxu0 0
    %2697 = vmatprep.subr.bf16.mxu0 0
    %2698 = vmatpush2.bf16.msra.mxu0 0
    %2699 = vmatprep.mubr.bf16.mxu0 0
    %2700 = vmatmul.mubr.bf16.gmra.mxu0 %v1957
    %v2701 = vpop.f32.mrf.mxu0
    %v2702 = vadd.f32 0.0, %v2701
    %v2703 = vpop.f32.mrf.mxu0
    %v2704 = vadd.f32 0.0, %v2703
    %v2705 = vpop.f32.mrf.mxu0
    %v2706 = vpop.f32.mrf.mxu0
    %2707 = vdwg.mxu0
    %2708 = vmatprep.subr.bf16.mxu0 0
    %2709 = vmatpush1.bf16.msra.mxu0 %v2642
    %2710 = vmatprep.subr.bf16.mxu0 0
    %2711 = vmatpush1.bf16.msra.mxu0 %v2639
    %2712 = vmatprep.subr.bf16.mxu0 0
    %2713 = vmatpush1.bf16.msra.mxu0 %v2636
    %2714 = vmatprep.subr.bf16.mxu0 0
    %2715 = vmatpush1.bf16.msra.mxu0 %v2633
    %2716 = vmatprep.subr.bf16.mxu0 0
    %2717 = vmatpush1.bf16.msra.mxu0 %v2630
    %2718 = vmatprep.subr.bf16.mxu0 0
    %2719 = vmatpush1.bf16.msra.mxu0 %v2627
    %2720 = vmatprep.subr.bf16.mxu0 0
    %2721 = vmatpush1.bf16.msra.mxu0 %v2624
    %2722 = vmatprep.subr.bf16.mxu0 0
    %2723 = vmatpush1.bf16.msra.mxu0 %v2621
    %2724 = vmatprep.subr.bf16.mxu0 0
    %2725 = vmatpush2.bf16.msra.mxu0 0
    %2726 = vmatprep.subr.bf16.mxu0 0
    %2727 = vmatpush2.bf16.msra.mxu0 0
    %2728 = vmatprep.subr.bf16.mxu0 0
    %2729 = vmatpush2.bf16.msra.mxu0 0
    %2730 = vmatprep.subr.bf16.mxu0 0
    %2731 = vmatpush2.bf16.msra.mxu0 0
    %2732 = vmatprep.subr.bf16.mxu0 0
    %2733 = vmatpush2.bf16.msra.mxu0 0
    %2734 = vmatprep.subr.bf16.mxu0 0
    %2735 = vmatpush2.bf16.msra.mxu0 0
    %2736 = vmatprep.subr.bf16.mxu0 0
    %2737 = vmatpush2.bf16.msra.mxu0 0
    %2738 = vmatprep.subr.bf16.mxu0 0
    %2739 = vmatpush2.bf16.msra.mxu0 0
    %2740 = vmatprep.mubr.bf16.mxu0 0
    %2741 = vmatmul.mubr.bf16.gmra.mxu0 %v1957
    %v2742 = vpop.f32.mrf.mxu0
    %v2743 = vadd.f32 0.0, %v2742
    %v2744 = vpop.f32.mrf.mxu0
    %v2745 = vpop.f32.mrf.mxu0
    %v2746 = vpop.f32.mrf.mxu0
    %2747 = vdwg.mxu0
    %v2751 = vcombine.low %v2702, %v2704
    %v2753 = vunpack.c.l.s4 1966171168
    %v2754 = vunpack.c.0.s8 %v2753
    %v2755 = vlaneseq
    %v2756 = vshrl.u32 %v2755, 7
    %v2757 = vsub.s32 %v2754, %v2756
    %v2758 = vrot.slane %v2751, %v2757
    %v2760 = vunpack.c.l.s4 1966171168
    %v2761 = vunpack.c.0.s8 %v2760
    %v2762 = vlaneseq
    %v2763 = vshrl.u32 %v2762, 7
    %v2764 = vsub.s32 %v2761, %v2763
    %v2765 = vrot.slane %v2743, %v2764
    %v2766 = vcombine.low %v2758, %v2765
    %v2768 = vunpack.c.l.s4 1966171168
    %v2769 = vunpack.c.0.s8 %v2768
    %v2770 = vlaneseq
    %v2771 = vshrl.u32 %v2770, 7
    %v2772 = vsub.s32 %v2769, %v2771
    %v2773 = vrot.slane %v2766, %v2772
    %2775 = vst.msk [vmem:[#allocation11 + $0x3] sm:$0x7] %vm2229, %v2773
    %v2776 = vpack.c.bf16 %v1945, %v1943
    %v2777 = vpack.c.bf16 %v1949, %v1947
    %v2778 = vld [vmem:[#allocation3] sm:$0xff]
    %v2779 = vld [vmem:[#allocation3 + $0x8] sm:$0xf]
    %v2780 = vld [vmem:[#allocation3 + $0xc] sm:$0xff]
    %v2781 = vld [vmem:[#allocation3 + $0x14] sm:$0xf]
    %v2782 = vld [vmem:[#allocation3 + $0x18] sm:$0xff]
    %v2783 = vld [vmem:[#allocation3 + $0x20] sm:$0xf]
    %v2784 = vld [vmem:[#allocation3 + $0x24] sm:$0xff]
    %v2785 = vld [vmem:[#allocation3 + $0x2c] sm:$0xf]
    %v2786 = vld [vmem:[#allocation3 + $0x30] sm:$0xff]
    %v2787 = vld [vmem:[#allocation3 + $0x38] sm:$0xf]
    %v2788 = vld [vmem:[#allocation3 + $0x3c] sm:$0xff]
    %v2789 = vld [vmem:[#allocation3 + $0x44] sm:$0xf]
    %v2790 = vld [vmem:[#allocation3 + $0x48] sm:$0xff]
    %v2791 = vld [vmem:[#allocation3 + $0x50] sm:$0xf]
    %v2792 = vld [vmem:[#allocation3 + $0x54] sm:$0xff]
    %v2793 = vld [vmem:[#allocation3 + $0x5c] sm:$0xf]
    %v2794 = vld [vmem:[#allocation3 + $0x60] sm:$0xff]
    %v2795 = vld [vmem:[#allocation3 + $0x68] sm:$0xf]
    %v2796 = vld [vmem:[#allocation3 + $0x6c] sm:$0xff]
    %v2797 = vld [vmem:[#allocation3 + $0x74] sm:$0xf]
    %v2798 = vld [vmem:[#allocation3 + $0x78] sm:$0xff]
    %v2799 = vld [vmem:[#allocation3 + $0x80] sm:$0xf]
    %v2800 = vld [vmem:[#allocation3 + $0x84] sm:$0xff]
    %v2801 = vld [vmem:[#allocation3 + $0x8c] sm:$0xf]
    %v2802 = vld [vmem:[#allocation3 + $0x90] sm:$0xff]
    %v2803 = vld [vmem:[#allocation3 + $0x98] sm:$0xf]
    %v2804 = vld [vmem:[#allocation3 + $0x9c] sm:$0xff]
    %v2805 = vld [vmem:[#allocation3 + $0xa4] sm:$0xf]
    %v2806 = vld [vmem:[#allocation3 + $0xa8] sm:$0xff]
    %v2807 = vld [vmem:[#allocation3 + $0xb0] sm:$0xf]
    %v2808 = vld [vmem:[#allocation3 + $0xb4] sm:$0xff]
    %v2809 = vld [vmem:[#allocation3 + $0xbc] sm:$0xf]
    %v2842 = vunpack.c.l.b16 %v2778
    %v2843 = vunpack.c.h.b16 %v2778
    %v2844 = vunpack.c.l.b16 %v2779
    %v2845 = vunpack.c.l.b16 %v2780
    %v2846 = vunpack.c.h.b16 %v2780
    %v2847 = vunpack.c.l.b16 %v2781
    %v2848 = vunpack.c.l.b16 %v2782
    %v2849 = vunpack.c.h.b16 %v2782
    %v2850 = vunpack.c.l.b16 %v2783
    %v2851 = vunpack.c.l.b16 %v2784
    %v2852 = vunpack.c.h.b16 %v2784
    %v2853 = vunpack.c.l.b16 %v2785
    %v2854 = vunpack.c.l.b16 %v2786
    %v2855 = vunpack.c.h.b16 %v2786
    %v2856 = vunpack.c.l.b16 %v2787
    %v2857 = vunpack.c.l.b16 %v2788
    %v2858 = vunpack.c.h.b16 %v2788
    %v2859 = vunpack.c.l.b16 %v2789
    %v2860 = vunpack.c.l.b16 %v2790
    %v2861 = vunpack.c.h.b16 %v2790
    %v2862 = vunpack.c.l.b16 %v2791
    %v2863 = vunpack.c.l.b16 %v2792
    %v2864 = vunpack.c.h.b16 %v2792
    %v2865 = vunpack.c.l.b16 %v2793
    %v2866 = vunpack.c.l.b16 %v2794
    %v2867 = vunpack.c.h.b16 %v2794
    %v2868 = vunpack.c.l.b16 %v2795
    %v2869 = vunpack.c.l.b16 %v2796
    %v2870 = vunpack.c.h.b16 %v2796
    %v2871 = vunpack.c.l.b16 %v2797
    %v2872 = vunpack.c.l.b16 %v2798
    %v2873 = vunpack.c.h.b16 %v2798
    %v2874 = vunpack.c.l.b16 %v2799
    %v2875 = vunpack.c.l.b16 %v2800
    %v2876 = vunpack.c.h.b16 %v2800
    %v2877 = vunpack.c.l.b16 %v2801
    %v2878 = vunpack.c.l.b16 %v2802
    %v2879 = vunpack.c.h.b16 %v2802
    %v2880 = vunpack.c.l.b16 %v2803
    %v2881 = vunpack.c.l.b16 %v2804
    %v2882 = vunpack.c.h.b16 %v2804
    %v2883 = vunpack.c.l.b16 %v2805
    %v2884 = vunpack.c.l.b16 %v2806
    %v2885 = vunpack.c.h.b16 %v2806
    %v2886 = vunpack.c.l.b16 %v2807
    %v2887 = vunpack.c.l.b16 %v2808
    %v2888 = vunpack.c.h.b16 %v2808
    %v2889 = vunpack.c.l.b16 %v2809
    %v2890 = vpack.c.b16 %v2845, %v2842
    %v2891 = vpack.c.b16 %v2846, %v2843
    %v2892 = vpack.c.b16 %v2847, %v2844
    %v2893 = vpack.c.b16 %v2851, %v2848
    %v2894 = vpack.c.b16 %v2852, %v2849
    %v2895 = vpack.c.b16 %v2853, %v2850
    %v2896 = vpack.c.b16 %v2857, %v2854
    %v2897 = vpack.c.b16 %v2858, %v2855
    %v2898 = vpack.c.b16 %v2859, %v2856
    %v2899 = vpack.c.b16 %v2863, %v2860
    %v2900 = vpack.c.b16 %v2864, %v2861
    %v2901 = vpack.c.b16 %v2865, %v2862
    %v2902 = vpack.c.b16 %v2869, %v2866
    %v2903 = vpack.c.b16 %v2870, %v2867
    %v2904 = vpack.c.b16 %v2871, %v2868
    %v2905 = vpack.c.b16 %v2875, %v2872
    %v2906 = vpack.c.b16 %v2876, %v2873
    %v2907 = vpack.c.b16 %v2877, %v2874
    %v2908 = vpack.c.b16 %v2881, %v2878
    %v2909 = vpack.c.b16 %v2882, %v2879
    %v2910 = vpack.c.b16 %v2883, %v2880
    %v2911 = vpack.c.b16 %v2887, %v2884
    %v2912 = vpack.c.b16 %v2888, %v2885
    %v2913 = vpack.c.b16 %v2889, %v2886
    %2938 = vmatprep.subr.bf16.mxu0 %v2912
    %2939 = vmatpush1.bf16.msra.mxu0 %v2911
    %2940 = vmatprep.subr.bf16.mxu0 %v2909
    %2941 = vmatpush1.bf16.msra.mxu0 %v2908
    %2942 = vmatprep.subr.bf16.mxu0 %v2906
    %2943 = vmatpush1.bf16.msra.mxu0 %v2905
    %2944 = vmatprep.subr.bf16.mxu0 %v2903
    %2945 = vmatpush1.bf16.msra.mxu0 %v2902
    %2946 = vmatprep.subr.bf16.mxu0 %v2900
    %2947 = vmatpush1.bf16.msra.mxu0 %v2899
    %2948 = vmatprep.subr.bf16.mxu0 %v2897
    %2949 = vmatpush1.bf16.msra.mxu0 %v2896
    %2950 = vmatprep.subr.bf16.mxu0 %v2894
    %2951 = vmatpush1.bf16.msra.mxu0 %v2893
    %2952 = vmatprep.subr.bf16.mxu0 %v2891
    %2953 = vmatpush1.bf16.msra.mxu0 %v2890
    %2954 = vmatprep.subr.bf16.mxu0 0
    %2955 = vmatpush2.bf16.msra.mxu0 0
    %2956 = vmatprep.subr.bf16.mxu0 0
    %2957 = vmatpush2.bf16.msra.mxu0 0
    %2958 = vmatprep.subr.bf16.mxu0 0
    %2959 = vmatpush2.bf16.msra.mxu0 0
    %2960 = vmatprep.subr.bf16.mxu0 0
    %2961 = vmatpush2.bf16.msra.mxu0 0
    %2962 = vmatprep.subr.bf16.mxu0 0
    %2963 = vmatpush2.bf16.msra.mxu0 0
    %2964 = vmatprep.subr.bf16.mxu0 0
    %2965 = vmatpush2.bf16.msra.mxu0 0
    %2966 = vmatprep.subr.bf16.mxu0 0
    %2967 = vmatpush2.bf16.msra.mxu0 0
    %2968 = vmatprep.subr.bf16.mxu0 0
    %2969 = vmatpush2.bf16.msra.mxu0 0
    %2970 = vmatprep.mubr.bf16.mxu0 0
    %2971 = vmatmul.mubr.bf16.gmra.mxu0 %v2776
    %v2972 = vpop.f32.mrf.mxu0
    %v2973 = vadd.f32 0.0, %v2972
    %v2974 = vpop.f32.mrf.mxu0
    %v2975 = vadd.f32 0.0, %v2974
    %v2976 = vpop.f32.mrf.mxu0
    %v2977 = vadd.f32 0.0, %v2976
    %v2978 = vpop.f32.mrf.mxu0
    %v2979 = vadd.f32 0.0, %v2978
    %2980 = vmatprep.mubr.bf16.mxu0 0
    %2981 = vmatmul.mubr.bf16.gmra.mxu0 %v2777
    %v2982 = vpop.f32.mrf.mxu0
    %v2983 = vadd.f32 0.0, %v2982
    %v2984 = vpop.f32.mrf.mxu0
    %v2985 = vadd.f32 0.0, %v2984
    %v2986 = vpop.f32.mrf.mxu0
    %v2987 = vadd.f32 0.0, %v2986
    %v2988 = vpop.f32.mrf.mxu0
    %v2989 = vadd.f32 0.0, %v2988
    %2990 = vdwg.mxu0
    %2991 = vmatprep.subr.bf16.mxu0 0
    %2992 = vmatpush1.bf16.msra.mxu0 %v2913
    %2993 = vmatprep.subr.bf16.mxu0 0
    %2994 = vmatpush1.bf16.msra.mxu0 %v2910
    %2995 = vmatprep.subr.bf16.mxu0 0
    %2996 = vmatpush1.bf16.msra.mxu0 %v2907
    %2997 = vmatprep.subr.bf16.mxu0 0
    %2998 = vmatpush1.bf16.msra.mxu0 %v2904
    %2999 = vmatprep.subr.bf16.mxu0 0
    %3000 = vmatpush1.bf16.msra.mxu0 %v2901
    %3001 = vmatprep.subr.bf16.mxu0 0
    %3002 = vmatpush1.bf16.msra.mxu0 %v2898
    %3003 = vmatprep.subr.bf16.mxu0 0
    %3004 = vmatpush1.bf16.msra.mxu0 %v2895
    %3005 = vmatprep.subr.bf16.mxu0 0
    %3006 = vmatpush1.bf16.msra.mxu0 %v2892
    %3007 = vmatprep.subr.bf16.mxu0 0
    %3008 = vmatpush2.bf16.msra.mxu0 0
    %3009 = vmatprep.subr.bf16.mxu0 0
    %3010 = vmatpush2.bf16.msra.mxu0 0
    %3011 = vmatprep.subr.bf16.mxu0 0
    %3012 = vmatpush2.bf16.msra.mxu0 0
    %3013 = vmatprep.subr.bf16.mxu0 0
    %3014 = vmatpush2.bf16.msra.mxu0 0
    %3015 = vmatprep.subr.bf16.mxu0 0
    %3016 = vmatpush2.bf16.msra.mxu0 0
    %3017 = vmatprep.subr.bf16.mxu0 0
    %3018 = vmatpush2.bf16.msra.mxu0 0
    %3019 = vmatprep.subr.bf16.mxu0 0
    %3020 = vmatpush2.bf16.msra.mxu0 0
    %3021 = vmatprep.subr.bf16.mxu0 0
    %3022 = vmatpush2.bf16.msra.mxu0 0
    %3023 = vmatprep.mubr.bf16.mxu0 0
    %3024 = vmatmul.mubr.bf16.gmra.mxu0 %v2776
    %v3025 = vpop.f32.mrf.mxu0
    %v3026 = vadd.f32 0.0, %v3025
    %v3027 = vpop.f32.mrf.mxu0
    %v3028 = vpop.f32.mrf.mxu0
    %v3029 = vadd.f32 0.0, %v3028
    %v3030 = vpop.f32.mrf.mxu0
    %3031 = vmatprep.mubr.bf16.mxu0 0
    %3032 = vmatmul.mubr.bf16.gmra.mxu0 %v2777
    %v3033 = vpop.f32.mrf.mxu0
    %v3034 = vadd.f32 0.0, %v3033
    %v3035 = vpop.f32.mrf.mxu0
    %v3036 = vpop.f32.mrf.mxu0
    %v3037 = vadd.f32 0.0, %v3036
    %v3038 = vpop.f32.mrf.mxu0
    %3039 = vdwg.mxu0
    %3040 = vst [vmem:[#allocation4 + $0x18] sm:$0xff] %v2973
    %3041 = vst [vmem:[#allocation4 + $0x20] sm:$0xff] %v2975
    %3042 = vst [vmem:[#allocation4 + $0x28] sm:$0xff] %v3026
    %3043 = vst [vmem:[#allocation4 + $0x48] sm:$0xff] %v2977
    %3044 = vst [vmem:[#allocation4 + $0x50] sm:$0xff] %v2979
    %3045 = vst [vmem:[#allocation4 + $0x58] sm:$0xff] %v3029
    %3046 = vst [vmem:[#allocation4 + $0x78] sm:$0xff] %v2983
    %3047 = vst [vmem:[#allocation4 + $0x80] sm:$0xff] %v2985
    %3048 = vst [vmem:[#allocation4 + $0x88] sm:$0xff] %v3034
    %3049 = vst [vmem:[#allocation4 + $0xa8] sm:$0xff] %v2987
    %3050 = vst [vmem:[#allocation4 + $0xb0] sm:$0xff] %v2989
    %3051 = vst [vmem:[#allocation4 + $0xb8] sm:$0xff] %v3037
    %v3052 = vld [vmem:[#allocation8] sm:$0xff]
    %v3053 = vld [vmem:[#allocation8 + $0x8] sm:$0x1]
    %v3054 = vld [vmem:[#allocation4] sm:$0xff]
    %v3055 = vld [vmem:[#allocation4 + $0x8] sm:$0xff]
    %v3056 = vld [vmem:[#allocation4 + $0x10] sm:$0xff]
    %v3057 = vld [vmem:[#allocation4 + $0x18] sm:$0xff]
    %v3058 = vld [vmem:[#allocation4 + $0x20] sm:$0xff]
    %v3059 = vld [vmem:[#allocation4 + $0x28] sm:$0xff]
    %v3060 = vld [vmem:[#allocation4 + $0x30] sm:$0xff]
    %v3061 = vld [vmem:[#allocation4 + $0x38] sm:$0xff]
    %v3062 = vld [vmem:[#allocation4 + $0x40] sm:$0xff]
    %v3063 = vld [vmem:[#allocation4 + $0x48] sm:$0xff]
    %v3064 = vld [vmem:[#allocation4 + $0x50] sm:$0xff]
    %v3065 = vld [vmem:[#allocation4 + $0x58] sm:$0xff]
    %v3066 = vld [vmem:[#allocation4 + $0x60] sm:$0xff]
    %v3067 = vld [vmem:[#allocation4 + $0x68] sm:$0xff]
    %v3068 = vld [vmem:[#allocation4 + $0x70] sm:$0xff]
    %v3069 = vld [vmem:[#allocation4 + $0x78] sm:$0xff]
    %v3070 = vld [vmem:[#allocation4 + $0x80] sm:$0xff]
    %v3071 = vld [vmem:[#allocation4 + $0x88] sm:$0xff]
    %v3072 = vld [vmem:[#allocation4 + $0x90] sm:$0xff]
    %v3073 = vld [vmem:[#allocation4 + $0x98] sm:$0xff]
    %v3074 = vld [vmem:[#allocation4 + $0xa0] sm:$0xff]
    %v3075 = vld [vmem:[#allocation4 + $0xa8] sm:$0xff]
    %v3076 = vld [vmem:[#allocation4 + $0xb0] sm:$0xff]
    %v3077 = vld [vmem:[#allocation4 + $0xb8] sm:$0xff]
    %v3079 = vsel %vm246, %v3052, 0
    %v3082 = vsel %vm246, %v3053, 0
    %3084 = vmatprep.subr.mxu0 0.0
    %3085 = vmatpush1.msra.mxu0 0.0
    %3086 = vmatprep.subr.mxu0 0.0
    %3087 = vmatpush1.msra.mxu0 0.0
    %3088 = vmatprep.subr.mxu0 0.0
    %3089 = vmatpush1.msra.mxu0 0.0
    %3090 = vmatprep.subr.mxu0 0.0
    %3091 = vmatpush1.msra.mxu0 0.0
    %3092 = vmatprep.subr.mxu0 0.0
    %3093 = vmatpush1.msra.mxu0 0.0
    %3094 = vmatprep.subr.mxu0 0.0
    %3095 = vmatpush1.msra.mxu0 0.0
    %3096 = vmatprep.subr.mxu0 0.0
    %3097 = vmatpush1.msra.mxu0 0.0
    %3098 = vmatprep.subr.mxu0 0.0
    %3099 = vmatpush1.msra.mxu0 0.0
    %3100 = vmatprep.subr.mxu0 0.0
    %3101 = vmatpush1.msra.mxu0 0.0
    %3102 = vmatprep.subr.mxu0 0.0
    %3103 = vmatpush1.msra.mxu0 0.0
    %3104 = vmatprep.subr.mxu0 0.0
    %3105 = vmatpush1.msra.mxu0 0.0
    %3106 = vmatprep.subr.mxu0 0.0
    %3107 = vmatpush1.msra.mxu0 0.0
    %3108 = vmatprep.subr.mxu0 %v3073
    %3109 = vmatpush1.msra.mxu0 %v3072
    %3110 = vmatprep.subr.mxu0 %v3067
    %3111 = vmatpush1.msra.mxu0 %v3066
    %3112 = vmatprep.subr.mxu0 %v3061
    %3113 = vmatpush1.msra.mxu0 %v3060
    %3114 = vmatprep.subr.mxu0 %v3055
    %3115 = vmatpush1.msra.mxu0 %v3054
    %3116 = vmatprep.subr.mxu0 0.0
    %3117 = vmatpush2.msra.mxu0 0.0
    %3118 = vmatprep.subr.mxu0 0.0
    %3119 = vmatpush2.msra.mxu0 0.0
    %3120 = vmatprep.subr.mxu0 0.0
    %3121 = vmatpush2.msra.mxu0 0.0
    %3122 = vmatprep.subr.mxu0 0.0
    %3123 = vmatpush2.msra.mxu0 0.0
    %3124 = vmatprep.subr.mxu0 0.0
    %3125 = vmatpush2.msra.mxu0 0.0
    %3126 = vmatprep.subr.mxu0 0.0
    %3127 = vmatpush2.msra.mxu0 0.0
    %3128 = vmatprep.subr.mxu0 0.0
    %3129 = vmatpush2.msra.mxu0 0.0
    %3130 = vmatprep.subr.mxu0 0.0
    %3131 = vmatpush2.msra.mxu0 0.0
    %3132 = vmatprep.subr.mxu0 0.0
    %3133 = vmatpush2.msra.mxu0 0.0
    %3134 = vmatprep.subr.mxu0 0.0
    %3135 = vmatpush2.msra.mxu0 0.0
    %3136 = vmatprep.subr.mxu0 0.0
    %3137 = vmatpush2.msra.mxu0 0.0
    %3138 = vmatprep.subr.mxu0 0.0
    %3139 = vmatpush2.msra.mxu0 0.0
    %3140 = vmatprep.subr.mxu0 0.0
    %3141 = vmatpush2.msra.mxu0 0.0
    %3142 = vmatprep.subr.mxu0 0.0
    %3143 = vmatpush2.msra.mxu0 0.0
    %3144 = vmatprep.subr.mxu0 0.0
    %3145 = vmatpush2.msra.mxu0 0.0
    %3146 = vmatprep.subr.mxu0 0.0
    %3147 = vmatpush2.msra.mxu0 0.0
    %3148 = vmatprep.mubr.f32.mxu0 0.0
    %3149 = vmatmul.mubr.f32.gmra.mxu0 %v3079
    %v3150 = vpop.f32.mrf.mxu0
    %v3151 = vadd.f32 0.0, %v3150
    %v3152 = vpop.f32.mrf.mxu0
    %v3153 = vadd.f32 0.0, %v3152
    %3154 = vmatprep.mubr.f32.mxu0 0.0
    %3155 = vmatmul.mubr.f32.gmra.mxu0 %v3082
    %v3156 = vpop.f32.mrf.mxu0
    %v3157 = vadd.f32 0.0, %v3156
    %v3158 = vpop.f32.mrf.mxu0
    %v3159 = vadd.f32 0.0, %v3158
    %3160 = vdwg.mxu0
    %3161 = vmatprep.subr.mxu0 0.0
    %3162 = vmatpush1.msra.mxu0 0.0
    %3163 = vmatprep.subr.mxu0 0.0
    %3164 = vmatpush1.msra.mxu0 0.0
    %3165 = vmatprep.subr.mxu0 0.0
    %3166 = vmatpush1.msra.mxu0 0.0
    %3167 = vmatprep.subr.mxu0 0.0
    %3168 = vmatpush1.msra.mxu0 0.0
    %3169 = vmatprep.subr.mxu0 0.0
    %3170 = vmatpush1.msra.mxu0 0.0
    %3171 = vmatprep.subr.mxu0 0.0
    %3172 = vmatpush1.msra.mxu0 0.0
    %3173 = vmatprep.subr.mxu0 0.0
    %3174 = vmatpush1.msra.mxu0 0.0
    %3175 = vmatprep.subr.mxu0 0.0
    %3176 = vmatpush1.msra.mxu0 0.0
    %3177 = vmatprep.subr.mxu0 0.0
    %3178 = vmatpush1.msra.mxu0 0.0
    %3179 = vmatprep.subr.mxu0 0.0
    %3180 = vmatpush1.msra.mxu0 0.0
    %3181 = vmatprep.subr.mxu0 0.0
    %3182 = vmatpush1.msra.mxu0 0.0
    %3183 = vmatprep.subr.mxu0 0.0
    %3184 = vmatpush1.msra.mxu0 0.0
    %3185 = vmatprep.subr.mxu0 %v3075
    %3186 = vmatpush1.msra.mxu0 %v3074
    %3187 = vmatprep.subr.mxu0 %v3069
    %3188 = vmatpush1.msra.mxu0 %v3068
    %3189 = vmatprep.subr.mxu0 %v3063
    %3190 = vmatpush1.msra.mxu0 %v3062
    %3191 = vmatprep.subr.mxu0 %v3057
    %3192 = vmatpush1.msra.mxu0 %v3056
    %3193 = vmatprep.subr.mxu0 0.0
    %3194 = vmatpush2.msra.mxu0 0.0
    %3195 = vmatprep.subr.mxu0 0.0
    %3196 = vmatpush2.msra.mxu0 0.0
    %3197 = vmatprep.subr.mxu0 0.0
    %3198 = vmatpush2.msra.mxu0 0.0
    %3199 = vmatprep.subr.mxu0 0.0
    %3200 = vmatpush2.msra.mxu0 0.0
    %3201 = vmatprep.subr.mxu0 0.0
    %3202 = vmatpush2.msra.mxu0 0.0
    %3203 = vmatprep.subr.mxu0 0.0
    %3204 = vmatpush2.msra.mxu0 0.0
    %3205 = vmatprep.subr.mxu0 0.0
    %3206 = vmatpush2.msra.mxu0 0.0
    %3207 = vmatprep.subr.mxu0 0.0
    %3208 = vmatpush2.msra.mxu0 0.0
    %3209 = vmatprep.subr.mxu0 0.0
    %3210 = vmatpush2.msra.mxu0 0.0
    %3211 = vmatprep.subr.mxu0 0.0
    %3212 = vmatpush2.msra.mxu0 0.0
    %3213 = vmatprep.subr.mxu0 0.0
    %3214 = vmatpush2.msra.mxu0 0.0
    %3215 = vmatprep.subr.mxu0 0.0
    %3216 = vmatpush2.msra.mxu0 0.0
    %3217 = vmatprep.subr.mxu0 0.0
    %3218 = vmatpush2.msra.mxu0 0.0
    %3219 = vmatprep.subr.mxu0 0.0
    %3220 = vmatpush2.msra.mxu0 0.0
    %3221 = vmatprep.subr.mxu0 0.0
    %3222 = vmatpush2.msra.mxu0 0.0
    %3223 = vmatprep.subr.mxu0 0.0
    %3224 = vmatpush2.msra.mxu0 0.0
    %3225 = vmatprep.mubr.f32.mxu0 0.0
    %3226 = vmatmul.mubr.f32.gmra.mxu0 %v3079
    %v3227 = vpop.f32.mrf.mxu0
    %v3228 = vadd.f32 0.0, %v3227
    %v3229 = vpop.f32.mrf.mxu0
    %v3230 = vadd.f32 0.0, %v3229
    %3231 = vmatprep.mubr.f32.mxu0 0.0
    %3232 = vmatmul.mubr.f32.gmra.mxu0 %v3082
    %v3233 = vpop.f32.mrf.mxu0
    %v3234 = vadd.f32 0.0, %v3233
    %v3235 = vpop.f32.mrf.mxu0
    %v3236 = vadd.f32 0.0, %v3235
    %3237 = vdwg.mxu0
    %3238 = vmatprep.subr.mxu0 0.0
    %3239 = vmatpush1.msra.mxu0 0.0
    %3240 = vmatprep.subr.mxu0 0.0
    %3241 = vmatpush1.msra.mxu0 0.0
    %3242 = vmatprep.subr.mxu0 0.0
    %3243 = vmatpush1.msra.mxu0 0.0
    %3244 = vmatprep.subr.mxu0 0.0
    %3245 = vmatpush1.msra.mxu0 0.0
    %3246 = vmatprep.subr.mxu0 0.0
    %3247 = vmatpush1.msra.mxu0 0.0
    %3248 = vmatprep.subr.mxu0 0.0
    %3249 = vmatpush1.msra.mxu0 0.0
    %3250 = vmatprep.subr.mxu0 0.0
    %3251 = vmatpush1.msra.mxu0 0.0
    %3252 = vmatprep.subr.mxu0 0.0
    %3253 = vmatpush1.msra.mxu0 0.0
    %3254 = vmatprep.subr.mxu0 0.0
    %3255 = vmatpush1.msra.mxu0 0.0
    %3256 = vmatprep.subr.mxu0 0.0
    %3257 = vmatpush1.msra.mxu0 0.0
    %3258 = vmatprep.subr.mxu0 0.0
    %3259 = vmatpush1.msra.mxu0 0.0
    %3260 = vmatprep.subr.mxu0 0.0
    %3261 = vmatpush1.msra.mxu0 0.0
    %3262 = vmatprep.subr.mxu0 %v3077
    %3263 = vmatpush1.msra.mxu0 %v3076
    %3264 = vmatprep.subr.mxu0 %v3071
    %3265 = vmatpush1.msra.mxu0 %v3070
    %3266 = vmatprep.subr.mxu0 %v3065
    %3267 = vmatpush1.msra.mxu0 %v3064
    %3268 = vmatprep.subr.mxu0 %v3059
    %3269 = vmatpush1.msra.mxu0 %v3058
    %3270 = vmatprep.subr.mxu0 0.0
    %3271 = vmatpush2.msra.mxu0 0.0
    %3272 = vmatprep.subr.mxu0 0.0
    %3273 = vmatpush2.msra.mxu0 0.0
    %3274 = vmatprep.subr.mxu0 0.0
    %3275 = vmatpush2.msra.mxu0 0.0
    %3276 = vmatprep.subr.mxu0 0.0
    %3277 = vmatpush2.msra.mxu0 0.0
    %3278 = vmatprep.subr.mxu0 0.0
    %3279 = vmatpush2.msra.mxu0 0.0
    %3280 = vmatprep.subr.mxu0 0.0
    %3281 = vmatpush2.msra.mxu0 0.0
    %3282 = vmatprep.subr.mxu0 0.0
    %3283 = vmatpush2.msra.mxu0 0.0
    %3284 = vmatprep.subr.mxu0 0.0
    %3285 = vmatpush2.msra.mxu0 0.0
    %3286 = vmatprep.subr.mxu0 0.0
    %3287 = vmatpush2.msra.mxu0 0.0
    %3288 = vmatprep.subr.mxu0 0.0
    %3289 = vmatpush2.msra.mxu0 0.0
    %3290 = vmatprep.subr.mxu0 0.0
    %3291 = vmatpush2.msra.mxu0 0.0
    %3292 = vmatprep.subr.mxu0 0.0
    %3293 = vmatpush2.msra.mxu0 0.0
    %3294 = vmatprep.subr.mxu0 0.0
    %3295 = vmatpush2.msra.mxu0 0.0
    %3296 = vmatprep.subr.mxu0 0.0
    %3297 = vmatpush2.msra.mxu0 0.0
    %3298 = vmatprep.subr.mxu0 0.0
    %3299 = vmatpush2.msra.mxu0 0.0
    %3300 = vmatprep.subr.mxu0 0.0
    %3301 = vmatpush2.msra.mxu0 0.0
    %3302 = vmatprep.mubr.f32.mxu0 0.0
    %3303 = vmatmul.mubr.f32.gmra.mxu0 %v3079
    %v3304 = vpop.f32.mrf.mxu0
    %v3305 = vadd.f32 0.0, %v3304
    %v3306 = vpop.f32.mrf.mxu0
    %v3307 = vadd.f32 0.0, %v3306
    %3308 = vmatprep.mubr.f32.mxu0 0.0
    %3309 = vmatmul.mubr.f32.gmra.mxu0 %v3082
    %v3310 = vpop.f32.mrf.mxu0
    %v3311 = vadd.f32 0.0, %v3310
    %v3312 = vpop.f32.mrf.mxu0
    %v3313 = vadd.f32 0.0, %v3312
    %3314 = vdwg.mxu0
    %v3315 = vld [vmem:[#allocation7] sm:$0x1]
    %3316 = vrot.lane.b32.xlu0 %v3151, 19
    %v3317 = vpop.permute.xlu0 %3316
    %3318 = vrot.lane.b32.xlu0 %v3153, 19
    %v3319 = vpop.permute.xlu0 %3318
    %3320 = vrot.lane.b32.xlu0 %v3228, 19
    %v3321 = vpop.permute.xlu0 %3320
    %3322 = vrot.lane.b32.xlu0 %v3230, 19
    %v3323 = vpop.permute.xlu0 %3322
    %3324 = vrot.lane.b32.xlu0 %v3305, 19
    %v3325 = vpop.permute.xlu0 %3324
    %3326 = vrot.lane.b32.xlu0 %v3307, 19
    %v3327 = vpop.permute.xlu0 %3326
    %vm3328 = vcmp.lt.s32.totalorder %v336, 19
    %v3329 = vsel %vm3328, %v3325, %v3327
    %v3330 = vsel %vm3328, %v3323, %v3325
    %v3331 = vsel %vm3328, %v3321, %v3323
    %v3332 = vsel %vm3328, %v3319, %v3321
    %v3333 = vsel %vm3328, %v3317, %v3319
    %v3334 = vsel %vm3328, %v3327, %v3317
    %v3341 = vrot.slane %v3151, 1
    %v3342 = vrot.slane %v3153, 1
    %v3343 = vrot.slane %v3228, 1
    %v3344 = vrot.slane %v3230, 1
    %v3345 = vrot.slane %v3305, 1
    %v3346 = vrot.slane %v3307, 1
    %3353 = vrot.lane.b32.xlu0 %v3341, 18
    %v3354 = vpop.permute.xlu0 %3353
    %3355 = vrot.lane.b32.xlu0 %v3342, 18
    %v3356 = vpop.permute.xlu0 %3355
    %3357 = vrot.lane.b32.xlu0 %v3343, 18
    %v3358 = vpop.permute.xlu0 %3357
    %3359 = vrot.lane.b32.xlu0 %v3344, 18
    %v3360 = vpop.permute.xlu0 %3359
    %3361 = vrot.lane.b32.xlu0 %v3345, 18
    %v3362 = vpop.permute.xlu0 %3361
    %3363 = vrot.lane.b32.xlu0 %v3346, 18
    %v3364 = vpop.permute.xlu0 %3363
    %vm3365 = vcmp.lt.s32.totalorder %v336, 18
    %v3366 = vsel %vm3365, %v3362, %v3364
    %v3367 = vsel %vm3365, %v3360, %v3362
    %v3368 = vsel %vm3365, %v3358, %v3360
    %v3369 = vsel %vm3365, %v3356, %v3358
    %v3370 = vsel %vm3365, %v3354, %v3356
    %v3371 = vsel %vm3365, %v3364, %v3354
    %v3372 = vadd.f32 %v3334, %v3371
    %v3373 = vadd.f32 %v3333, %v3370
    %v3374 = vadd.f32 %v3332, %v3369
    %v3375 = vadd.f32 %v3331, %v3368
    %v3376 = vadd.f32 %v3330, %v3367
    %v3377 = vadd.f32 %v3329, %v3366
    %v3378 = vrot.slane %v3151, 2
    %v3379 = vrot.slane %v3153, 2
    %v3380 = vrot.slane %v3228, 2
    %v3381 = vrot.slane %v3230, 2
    %v3382 = vrot.slane %v3305, 2
    %v3383 = vrot.slane %v3307, 2
    %3390 = vrot.lane.b32.xlu0 %v3378, 17
    %v3391 = vpop.permute.xlu0 %3390
    %3392 = vrot.lane.b32.xlu0 %v3379, 17
    %v3393 = vpop.permute.xlu0 %3392
    %3394 = vrot.lane.b32.xlu0 %v3380, 17
    %v3395 = vpop.permute.xlu0 %3394
    %3396 = vrot.lane.b32.xlu0 %v3381, 17
    %v3397 = vpop.permute.xlu0 %3396
    %3398 = vrot.lane.b32.xlu0 %v3382, 17
    %v3399 = vpop.permute.xlu0 %3398
    %3400 = vrot.lane.b32.xlu0 %v3383, 17
    %v3401 = vpop.permute.xlu0 %3400
    %vm3402 = vcmp.lt.s32.totalorder %v336, 17
    %v3403 = vsel %vm3402, %v3399, %v3401
    %v3404 = vsel %vm3402, %v3397, %v3399
    %v3405 = vsel %vm3402, %v3395, %v3397
    %v3406 = vsel %vm3402, %v3393, %v3395
    %v3407 = vsel %vm3402, %v3391, %v3393
    %v3408 = vsel %vm3402, %v3401, %v3391
    %v3409 = vadd.f32 %v3372, %v3408
    %v3410 = vadd.f32 %v3373, %v3407
    %v3411 = vadd.f32 %v3374, %v3406
    %v3412 = vadd.f32 %v3375, %v3405
    %v3413 = vadd.f32 %v3376, %v3404
    %v3414 = vadd.f32 %v3377, %v3403
    %v3415 = vrot.slane %v3151, 3
    %v3416 = vrot.slane %v3153, 3
    %v3417 = vrot.slane %v3228, 3
    %v3418 = vrot.slane %v3230, 3
    %v3419 = vrot.slane %v3305, 3
    %v3420 = vrot.slane %v3307, 3
    %3427 = vrot.lane.b32.xlu0 %v3415, 1
    %v3428 = vpop.permute.xlu0 %3427
    %3429 = vrot.lane.b32.xlu0 %v3416, 1
    %v3430 = vpop.permute.xlu0 %3429
    %3431 = vrot.lane.b32.xlu0 %v3417, 1
    %v3432 = vpop.permute.xlu0 %3431
    %3433 = vrot.lane.b32.xlu0 %v3418, 1
    %v3434 = vpop.permute.xlu0 %3433
    %3435 = vrot.lane.b32.xlu0 %v3419, 1
    %v3436 = vpop.permute.xlu0 %3435
    %3437 = vrot.lane.b32.xlu0 %v3420, 1
    %v3438 = vpop.permute.xlu0 %3437
    %v3439 = vsel %vm376, %v3436, %v3438
    %v3440 = vsel %vm376, %v3434, %v3436
    %v3441 = vsel %vm376, %v3432, %v3434
    %v3442 = vsel %vm376, %v3430, %v3432
    %v3443 = vsel %vm376, %v3428, %v3430
    %v3444 = vsel %vm376, %v3438, %v3428
    %v3445 = vadd.f32 %v3409, %v3444
    %v3446 = vadd.f32 %v3410, %v3443
    %v3447 = vadd.f32 %v3411, %v3442
    %v3448 = vadd.f32 %v3412, %v3441
    %v3449 = vadd.f32 %v3413, %v3440
    %v3450 = vadd.f32 %v3414, %v3439
    %v3451 = vrot.slane %v3151, 4
    %v3452 = vrot.slane %v3153, 4
    %v3453 = vrot.slane %v3228, 4
    %v3454 = vrot.slane %v3230, 4
    %v3455 = vrot.slane %v3305, 4
    %v3456 = vrot.slane %v3307, 4
    %v3463 = vadd.f32 %v3445, %v3451
    %v3464 = vadd.f32 %v3446, %v3452
    %v3465 = vadd.f32 %v3447, %v3453
    %v3466 = vadd.f32 %v3448, %v3454
    %v3467 = vadd.f32 %v3449, %v3455
    %v3468 = vadd.f32 %v3450, %v3456
    %v3469 = vrot.slane %v3151, 5
    %v3470 = vrot.slane %v3153, 5
    %v3471 = vrot.slane %v3228, 5
    %v3472 = vrot.slane %v3230, 5
    %v3473 = vrot.slane %v3305, 5
    %v3474 = vrot.slane %v3307, 5
    %3481 = vrot.lane.b32.xlu0 %v3469, 127
    %v3482 = vpop.permute.xlu0 %3481
    %3483 = vrot.lane.b32.xlu0 %v3470, 127
    %v3484 = vpop.permute.xlu0 %3483
    %3485 = vrot.lane.b32.xlu0 %v3471, 127
    %v3486 = vpop.permute.xlu0 %3485
    %3487 = vrot.lane.b32.xlu0 %v3472, 127
    %v3488 = vpop.permute.xlu0 %3487
    %3489 = vrot.lane.b32.xlu0 %v3473, 127
    %v3490 = vpop.permute.xlu0 %3489
    %3491 = vrot.lane.b32.xlu0 %v3474, 127
    %v3492 = vpop.permute.xlu0 %3491
    %v3493 = vsel %vm395, %v3490, %v3492
    %v3494 = vsel %vm395, %v3488, %v3490
    %v3495 = vsel %vm395, %v3486, %v3488
    %v3496 = vsel %vm395, %v3484, %v3486
    %v3497 = vsel %vm395, %v3482, %v3484
    %v3498 = vsel %vm395, %v3492, %v3482
    %v3499 = vadd.f32 %v3463, %v3497
    %v3500 = vadd.f32 %v3464, %v3496
    %v3501 = vadd.f32 %v3465, %v3495
    %v3502 = vadd.f32 %v3466, %v3494
    %v3503 = vadd.f32 %v3467, %v3493
    %v3504 = vadd.f32 %v3468, %v3498
    %v3505 = vrot.slane %v3151, 6
    %v3506 = vrot.slane %v3153, 6
    %v3507 = vrot.slane %v3228, 6
    %v3508 = vrot.slane %v3230, 6
    %v3509 = vrot.slane %v3305, 6
    %v3510 = vrot.slane %v3307, 6
    %3517 = vrot.lane.b32.xlu0 %v3505, 111
    %v3518 = vpop.permute.xlu0 %3517
    %3519 = vrot.lane.b32.xlu0 %v3506, 111
    %v3520 = vpop.permute.xlu0 %3519
    %3521 = vrot.lane.b32.xlu0 %v3507, 111
    %v3522 = vpop.permute.xlu0 %3521
    %3523 = vrot.lane.b32.xlu0 %v3508, 111
    %v3524 = vpop.permute.xlu0 %3523
    %3525 = vrot.lane.b32.xlu0 %v3509, 111
    %v3526 = vpop.permute.xlu0 %3525
    %3527 = vrot.lane.b32.xlu0 %v3510, 111
    %v3528 = vpop.permute.xlu0 %3527
    %vm3529 = vcmp.lt.s32.totalorder %v336, 111
    %v3530 = vsel %vm3529, %v3526, %v3528
    %v3531 = vsel %vm3529, %v3524, %v3526
    %v3532 = vsel %vm3529, %v3522, %v3524
    %v3533 = vsel %vm3529, %v3520, %v3522
    %v3534 = vsel %vm3529, %v3518, %v3520
    %v3535 = vsel %vm3529, %v3528, %v3518
    %v3536 = vadd.f32 %v3499, %v3534
    %v3537 = vadd.f32 %v3500, %v3533
    %v3538 = vadd.f32 %v3501, %v3532
    %v3539 = vadd.f32 %v3502, %v3531
    %v3540 = vadd.f32 %v3503, %v3530
    %v3541 = vadd.f32 %v3504, %v3535
    %v3542 = vrot.slane %v3151, 7
    %v3543 = vrot.slane %v3153, 7
    %v3544 = vrot.slane %v3228, 7
    %v3545 = vrot.slane %v3230, 7
    %v3546 = vrot.slane %v3305, 7
    %v3547 = vrot.slane %v3307, 7
    %3554 = vrot.lane.b32.xlu0 %v3542, 110
    %v3555 = vpop.permute.xlu0 %3554
    %3556 = vrot.lane.b32.xlu0 %v3543, 110
    %v3557 = vpop.permute.xlu0 %3556
    %3558 = vrot.lane.b32.xlu0 %v3544, 110
    %v3559 = vpop.permute.xlu0 %3558
    %3560 = vrot.lane.b32.xlu0 %v3545, 110
    %v3561 = vpop.permute.xlu0 %3560
    %3562 = vrot.lane.b32.xlu0 %v3546, 110
    %v3563 = vpop.permute.xlu0 %3562
    %3564 = vrot.lane.b32.xlu0 %v3547, 110
    %v3565 = vpop.permute.xlu0 %3564
    %vm3566 = vcmp.lt.s32.totalorder %v336, 110
    %v3567 = vsel %vm3566, %v3563, %v3565
    %v3568 = vsel %vm3566, %v3561, %v3563
    %v3569 = vsel %vm3566, %v3559, %v3561
    %v3570 = vsel %vm3566, %v3557, %v3559
    %v3571 = vsel %vm3566, %v3555, %v3557
    %v3572 = vsel %vm3566, %v3565, %v3555
    %v3573 = vadd.f32 %v3536, %v3571
    %v3574 = vadd.f32 %v3537, %v3570
    %v3575 = vadd.f32 %v3538, %v3569
    %v3576 = vadd.f32 %v3539, %v3568
    %v3577 = vadd.f32 %v3540, %v3567
    %v3578 = vadd.f32 %v3541, %v3572
    %3579 = vrot.lane.b32.xlu0 %v3157, 109
    %v3580 = vpop.permute.xlu0 %3579
    %3581 = vrot.lane.b32.xlu0 %v3159, 109
    %v3582 = vpop.permute.xlu0 %3581
    %3583 = vrot.lane.b32.xlu0 %v3234, 109
    %v3584 = vpop.permute.xlu0 %3583
    %3585 = vrot.lane.b32.xlu0 %v3236, 109
    %v3586 = vpop.permute.xlu0 %3585
    %3587 = vrot.lane.b32.xlu0 %v3311, 109
    %v3588 = vpop.permute.xlu0 %3587
    %3589 = vrot.lane.b32.xlu0 %v3313, 109
    %v3590 = vpop.permute.xlu0 %3589
    %vm3591 = vcmp.lt.s32.totalorder %v336, 109
    %v3592 = vsel %vm3591, %v3588, %v3590
    %v3593 = vsel %vm3591, %v3586, %v3588
    %v3594 = vsel %vm3591, %v3584, %v3586
    %v3595 = vsel %vm3591, %v3582, %v3584
    %v3596 = vsel %vm3591, %v3580, %v3582
    %v3597 = vsel %vm3591, %v3590, %v3580
    %v3598 = vadd.f32 %v3573, %v3596
    %v3599 = vadd.f32 %v3574, %v3595
    %v3600 = vadd.f32 %v3575, %v3594
    %v3601 = vadd.f32 %v3576, %v3593
    %v3602 = vadd.f32 %v3577, %v3592
    %v3603 = vadd.f32 %v3578, %v3597
    %3605 = vset.pattern.permute.xlu0 0
    %3606 = vperm.xlu0 %3605, %v3315
    %v3607 = vpop.permute.xlu0 %3606
    %v3609 = vlaneseq
    %v3610 = vshrl.u32 %v3609, 7
    %v3611 = vsub.s32 0, %v3610
    %v3612 = vrot.slane %v3607, %v3611
    %v3613 = vadd.f32 %v3598, %v3612
    %v3614 = vadd.f32 %v3599, %v3612
    %v3615 = vadd.f32 %v3600, %v3612
    %v3616 = vadd.f32 %v3601, %v3612
    %v3617 = vadd.f32 %v3602, %v3612
    %v3618 = vadd.f32 %v3603, %v3612
    %v3619 = vld [vmem:[#allocation11] sm:$0x3f]
    %v3620 = vxor.u32 %v3613, 2147483648
    %v3621 = vxor.u32 %v3614, 2147483648
    %v3622 = vxor.u32 %v3615, 2147483648
    %v3623 = vxor.u32 %v3616, 2147483648
    %v3624 = vxor.u32 %v3617, 2147483648
    %v3625 = vxor.u32 %v3618, 2147483648
    %v3626 = vmul.f32 %v3620, 1.442695
    %v3627 = vpow.pop %v3626
    %v3628 = vmul.f32 %v3621, 1.442695
    %v3629 = vpow.pop %v3628
    %v3630 = vmul.f32 %v3622, 1.442695
    %v3631 = vpow.pop %v3630
    %v3632 = vmul.f32 %v3623, 1.442695
    %v3633 = vpow.pop %v3632
    %v3634 = vmul.f32 %v3624, 1.442695
    %v3635 = vpow.pop %v3634
    %v3636 = vmul.f32 %v3625, 1.442695
    %v3637 = vpow.pop %v3636
    %v3638 = vadd.f32 %v3627, 1.0
    %v3639 = vadd.f32 %v3629, 1.0
    %v3640 = vadd.f32 %v3631, 1.0
    %v3641 = vadd.f32 %v3633, 1.0
    %v3642 = vadd.f32 %v3635, 1.0
    %v3643 = vadd.f32 %v3637, 1.0
    %v3644 = vrcp.pop %v3638
    %v3645 = vmul.f32 1.0, %v3644
    %v3646 = vrcp.pop %v3639
    %v3647 = vmul.f32 1.0, %v3646
    %v3648 = vrcp.pop %v3640
    %v3649 = vmul.f32 1.0, %v3648
    %v3650 = vrcp.pop %v3641
    %v3651 = vmul.f32 1.0, %v3650
    %v3652 = vrcp.pop %v3642
    %v3653 = vmul.f32 1.0, %v3652
    %v3654 = vrcp.pop %v3643
    %v3655 = vmul.f32 1.0, %v3654
    %v3656 = vmul.f32 %v3613, %v3645
    %v3657 = vmul.f32 %v3614, %v3647
    %v3658 = vmul.f32 %v3615, %v3649
    %v3659 = vmul.f32 %v3616, %v3651
    %v3660 = vmul.f32 %v3617, %v3653
    %v3661 = vmul.f32 %v3618, %v3655
    %v3668 = vcombine.low %v3656, %v3657
    %v3669 = vcombine.low %v3658, %v3659
    %v3670 = vcombine.low %v3660, %v3661
    %v3672 = vunpack.c.l.s4 1966171168
    %v3673 = vunpack.c.0.s8 %v3672
    %v3674 = vlaneseq
    %v3675 = vshrl.u32 %v3674, 7
    %v3676 = vsub.s32 %v3673, %v3675
    %v3677 = vrot.slane %v3668, %v3676
    %v3679 = vunpack.c.l.s4 1966171168
    %v3680 = vunpack.c.0.s8 %v3679
    %v3681 = vlaneseq
    %v3682 = vshrl.u32 %v3681, 7
    %v3683 = vsub.s32 %v3680, %v3682
    %v3684 = vrot.slane %v3669, %v3683
    %v3686 = vunpack.c.l.s4 1966171168
    %v3687 = vunpack.c.0.s8 %v3686
    %v3688 = vlaneseq
    %v3689 = vshrl.u32 %v3688, 7
    %v3690 = vsub.s32 %v3687, %v3689
    %v3691 = vrot.slane %v3670, %v3690
    %v3692 = vcombine.low %v3677, %v3684
    %v3694 = vunpack.c.l.s4 1966171168
    %v3695 = vunpack.c.0.s8 %v3694
    %v3696 = vlaneseq
    %v3697 = vshrl.u32 %v3696, 7
    %v3698 = vsub.s32 %v3695, %v3697
    %v3699 = vrot.slane %v3692, %v3698
    %v3701 = vunpack.c.l.s4 1966171168
    %v3702 = vunpack.c.0.s8 %v3701
    %v3703 = vlaneseq
    %v3704 = vshrl.u32 %v3703, 7
    %v3705 = vsub.s32 %v3702, %v3704
    %v3706 = vrot.slane %v3691, %v3705
    %v3707 = vcombine.low %v3699, %v3706
    %v3709 = vadd.f32 %v3619, %v3707
    %vm3710 = vcmp.lt.s32.totalorder %v2226, 768
    %vm3711 = vmand %vm2227, %vm3710
    %3712 = vst.msk [vmem:[#allocation11] sm:$0x3f] %vm3711, %v3709
    // Predicated region
    $region114: #{tpu_custom_call.1} parent=1 // pred_check
      _
    $region115: #{tpu_custom_call.1} parent=1 // pred_check_branch
      %3714 = sbr.rel (0) target = $region117
    $region116: #{tpu_custom_call.1} parent=1 // pred_region
      %s3716 = ssub.s32 96, 96
      %3717 = vsyncadd [#allocation10], %s3716
      %s3719 = sshll.u32 [#allocation11], 4
      %s3720 = int_to_ptr.vmem [resolvable:$true] %s3719
      %3722 = dma.vmem_to_hbm [thread:$0]  %s3720, 96, %s12, [#allocation10]
    $region117: #{tpu_custom_call.1} parent=1 // pred_fallthru
      _
    // Predicated region
    $region118: #{tpu_custom_call.1} parent=1 // pred_check
      _
    $region119: #{tpu_custom_call.1} parent=1 // pred_check_branch
      %3724 = sbr.rel (0) target = $region121
    $region120: #{tpu_custom_call.1} parent=1 // pred_region
      %3725 = dma.done [#allocation10], 96
    $region121: #{tpu_custom_call.1} parent=1 // pred_fallthru
      _
    %3726 = vsyncpa [#allocation9], 1
    %3727 = vsyncpa [#allocation10], 1
  %3728 = vsyncmov [#allocation5]
  %s3729 = vpop.sfrf %3728
  %p3730 = scmp.eq.s32.totalorder %s3729, 0
  %p3731 = pneg %p3730
  %3733 = shalt.err (%p3731)
  %s3734 = scalar_lea.sflag [#allocation5], 1
  %3735 = vsyncmov %s3734
  %s3736 = vpop.sfrf %3735
  %p3737 = scmp.eq.s32.totalorder %s3736, 0
  %p3738 = pneg %p3737
  %3740 = shalt.err (%p3738)

</llo_original>
